<compile_context>
chip_gen: v7x
topology: tpu7x:2x2x1
jax: 0.10.0
libtpu: 0.0.40
codegen_flags: <defaults>
</compile_context>

<pallas_src>
import functools

import jax
import jax.numpy as jnp
from jax.experimental import pallas as pl
from jax.experimental.pallas import tpu as pltpu

LANE = 128


def _round_up(x, m):
    return (x + m - 1) // m * m


def _mlp_fused_kernel(*refs, num_layers, skips):
    """Runs the whole MLP on one (tile_n, *) block of points.

    refs = (x_ref, <per-layer params...>, out_ref) where a regular layer
    contributes (w, b) and a skip layer contributes (w_top, w_bot, b).
    All weights are bf16, biases f32, accumulation f32.
    """
    x_ref = refs[0]
    out_ref = refs[-1]
    p_refs = refs[1:-1]

    x_in = x_ref[...]                       # (tn, Ip) bf16, zero-padded input
    h = x_in
    idx = 0
    for li in range(num_layers):
        if li in skips:
            w_top = p_refs[idx][...]
            w_bot = p_refs[idx + 1][...]
            b = p_refs[idx + 2][...]
            idx += 3
            # skip layer: y = concat([h, x]) @ W  ==  h @ W_top + x @ W_bot
            y = jnp.dot(h, w_top, preferred_element_type=jnp.float32)
            y = y + jnp.dot(x_in, w_bot, preferred_element_type=jnp.float32)
        else:
            w = p_refs[idx][...]
            b = p_refs[idx + 1][...]
            idx += 2
            y = jnp.dot(h, w, preferred_element_type=jnp.float32)
        y = y + b                           # (1, Op) f32 bias broadcasts over rows
        if li != num_layers - 1:
            h = jnp.maximum(y, 0.0).astype(jnp.bfloat16)   # ReLU hidden activation
        else:
            out_ref[...] = y.astype(out_ref.dtype)          # Identity output actvn


def mlp_forward(params, x, *, skips=(4,), tile_n=512):
    """Fused forward pass matching MLP.forward (ReLU hidden, Identity output).

    params: list of (w, b); w stored transposed as (I, O) f32, b as (O,) f32.
    x: (N, input_ch) f32.  Returns (N, out_ch) f32.
    """
    N, input_ch = x.shape
    num_layers = len(params)
    out_ch = params[-1][0].shape[1]

    ip = _round_up(input_ch, LANE)                       # padded input width
    wp = _round_up(params[0][0].shape[1], LANE)          # padded hidden width
    op = _round_up(out_ch, LANE)                         # padded output width

    # Tile the point dimension; keep >=2 grid steps when N allows so the
    # "parallel" axis can actually shard across two TensorCores (v7x).
    tn = min(tile_n, N)
    if N > 256 and pl.cdiv(N, tn) < 2:
        tn = _round_up(pl.cdiv(N, 2), LANE)

    # Pad + cast once on the XLA side (zero padding is numerically exact).
    x_p = jnp.pad(x, ((0, 0), (0, ip - input_ch))).astype(jnp.bfloat16)

    flat_inputs = [x_p]
    in_specs = [pl.BlockSpec((tn, ip), lambda i: (i, 0))]
    flops = 0
    for li, (w, b) in enumerate(params):
        I_l, O_l = w.shape
        O_p = op if li == num_layers - 1 else wp
        flops += 2 * N * I_l * O_l
        if li in skips:
            Wl = I_l - input_ch                          # rows belonging to running h
            w_top = jnp.pad(w[:Wl, :], ((0, wp - Wl), (0, O_p - O_l)))
            w_bot = jnp.pad(w[Wl:, :], ((0, ip - input_ch), (0, O_p - O_l)))
            flat_inputs += [w_top.astype(jnp.bfloat16), w_bot.astype(jnp.bfloat16)]
            in_specs += [pl.BlockSpec((wp, O_p), lambda i: (0, 0)),
                         pl.BlockSpec((ip, O_p), lambda i: (0, 0))]
        else:
            I_p = ip if li == 0 else wp
            w_pad = jnp.pad(w, ((0, I_p - I_l), (0, O_p - O_l)))
            flat_inputs.append(w_pad.astype(jnp.bfloat16))
            in_specs.append(pl.BlockSpec((I_p, O_p), lambda i: (0, 0)))
        b_pad = jnp.pad(b, (0, O_p - O_l)).reshape(1, O_p).astype(jnp.float32)
        flat_inputs.append(b_pad)
        in_specs.append(pl.BlockSpec((1, O_p), lambda i: (0, 0)))

    bytes_accessed = int(sum(a.size * a.dtype.itemsize for a in flat_inputs)
                         + N * op * 4)

    kernel = functools.partial(_mlp_fused_kernel,
                               num_layers=num_layers, skips=tuple(skips))
    out_p = pl.pallas_call(
        kernel,
        out_shape=jax.ShapeDtypeStruct((N, op), jnp.float32),
        grid_spec=pltpu.PrefetchScalarGridSpec(
            num_scalar_prefetch=0,
            grid=(pl.cdiv(N, tn),),
            in_specs=in_specs,
            out_specs=pl.BlockSpec((tn, op), lambda i: (i, 0)),
        ),
        compiler_params=pltpu.CompilerParams(
            dimension_semantics=("parallel",),
            vmem_limit_bytes=48 * 1024 * 1024,   # above 32MiB default, under v7x 64MiB
        ),
        cost_estimate=pl.CostEstimate(flops=flops, transcendentals=0,
                                      bytes_accessed=bytes_accessed),
    )(*flat_inputs)
    return out_p[:, :out_ch]                     # slice padded lanes back to out_ch


def init_mlp_params(key, input_ch=32, W=256, D=8, out_ch=257, skips=(4,)):
    """Deterministic init mirroring nn.Linear shapes (weights stored as (I, O))."""
    params = []
    for i in range(D + 1):
        I, O = W, W
        if i == 0:
            I = input_ch
        if i in skips:
            I = input_ch + W
        if i == D:
            O = out_ch
        key, kw, kb = jax.random.split(key, 3)
        bound = 1.0 / jnp.sqrt(jnp.float32(I))   # PyTorch default Linear init range
        w = jax.random.uniform(kw, (I, O), jnp.float32, -bound, bound)
        b = jax.random.uniform(kb, (O,), jnp.float32, -bound, bound)
        params.append((w, b))
    return params


def mlp_reference(params, x, skips=(4,)):
    """Pure-JAX reference mirroring the kernel's bf16-input / f32-accum numerics."""
    inp = x.astype(jnp.bfloat16)
    h = inp
    n_layers = len(params)
    out = None
    for i, (w, b) in enumerate(params):
        if i in skips:
            h = jnp.concatenate([h, inp], axis=-1)
        y = jnp.dot(h, w.astype(jnp.bfloat16),
                    preferred_element_type=jnp.float32) + b
        if i != n_layers - 1:
            h = jnp.maximum(y, 0.0).astype(jnp.bfloat16)
        else:
            out = y
    return out


if __name__ == "__main__":
    key = jax.random.PRNGKey(0)
    # Small, module-consistent shapes: 1024 points (so the grid has multiple
    # steps), input_ch=32, hidden W=64, D=8, out_ch=33, skip at layer 4.
    input_ch, W, D, out_ch = 32, 64, 8, 33
    skips = (4,)
    N = 1024

    kx, kp = jax.random.split(key)
    x = jax.random.normal(kx, (N, input_ch), jnp.float32)
    params = init_mlp_params(kp, input_ch=input_ch, W=W, D=D,
                             out_ch=out_ch, skips=skips)

    fwd = jax.jit(functools.partial(mlp_forward, skips=skips, tile_n=256))
    out = fwd(params, x)
    out = jax.block_until_ready(out)

    ref = mlp_reference(params, x, skips=skips)
    assert out.shape == (N, out_ch), out.shape
    max_err = float(jnp.max(jnp.abs(out - ref)))
    assert jnp.allclose(out, ref, atol=1e-2, rtol=1e-2), f"mismatch, max_err={max_err}"

    # TODO(synk): GradModule.take_gradient / jacobian (autograd helpers) are not part
    # of the forward pass and are left to jax.grad / jax.jacrev on this function.
    print("KERNEL_OK")
</pallas_src>

<mosaic_0001>
module attributes {stable_mosaic.version = 11 : i64} {
  func.func @_mlp_fused_kernel(%arg0: i32, %arg1: memref<256x128xbf16, #tpu.memory_space<vmem>>, %arg2: memref<128x128xbf16, #tpu.memory_space<vmem>>, %arg3: memref<1x128xf32, #tpu.memory_space<vmem>>, %arg4: memref<128x128xbf16, #tpu.memory_space<vmem>>, %arg5: memref<1x128xf32, #tpu.memory_space<vmem>>, %arg6: memref<128x128xbf16, #tpu.memory_space<vmem>>, %arg7: memref<1x128xf32, #tpu.memory_space<vmem>>, %arg8: memref<128x128xbf16, #tpu.memory_space<vmem>>, %arg9: memref<1x128xf32, #tpu.memory_space<vmem>>, %arg10: memref<128x128xbf16, #tpu.memory_space<vmem>>, %arg11: memref<128x128xbf16, #tpu.memory_space<vmem>>, %arg12: memref<1x128xf32, #tpu.memory_space<vmem>>, %arg13: memref<128x128xbf16, #tpu.memory_space<vmem>>, %arg14: memref<1x128xf32, #tpu.memory_space<vmem>>, %arg15: memref<128x128xbf16, #tpu.memory_space<vmem>>, %arg16: memref<1x128xf32, #tpu.memory_space<vmem>>, %arg17: memref<128x128xbf16, #tpu.memory_space<vmem>>, %arg18: memref<1x128xf32, #tpu.memory_space<vmem>>, %arg19: memref<128x128xbf16, #tpu.memory_space<vmem>>, %arg20: memref<1x128xf32, #tpu.memory_space<vmem>>, %arg21: memref<256x128xf32, #tpu.memory_space<vmem>>) attributes {dimension_semantics = [#tpu.dimension_semantics<parallel>], iteration_bounds = array<i64: 4>, scalar_prefetch = 0 : i64, scratch_operands = 0 : i64, tpu.core_type = #tpu.core_type<tc>, window_params = [{transform_indices = @transform_0, window_bounds = array<i64: 256, 128>}, {pipeline_mode = #tpu.pipeline_mode<synchronous>, transform_indices = @transform_1, window_bounds = array<i64: 128, 128>}, {pipeline_mode = #tpu.pipeline_mode<synchronous>, transform_indices = @transform_2, window_bounds = array<i64: 1, 128>}, {pipeline_mode = #tpu.pipeline_mode<synchronous>, transform_indices = @transform_3, window_bounds = array<i64: 128, 128>}, {pipeline_mode = #tpu.pipeline_mode<synchronous>, transform_indices = @transform_4, window_bounds = array<i64: 1, 128>}, {pipeline_mode = #tpu.pipeline_mode<synchronous>, transform_indices = @transform_5, window_bounds = array<i64: 128, 128>}, {pipeline_mode = #tpu.pipeline_mode<synchronous>, transform_indices = @transform_6, window_bounds = array<i64: 1, 128>}, {pipeline_mode = #tpu.pipeline_mode<synchronous>, transform_indices = @transform_7, window_bounds = array<i64: 128, 128>}, {pipeline_mode = #tpu.pipeline_mode<synchronous>, transform_indices = @transform_8, window_bounds = array<i64: 1, 128>}, {pipeline_mode = #tpu.pipeline_mode<synchronous>, transform_indices = @transform_9, window_bounds = array<i64: 128, 128>}, {pipeline_mode = #tpu.pipeline_mode<synchronous>, transform_indices = @transform_10, window_bounds = array<i64: 128, 128>}, {pipeline_mode = #tpu.pipeline_mode<synchronous>, transform_indices = @transform_11, window_bounds = array<i64: 1, 128>}, {pipeline_mode = #tpu.pipeline_mode<synchronous>, transform_indices = @transform_12, window_bounds = array<i64: 128, 128>}, {pipeline_mode = #tpu.pipeline_mode<synchronous>, transform_indices = @transform_13, window_bounds = array<i64: 1, 128>}, {pipeline_mode = #tpu.pipeline_mode<synchronous>, transform_indices = @transform_14, window_bounds = array<i64: 128, 128>}, {pipeline_mode = #tpu.pipeline_mode<synchronous>, transform_indices = @transform_15, window_bounds = array<i64: 1, 128>}, {pipeline_mode = #tpu.pipeline_mode<synchronous>, transform_indices = @transform_16, window_bounds = array<i64: 128, 128>}, {pipeline_mode = #tpu.pipeline_mode<synchronous>, transform_indices = @transform_17, window_bounds = array<i64: 1, 128>}, {pipeline_mode = #tpu.pipeline_mode<synchronous>, transform_indices = @transform_18, window_bounds = array<i64: 128, 128>}, {pipeline_mode = #tpu.pipeline_mode<synchronous>, transform_indices = @transform_19, window_bounds = array<i64: 1, 128>}, {transform_indices = @transform_20, window_bounds = array<i64: 256, 128>}]} {
    %c0 = arith.constant 0 : index
    %c0_0 = arith.constant 0 : index
    %0 = vector.load %arg1[%c0, %c0_0] : memref<256x128xbf16, #tpu.memory_space<vmem>>, vector<256x128xbf16>
    %c0_1 = arith.constant 0 : index
    %c0_2 = arith.constant 0 : index
    %1 = vector.load %arg2[%c0_1, %c0_2] : memref<128x128xbf16, #tpu.memory_space<vmem>>, vector<128x128xbf16>
    %c0_3 = arith.constant 0 : index
    %c0_4 = arith.constant 0 : index
    %2 = vector.load %arg3[%c0_3, %c0_4] : memref<1x128xf32, #tpu.memory_space<vmem>>, vector<1x128xf32>
    %cst = arith.constant dense<0.000000e+00> : vector<256x128xf32>
    %3 = tpu.matmul %0, %1, %cst {dimension_numbers = #tpu.dot_dimension_numbers<[1], [0], [0], [1], [0, 0, 1, 1], [], []>} : vector<256x128xbf16>, vector<128x128xbf16>, vector<256x128xf32> -> vector<256x128xf32>
    %4 = vector.broadcast %2 : vector<1x128xf32> to vector<256x128xf32>
    %5 = arith.addf %3, %4 : vector<256x128xf32>
    %cst_5 = arith.constant 0.000000e+00 : f32
    %6 = vector.broadcast %cst_5 : f32 to vector<256x128xf32>
    %7 = arith.maximumf %5, %6 : vector<256x128xf32>
    %8 = arith.truncf %7 : vector<256x128xf32> to vector<256x128xbf16>
    %c0_6 = arith.constant 0 : index
    %c0_7 = arith.constant 0 : index
    %9 = vector.load %arg4[%c0_6, %c0_7] : memref<128x128xbf16, #tpu.memory_space<vmem>>, vector<128x128xbf16>
    %c0_8 = arith.constant 0 : index
    %c0_9 = arith.constant 0 : index
    %10 = vector.load %arg5[%c0_8, %c0_9] : memref<1x128xf32, #tpu.memory_space<vmem>>, vector<1x128xf32>
    %cst_10 = arith.constant dense<0.000000e+00> : vector<256x128xf32>
    %11 = tpu.matmul %8, %9, %cst_10 {dimension_numbers = #tpu.dot_dimension_numbers<[1], [0], [0], [1], [0, 0, 1, 1], [], []>} : vector<256x128xbf16>, vector<128x128xbf16>, vector<256x128xf32> -> vector<256x128xf32>
    %12 = vector.broadcast %10 : vector<1x128xf32> to vector<256x128xf32>
    %13 = arith.addf %11, %12 : vector<256x128xf32>
    %cst_11 = arith.constant 0.000000e+00 : f32
    %14 = vector.broadcast %cst_11 : f32 to vector<256x128xf32>
    %15 = arith.maximumf %13, %14 : vector<256x128xf32>
    %16 = arith.truncf %15 : vector<256x128xf32> to vector<256x128xbf16>
    %c0_12 = arith.constant 0 : index
    %c0_13 = arith.constant 0 : index
    %17 = vector.load %arg6[%c0_12, %c0_13] : memref<128x128xbf16, #tpu.memory_space<vmem>>, vector<128x128xbf16>
    %c0_14 = arith.constant 0 : index
    %c0_15 = arith.constant 0 : index
    %18 = vector.load %arg7[%c0_14, %c0_15] : memref<1x128xf32, #tpu.memory_space<vmem>>, vector<1x128xf32>
    %cst_16 = arith.constant dense<0.000000e+00> : vector<256x128xf32>
    %19 = tpu.matmul %16, %17, %cst_16 {dimension_numbers = #tpu.dot_dimension_numbers<[1], [0], [0], [1], [0, 0, 1, 1], [], []>} : vector<256x128xbf16>, vector<128x128xbf16>, vector<256x128xf32> -> vector<256x128xf32>
    %20 = vector.broadcast %18 : vector<1x128xf32> to vector<256x128xf32>
    %21 = arith.addf %19, %20 : vector<256x128xf32>
    %cst_17 = arith.constant 0.000000e+00 : f32
    %22 = vector.broadcast %cst_17 : f32 to vector<256x128xf32>
    %23 = arith.maximumf %21, %22 : vector<256x128xf32>
    %24 = arith.truncf %23 : vector<256x128xf32> to vector<256x128xbf16>
    %c0_18 = arith.constant 0 : index
    %c0_19 = arith.constant 0 : index
    %25 = vector.load %arg8[%c0_18, %c0_19] : memref<128x128xbf16, #tpu.memory_space<vmem>>, vector<128x128xbf16>
    %c0_20 = arith.constant 0 : index
    %c0_21 = arith.constant 0 : index
    %26 = vector.load %arg9[%c0_20, %c0_21] : memref<1x128xf32, #tpu.memory_space<vmem>>, vector<1x128xf32>
    %cst_22 = arith.constant dense<0.000000e+00> : vector<256x128xf32>
    %27 = tpu.matmul %24, %25, %cst_22 {dimension_numbers = #tpu.dot_dimension_numbers<[1], [0], [0], [1], [0, 0, 1, 1], [], []>} : vector<256x128xbf16>, vector<128x128xbf16>, vector<256x128xf32> -> vector<256x128xf32>
    %28 = vector.broadcast %26 : vector<1x128xf32> to vector<256x128xf32>
    %29 = arith.addf %27, %28 : vector<256x128xf32>
    %cst_23 = arith.constant 0.000000e+00 : f32
    %30 = vector.broadcast %cst_23 : f32 to vector<256x128xf32>
    %31 = arith.maximumf %29, %30 : vector<256x128xf32>
    %32 = arith.truncf %31 : vector<256x128xf32> to vector<256x128xbf16>
    %c0_24 = arith.constant 0 : index
    %c0_25 = arith.constant 0 : index
    %33 = vector.load %arg10[%c0_24, %c0_25] : memref<128x128xbf16, #tpu.memory_space<vmem>>, vector<128x128xbf16>
    %c0_26 = arith.constant 0 : index
    %c0_27 = arith.constant 0 : index
    %34 = vector.load %arg11[%c0_26, %c0_27] : memref<128x128xbf16, #tpu.memory_space<vmem>>, vector<128x128xbf16>
    %c0_28 = arith.constant 0 : index
    %c0_29 = arith.constant 0 : index
    %35 = vector.load %arg12[%c0_28, %c0_29] : memref<1x128xf32, #tpu.memory_space<vmem>>, vector<1x128xf32>
    %cst_30 = arith.constant dense<0.000000e+00> : vector<256x128xf32>
    %36 = tpu.matmul %32, %33, %cst_30 {dimension_numbers = #tpu.dot_dimension_numbers<[1], [0], [0], [1], [0, 0, 1, 1], [], []>} : vector<256x128xbf16>, vector<128x128xbf16>, vector<256x128xf32> -> vector<256x128xf32>
    %cst_31 = arith.constant dense<0.000000e+00> : vector<256x128xf32>
    %37 = tpu.matmul %0, %34, %cst_31 {dimension_numbers = #tpu.dot_dimension_numbers<[1], [0], [0], [1], [0, 0, 1, 1], [], []>} : vector<256x128xbf16>, vector<128x128xbf16>, vector<256x128xf32> -> vector<256x128xf32>
    %38 = arith.addf %36, %37 : vector<256x128xf32>
    %39 = vector.broadcast %35 : vector<1x128xf32> to vector<256x128xf32>
    %40 = arith.addf %38, %39 : vector<256x128xf32>
    %cst_32 = arith.constant 0.000000e+00 : f32
    %41 = vector.broadcast %cst_32 : f32 to vector<256x128xf32>
    %42 = arith.maximumf %40, %41 : vector<256x128xf32>
    %43 = arith.truncf %42 : vector<256x128xf32> to vector<256x128xbf16>
    %c0_33 = arith.constant 0 : index
    %c0_34 = arith.constant 0 : index
    %44 = vector.load %arg13[%c0_33, %c0_34] : memref<128x128xbf16, #tpu.memory_space<vmem>>, vector<128x128xbf16>
    %c0_35 = arith.constant 0 : index
    %c0_36 = arith.constant 0 : index
    %45 = vector.load %arg14[%c0_35, %c0_36] : memref<1x128xf32, #tpu.memory_space<vmem>>, vector<1x128xf32>
    %cst_37 = arith.constant dense<0.000000e+00> : vector<256x128xf32>
    %46 = tpu.matmul %43, %44, %cst_37 {dimension_numbers = #tpu.dot_dimension_numbers<[1], [0], [0], [1], [0, 0, 1, 1], [], []>} : vector<256x128xbf16>, vector<128x128xbf16>, vector<256x128xf32> -> vector<256x128xf32>
    %47 = vector.broadcast %45 : vector<1x128xf32> to vector<256x128xf32>
    %48 = arith.addf %46, %47 : vector<256x128xf32>
    %cst_38 = arith.constant 0.000000e+00 : f32
    %49 = vector.broadcast %cst_38 : f32 to vector<256x128xf32>
    %50 = arith.maximumf %48, %49 : vector<256x128xf32>
    %51 = arith.truncf %50 : vector<256x128xf32> to vector<256x128xbf16>
    %c0_39 = arith.constant 0 : index
    %c0_40 = arith.constant 0 : index
    %52 = vector.load %arg15[%c0_39, %c0_40] : memref<128x128xbf16, #tpu.memory_space<vmem>>, vector<128x128xbf16>
    %c0_41 = arith.constant 0 : index
    %c0_42 = arith.constant 0 : index
    %53 = vector.load %arg16[%c0_41, %c0_42] : memref<1x128xf32, #tpu.memory_space<vmem>>, vector<1x128xf32>
    %cst_43 = arith.constant dense<0.000000e+00> : vector<256x128xf32>
    %54 = tpu.matmul %51, %52, %cst_43 {dimension_numbers = #tpu.dot_dimension_numbers<[1], [0], [0], [1], [0, 0, 1, 1], [], []>} : vector<256x128xbf16>, vector<128x128xbf16>, vector<256x128xf32> -> vector<256x128xf32>
    %55 = vector.broadcast %53 : vector<1x128xf32> to vector<256x128xf32>
    %56 = arith.addf %54, %55 : vector<256x128xf32>
    %cst_44 = arith.constant 0.000000e+00 : f32
    %57 = vector.broadcast %cst_44 : f32 to vector<256x128xf32>
    %58 = arith.maximumf %56, %57 : vector<256x128xf32>
    %59 = arith.truncf %58 : vector<256x128xf32> to vector<256x128xbf16>
    %c0_45 = arith.constant 0 : index
    %c0_46 = arith.constant 0 : index
    %60 = vector.load %arg17[%c0_45, %c0_46] : memref<128x128xbf16, #tpu.memory_space<vmem>>, vector<128x128xbf16>
    %c0_47 = arith.constant 0 : index
    %c0_48 = arith.constant 0 : index
    %61 = vector.load %arg18[%c0_47, %c0_48] : memref<1x128xf32, #tpu.memory_space<vmem>>, vector<1x128xf32>
    %cst_49 = arith.constant dense<0.000000e+00> : vector<256x128xf32>
    %62 = tpu.matmul %59, %60, %cst_49 {dimension_numbers = #tpu.dot_dimension_numbers<[1], [0], [0], [1], [0, 0, 1, 1], [], []>} : vector<256x128xbf16>, vector<128x128xbf16>, vector<256x128xf32> -> vector<256x128xf32>
    %63 = vector.broadcast %61 : vector<1x128xf32> to vector<256x128xf32>
    %64 = arith.addf %62, %63 : vector<256x128xf32>
    %cst_50 = arith.constant 0.000000e+00 : f32
    %65 = vector.broadcast %cst_50 : f32 to vector<256x128xf32>
    %66 = arith.maximumf %64, %65 : vector<256x128xf32>
    %67 = arith.truncf %66 : vector<256x128xf32> to vector<256x128xbf16>
    %c0_51 = arith.constant 0 : index
    %c0_52 = arith.constant 0 : index
    %68 = vector.load %arg19[%c0_51, %c0_52] : memref<128x128xbf16, #tpu.memory_space<vmem>>, vector<128x128xbf16>
    %c0_53 = arith.constant 0 : index
    %c0_54 = arith.constant 0 : index
    %69 = vector.load %arg20[%c0_53, %c0_54] : memref<1x128xf32, #tpu.memory_space<vmem>>, vector<1x128xf32>
    %cst_55 = arith.constant dense<0.000000e+00> : vector<256x128xf32>
    %70 = tpu.matmul %67, %68, %cst_55 {dimension_numbers = #tpu.dot_dimension_numbers<[1], [0], [0], [1], [0, 0, 1, 1], [], []>} : vector<256x128xbf16>, vector<128x128xbf16>, vector<256x128xf32> -> vector<256x128xf32>
    %71 = vector.broadcast %69 : vector<1x128xf32> to vector<256x128xf32>
    %72 = arith.addf %70, %71 : vector<256x128xf32>
    %c0_56 = arith.constant 0 : index
    %c0_57 = arith.constant 0 : index
    %73 = vector.load %arg21[%c0_56, %c0_57] : memref<256x128xf32, #tpu.memory_space<vmem>>, vector<256x128xf32>
    tpu.vector_store %arg21[%c0_56, %c0_57], %72 {strides = array<i32>} : memref<256x128xf32, #tpu.memory_space<vmem>>, vector<256x128xf32>,
    return
  }
  func.func @transform_0(%arg0: i32) -> (i32, i32) {
    %c0_i32 = arith.constant 0 : i32
    %c0_i32_0 = arith.constant 0 : i32
    return %arg0, %c0_i32 : i32, i32
  }
  func.func @transform_1(%arg0: i32) -> (i32, i32) {
    %c0_i32 = arith.constant 0 : i32
    %c0_i32_0 = arith.constant 0 : i32
    %c0_i32_1 = arith.constant 0 : i32
    return %c0_i32, %c0_i32_0 : i32, i32
  }
  func.func @transform_2(%arg0: i32) -> (i32, i32) {
    %c0_i32 = arith.constant 0 : i32
    %c0_i32_0 = arith.constant 0 : i32
    %c0_i32_1 = arith.constant 0 : i32
    return %c0_i32, %c0_i32_0 : i32, i32
  }
  func.func @transform_3(%arg0: i32) -> (i32, i32) {
    %c0_i32 = arith.constant 0 : i32
    %c0_i32_0 = arith.constant 0 : i32
    %c0_i32_1 = arith.constant 0 : i32
    return %c0_i32, %c0_i32_0 : i32, i32
  }
  func.func @transform_4(%arg0: i32) -> (i32, i32) {
    %c0_i32 = arith.constant 0 : i32
    %c0_i32_0 = arith.constant 0 : i32
    %c0_i32_1 = arith.constant 0 : i32
    return %c0_i32, %c0_i32_0 : i32, i32
  }
  func.func @transform_5(%arg0: i32) -> (i32, i32) {
    %c0_i32 = arith.constant 0 : i32
    %c0_i32_0 = arith.constant 0 : i32
    %c0_i32_1 = arith.constant 0 : i32
    return %c0_i32, %c0_i32_0 : i32, i32
  }
  func.func @transform_6(%arg0: i32) -> (i32, i32) {
    %c0_i32 = arith.constant 0 : i32
    %c0_i32_0 = arith.constant 0 : i32
    %c0_i32_1 = arith.constant 0 : i32
    return %c0_i32, %c0_i32_0 : i32, i32
  }
  func.func @transform_7(%arg0: i32) -> (i32, i32) {
    %c0_i32 = arith.constant 0 : i32
    %c0_i32_0 = arith.constant 0 : i32
    %c0_i32_1 = arith.constant 0 : i32
    return %c0_i32, %c0_i32_0 : i32, i32
  }
  func.func @transform_8(%arg0: i32) -> (i32, i32) {
    %c0_i32 = arith.constant 0 : i32
    %c0_i32_0 = arith.constant 0 : i32
    %c0_i32_1 = arith.constant 0 : i32
    return %c0_i32, %c0_i32_0 : i32, i32
  }
  func.func @transform_9(%arg0: i32) -> (i32, i32) {
    %c0_i32 = arith.constant 0 : i32
    %c0_i32_0 = arith.constant 0 : i32
    %c0_i32_1 = arith.constant 0 : i32
    return %c0_i32, %c0_i32_0 : i32, i32
  }
  func.func @transform_10(%arg0: i32) -> (i32, i32) {
    %c0_i32 = arith.constant 0 : i32
    %c0_i32_0 = arith.constant 0 : i32
    %c0_i32_1 = arith.constant 0 : i32
    return %c0_i32, %c0_i32_0 : i32, i32
  }
  func.func @transform_11(%arg0: i32) -> (i32, i32) {
    %c0_i32 = arith.constant 0 : i32
    %c0_i32_0 = arith.constant 0 : i32
    %c0_i32_1 = arith.constant 0 : i32
    return %c0_i32, %c0_i32_0 : i32, i32
  }
  func.func @transform_12(%arg0: i32) -> (i32, i32) {
    %c0_i32 = arith.constant 0 : i32
    %c0_i32_0 = arith.constant 0 : i32
    %c0_i32_1 = arith.constant 0 : i32
    return %c0_i32, %c0_i32_0 : i32, i32
  }
  func.func @transform_13(%arg0: i32) -> (i32, i32) {
    %c0_i32 = arith.constant 0 : i32
    %c0_i32_0 = arith.constant 0 : i32
    %c0_i32_1 = arith.constant 0 : i32
    return %c0_i32, %c0_i32_0 : i32, i32
  }
  func.func @transform_14(%arg0: i32) -> (i32, i32) {
    %c0_i32 = arith.constant 0 : i32
    %c0_i32_0 = arith.constant 0 : i32
    %c0_i32_1 = arith.constant 0 : i32
    return %c0_i32, %c0_i32_0 : i32, i32
  }
  func.func @transform_15(%arg0: i32) -> (i32, i32) {
    %c0_i32 = arith.constant 0 : i32
    %c0_i32_0 = arith.constant 0 : i32
    %c0_i32_1 = arith.constant 0 : i32
    return %c0_i32, %c0_i32_0 : i32, i32
  }
  func.func @transform_16(%arg0: i32) -> (i32, i32) {
    %c0_i32 = arith.constant 0 : i32
    %c0_i32_0 = arith.constant 0 : i32
    %c0_i32_1 = arith.constant 0 : i32
    return %c0_i32, %c0_i32_0 : i32, i32
  }
  func.func @transform_17(%arg0: i32) -> (i32, i32) {
    %c0_i32 = arith.constant 0 : i32
    %c0_i32_0 = arith.constant 0 : i32
    %c0_i32_1 = arith.constant 0 : i32
    return %c0_i32, %c0_i32_0 : i32, i32
  }
  func.func @transform_18(%arg0: i32) -> (i32, i32) {
    %c0_i32 = arith.constant 0 : i32
    %c0_i32_0 = arith.constant 0 : i32
    %c0_i32_1 = arith.constant 0 : i32
    return %c0_i32, %c0_i32_0 : i32, i32
  }
  func.func @transform_19(%arg0: i32) -> (i32, i32) {
    %c0_i32 = arith.constant 0 : i32
    %c0_i32_0 = arith.constant 0 : i32
    %c0_i32_1 = arith.constant 0 : i32
    return %c0_i32, %c0_i32_0 : i32, i32
  }
  func.func @transform_20(%arg0: i32) -> (i32, i32) {
    %c0_i32 = arith.constant 0 : i32
    %c0_i32_0 = arith.constant 0 : i32
    return %arg0, %c0_i32 : i32, i32
  }
}

</mosaic_0001>

<llo_original>
// kernel: mlp_forward.1
$region0: #{mlp_forward.1}
  #allocation0 [shape = 'u32[]', space=smem, size = 0x4, offset = 0x4, fixed_abs, tag = 'smem constant byte address 0x4 - core index']
  #allocation1 [shape = 'u32[144,128]{1,0:T(1,128)}', space=vmem, size = 0x12000, scoped, tag = 'internal scratch']
  %s0 = inlined_call_operand.vmem [shape: bf16[1024,128], index: 0, kind: input, shape index: {}]
  %s1 = inlined_call_operand.vmem [shape: bf16[128,128], index: 1, kind: input, shape index: {}]
  %s2 = inlined_call_operand.vmem [shape: f32[1,128], index: 2, kind: input, shape index: {}]
  %s3 = inlined_call_operand.vmem [shape: bf16[128,128], index: 3, kind: input, shape index: {}]
  %s4 = inlined_call_operand.vmem [shape: f32[1,128], index: 4, kind: input, shape index: {}]
  %s5 = inlined_call_operand.vmem [shape: bf16[128,128], index: 5, kind: input, shape index: {}]
  %s6 = inlined_call_operand.vmem [shape: f32[1,128], index: 6, kind: input, shape index: {}]
  %s7 = inlined_call_operand.vmem [shape: bf16[128,128], index: 7, kind: input, shape index: {}]
  %s8 = inlined_call_operand.vmem [shape: f32[1,128], index: 8, kind: input, shape index: {}]
  %s9 = inlined_call_operand.vmem [shape: bf16[128,128], index: 9, kind: input, shape index: {}]
  %s10 = inlined_call_operand.vmem [shape: bf16[128,128], index: 10, kind: input, shape index: {}]
  %s11 = inlined_call_operand.vmem [shape: f32[1,128], index: 11, kind: input, shape index: {}]
  %s12 = inlined_call_operand.vmem [shape: bf16[128,128], index: 12, kind: input, shape index: {}]
  %s13 = inlined_call_operand.vmem [shape: f32[1,128], index: 13, kind: input, shape index: {}]
  %s14 = inlined_call_operand.vmem [shape: bf16[128,128], index: 14, kind: input, shape index: {}]
  %s15 = inlined_call_operand.vmem [shape: f32[1,128], index: 15, kind: input, shape index: {}]
  %s16 = inlined_call_operand.vmem [shape: bf16[128,128], index: 16, kind: input, shape index: {}]
  %s17 = inlined_call_operand.vmem [shape: f32[1,128], index: 17, kind: input, shape index: {}]
  %s18 = inlined_call_operand.vmem [shape: bf16[128,128], index: 18, kind: input, shape index: {}]
  %s19 = inlined_call_operand.vmem [shape: f32[1,128], index: 19, kind: input, shape index: {}]
  %s20 = inlined_call_operand.vmem [shape: f32[1024,128], index: 20, kind: output, shape index: {}]
  %s21 = sld [smem:[#allocation0]]
  $region113: #{mlp_forward.1} parent=0
    _
  %s23 = ssub.s32 1, %s21
  %s24 = scalar_select 0, %s23, %s21
  loop: start=0, step=1, limit=6
  $region2: #{mlp_forward.1} parent=0 // loop_pre_header
    _
  $region3: #{mlp_forward.1} parent=0 // loop_header
    %s26 = sphi 0, %s30
    %p27 = scmp.ge.s32.totalorder %s26, 6
    %s36 = sphi 0, %s38
    %s39 = sphi 0, %s36
    %s40 = sphi 0, %s39
    %s56 = sphi 0, %s40
    %s60 = sphi 0, %s60
    %s62 = sphi 0, %s60
    %s63 = sphi 0, %s62
    %s77 = sphi 0, %s63
    %s81 = sphi 0, %s81
    %s83 = sphi 0, %s81
    %s84 = sphi 0, %s83
    %s98 = sphi 0, %s84
    %s102 = sphi 0, %s102
    %s104 = sphi 0, %s102
    %s105 = sphi 0, %s104
    %s119 = sphi 0, %s105
    %s123 = sphi 0, %s123
    %s125 = sphi 0, %s123
    %s126 = sphi 0, %s125
    %s140 = sphi 0, %s126
    %s144 = sphi 0, %s144
    %s146 = sphi 0, %s144
    %s147 = sphi 0, %s146
    %s161 = sphi 0, %s147
    %s165 = sphi 0, %s165
    %s167 = sphi 0, %s165
    %s168 = sphi 0, %s167
    %s182 = sphi 0, %s168
    %s186 = sphi 0, %s186
    %s188 = sphi 0, %s186
    %s189 = sphi 0, %s188
    %s203 = sphi 0, %s189
    %s207 = sphi 0, %s207
    %s209 = sphi 0, %s207
    %s210 = sphi 0, %s209
    %s224 = sphi 0, %s210
    %s228 = sphi 0, %s228
    %s230 = sphi 0, %s228
    %s231 = sphi 0, %s230
    %s245 = sphi 0, %s231
    %s249 = sphi 0, %s249
    %s251 = sphi 0, %s249
    %s252 = sphi 0, %s251
    %s266 = sphi 0, %s252
    %s270 = sphi 0, %s270
    %s272 = sphi 0, %s270
    %s273 = sphi 0, %s272
    %s287 = sphi 0, %s273
    %s291 = sphi 0, %s291
    %s293 = sphi 0, %s291
    %s294 = sphi 0, %s293
    %s308 = sphi 0, %s294
    %s312 = sphi 0, %s312
    %s314 = sphi 0, %s312
    %s315 = sphi 0, %s314
    %s329 = sphi 0, %s315
    %s333 = sphi 0, %s333
    %s335 = sphi 0, %s333
    %s336 = sphi 0, %s335
    %s350 = sphi 0, %s336
    %s354 = sphi 0, %s354
    %s356 = sphi 0, %s354
    %s357 = sphi 0, %s356
    %s371 = sphi 0, %s357
    %s375 = sphi 0, %s375
    %s377 = sphi 0, %s375
    %s378 = sphi 0, %s377
    %s392 = sphi 0, %s378
    %s396 = sphi 0, %s396
    %s398 = sphi 0, %s396
    %s399 = sphi 0, %s398
    %s413 = sphi 0, %s399
    %s417 = sphi 0, %s417
    %s419 = sphi 0, %s417
    %s420 = sphi 0, %s419
    %s434 = sphi 0, %s420
    %s438 = sphi 0, %s438
    %s440 = sphi 0, %s438
    %s441 = sphi 0, %s440
    %s455 = sphi 0, %s441
    %s461 = sphi 0, %s463
    %s464 = sphi 0, %s461
    %s465 = sphi 0, %s464
    %s481 = sphi 0, %s465
  $region4: #{mlp_forward.1} parent=0 // loop_header_branch
    %29 = sbr.rel (%p27) target = $region8
  $region5: #{mlp_forward.1} parent=0 // loop_body
    %s31 = ssub.s32 %s26, 1
    %s32 = ssub.s32 %s26, 2
    %s33 = sadd.s32 %s26, 1
    %s34 = ssub.s32 %s26, %s33
    %p35 = scmp.eq.s32.totalorder %s34, 0
    %s37 = sadd.s32 %s36, 1
    %s38 = scalar_select %p35, %s36, %s37
    %p41 = pneg %p35
    %p42 = scmp.eq.s32.totalorder %s26, 3
    %p43 = por %p41, %p42
    %p44 = scmp.ne.s32.totalorder %s36, %s39
    %p45 = scmp.eq.s32.totalorder %s26, 0
    %p46 = por %p44, %p45
    %p47 = scmp.ne.s32.totalorder %s36, %s39
    %p48 = scmp.eq.s32.totalorder %s31, 3
    %p49 = por %p47, %p48
    %p50 = scmp.ne.s32.totalorder %s39, %s40
    %p51 = scmp.eq.s32.totalorder %s31, 0
    %p52 = por %p50, %p51
    %p53 = scmp.ne.s32.totalorder %s39, %s40
    %p54 = scmp.eq.s32.totalorder %s32, 3
    %p55 = por %p53, %p54
    %p57 = scmp.ne.s32.totalorder %s40, %s56
    %p58 = scmp.eq.s32.totalorder %s32, 0
    %p59 = por %p57, %p58
    %s61 = sadd.s32 %s60, 1
    %p64 = scmp.eq.s32.totalorder %s26, 3
    %p65 = scmp.ne.s32.totalorder %s60, %s62
    %p66 = scmp.eq.s32.totalorder %s26, 0
    %p67 = por %p65, %p66
    %p68 = scmp.ne.s32.totalorder %s60, %s62
    %p69 = scmp.eq.s32.totalorder %s31, 3
    %p70 = por %p68, %p69
    %p71 = scmp.ne.s32.totalorder %s62, %s63
    %p72 = scmp.eq.s32.totalorder %s31, 0
    %p73 = por %p71, %p72
    %p74 = scmp.ne.s32.totalorder %s62, %s63
    %p75 = scmp.eq.s32.totalorder %s32, 3
    %p76 = por %p74, %p75
    %p78 = scmp.ne.s32.totalorder %s63, %s77
    %p79 = scmp.eq.s32.totalorder %s32, 0
    %p80 = por %p78, %p79
    %s82 = sadd.s32 %s81, 1
    %p85 = scmp.eq.s32.totalorder %s26, 3
    %p86 = scmp.ne.s32.totalorder %s81, %s83
    %p87 = scmp.eq.s32.totalorder %s26, 0
    %p88 = por %p86, %p87
    %p89 = scmp.ne.s32.totalorder %s81, %s83
    %p90 = scmp.eq.s32.totalorder %s31, 3
    %p91 = por %p89, %p90
    %p92 = scmp.ne.s32.totalorder %s83, %s84
    %p93 = scmp.eq.s32.totalorder %s31, 0
    %p94 = por %p92, %p93
    %p95 = scmp.ne.s32.totalorder %s83, %s84
    %p96 = scmp.eq.s32.totalorder %s32, 3
    %p97 = por %p95, %p96
    %p99 = scmp.ne.s32.totalorder %s84, %s98
    %p100 = scmp.eq.s32.totalorder %s32, 0
    %p101 = por %p99, %p100
    %s103 = sadd.s32 %s102, 1
    %p106 = scmp.eq.s32.totalorder %s26, 3
    %p107 = scmp.ne.s32.totalorder %s102, %s104
    %p108 = scmp.eq.s32.totalorder %s26, 0
    %p109 = por %p107, %p108
    %p110 = scmp.ne.s32.totalorder %s102, %s104
    %p111 = scmp.eq.s32.totalorder %s31, 3
    %p112 = por %p110, %p111
    %p113 = scmp.ne.s32.totalorder %s104, %s105
    %p114 = scmp.eq.s32.totalorder %s31, 0
    %p115 = por %p113, %p114
    %p116 = scmp.ne.s32.totalorder %s104, %s105
    %p117 = scmp.eq.s32.totalorder %s32, 3
    %p118 = por %p116, %p117
    %p120 = scmp.ne.s32.totalorder %s105, %s119
    %p121 = scmp.eq.s32.totalorder %s32, 0
    %p122 = por %p120, %p121
    %s124 = sadd.s32 %s123, 1
    %p127 = scmp.eq.s32.totalorder %s26, 3
    %p128 = scmp.ne.s32.totalorder %s123, %s125
    %p129 = scmp.eq.s32.totalorder %s26, 0
    %p130 = por %p128, %p129
    %p131 = scmp.ne.s32.totalorder %s123, %s125
    %p132 = scmp.eq.s32.totalorder %s31, 3
    %p133 = por %p131, %p132
    %p134 = scmp.ne.s32.totalorder %s125, %s126
    %p135 = scmp.eq.s32.totalorder %s31, 0
    %p136 = por %p134, %p135
    %p137 = scmp.ne.s32.totalorder %s125, %s126
    %p138 = scmp.eq.s32.totalorder %s32, 3
    %p139 = por %p137, %p138
    %p141 = scmp.ne.s32.totalorder %s126, %s140
    %p142 = scmp.eq.s32.totalorder %s32, 0
    %p143 = por %p141, %p142
    %s145 = sadd.s32 %s144, 1
    %p148 = scmp.eq.s32.totalorder %s26, 3
    %p149 = scmp.ne.s32.totalorder %s144, %s146
    %p150 = scmp.eq.s32.totalorder %s26, 0
    %p151 = por %p149, %p150
    %p152 = scmp.ne.s32.totalorder %s144, %s146
    %p153 = scmp.eq.s32.totalorder %s31, 3
    %p154 = por %p152, %p153
    %p155 = scmp.ne.s32.totalorder %s146, %s147
    %p156 = scmp.eq.s32.totalorder %s31, 0
    %p157 = por %p155, %p156
    %p158 = scmp.ne.s32.totalorder %s146, %s147
    %p159 = scmp.eq.s32.totalorder %s32, 3
    %p160 = por %p158, %p159
    %p162 = scmp.ne.s32.totalorder %s147, %s161
    %p163 = scmp.eq.s32.totalorder %s32, 0
    %p164 = por %p162, %p163
    %s166 = sadd.s32 %s165, 1
    %p169 = scmp.eq.s32.totalorder %s26, 3
    %p170 = scmp.ne.s32.totalorder %s165, %s167
    %p171 = scmp.eq.s32.totalorder %s26, 0
    %p172 = por %p170, %p171
    %p173 = scmp.ne.s32.totalorder %s165, %s167
    %p174 = scmp.eq.s32.totalorder %s31, 3
    %p175 = por %p173, %p174
    %p176 = scmp.ne.s32.totalorder %s167, %s168
    %p177 = scmp.eq.s32.totalorder %s31, 0
    %p178 = por %p176, %p177
    %p179 = scmp.ne.s32.totalorder %s167, %s168
    %p180 = scmp.eq.s32.totalorder %s32, 3
    %p181 = por %p179, %p180
    %p183 = scmp.ne.s32.totalorder %s168, %s182
    %p184 = scmp.eq.s32.totalorder %s32, 0
    %p185 = por %p183, %p184
    %s187 = sadd.s32 %s186, 1
    %p190 = scmp.eq.s32.totalorder %s26, 3
    %p191 = scmp.ne.s32.totalorder %s186, %s188
    %p192 = scmp.eq.s32.totalorder %s26, 0
    %p193 = por %p191, %p192
    %p194 = scmp.ne.s32.totalorder %s186, %s188
    %p195 = scmp.eq.s32.totalorder %s31, 3
    %p196 = por %p194, %p195
    %p197 = scmp.ne.s32.totalorder %s188, %s189
    %p198 = scmp.eq.s32.totalorder %s31, 0
    %p199 = por %p197, %p198
    %p200 = scmp.ne.s32.totalorder %s188, %s189
    %p201 = scmp.eq.s32.totalorder %s32, 3
    %p202 = por %p200, %p201
    %p204 = scmp.ne.s32.totalorder %s189, %s203
    %p205 = scmp.eq.s32.totalorder %s32, 0
    %p206 = por %p204, %p205
    %s208 = sadd.s32 %s207, 1
    %p211 = scmp.eq.s32.totalorder %s26, 3
    %p212 = scmp.ne.s32.totalorder %s207, %s209
    %p213 = scmp.eq.s32.totalorder %s26, 0
    %p214 = por %p212, %p213
    %p215 = scmp.ne.s32.totalorder %s207, %s209
    %p216 = scmp.eq.s32.totalorder %s31, 3
    %p217 = por %p215, %p216
    %p218 = scmp.ne.s32.totalorder %s209, %s210
    %p219 = scmp.eq.s32.totalorder %s31, 0
    %p220 = por %p218, %p219
    %p221 = scmp.ne.s32.totalorder %s209, %s210
    %p222 = scmp.eq.s32.totalorder %s32, 3
    %p223 = por %p221, %p222
    %p225 = scmp.ne.s32.totalorder %s210, %s224
    %p226 = scmp.eq.s32.totalorder %s32, 0
    %p227 = por %p225, %p226
    %s229 = sadd.s32 %s228, 1
    %p232 = scmp.eq.s32.totalorder %s26, 3
    %p233 = scmp.ne.s32.totalorder %s228, %s230
    %p234 = scmp.eq.s32.totalorder %s26, 0
    %p235 = por %p233, %p234
    %p236 = scmp.ne.s32.totalorder %s228, %s230
    %p237 = scmp.eq.s32.totalorder %s31, 3
    %p238 = por %p236, %p237
    %p239 = scmp.ne.s32.totalorder %s230, %s231
    %p240 = scmp.eq.s32.totalorder %s31, 0
    %p241 = por %p239, %p240
    %p242 = scmp.ne.s32.totalorder %s230, %s231
    %p243 = scmp.eq.s32.totalorder %s32, 3
    %p244 = por %p242, %p243
    %p246 = scmp.ne.s32.totalorder %s231, %s245
    %p247 = scmp.eq.s32.totalorder %s32, 0
    %p248 = por %p246, %p247
    %s250 = sadd.s32 %s249, 1
    %p253 = scmp.eq.s32.totalorder %s26, 3
    %p254 = scmp.ne.s32.totalorder %s249, %s251
    %p255 = scmp.eq.s32.totalorder %s26, 0
    %p256 = por %p254, %p255
    %p257 = scmp.ne.s32.totalorder %s249, %s251
    %p258 = scmp.eq.s32.totalorder %s31, 3
    %p259 = por %p257, %p258
    %p260 = scmp.ne.s32.totalorder %s251, %s252
    %p261 = scmp.eq.s32.totalorder %s31, 0
    %p262 = por %p260, %p261
    %p263 = scmp.ne.s32.totalorder %s251, %s252
    %p264 = scmp.eq.s32.totalorder %s32, 3
    %p265 = por %p263, %p264
    %p267 = scmp.ne.s32.totalorder %s252, %s266
    %p268 = scmp.eq.s32.totalorder %s32, 0
    %p269 = por %p267, %p268
    %s271 = sadd.s32 %s270, 1
    %p274 = scmp.eq.s32.totalorder %s26, 3
    %p275 = scmp.ne.s32.totalorder %s270, %s272
    %p276 = scmp.eq.s32.totalorder %s26, 0
    %p277 = por %p275, %p276
    %p278 = scmp.ne.s32.totalorder %s270, %s272
    %p279 = scmp.eq.s32.totalorder %s31, 3
    %p280 = por %p278, %p279
    %p281 = scmp.ne.s32.totalorder %s272, %s273
    %p282 = scmp.eq.s32.totalorder %s31, 0
    %p283 = por %p281, %p282
    %p284 = scmp.ne.s32.totalorder %s272, %s273
    %p285 = scmp.eq.s32.totalorder %s32, 3
    %p286 = por %p284, %p285
    %p288 = scmp.ne.s32.totalorder %s273, %s287
    %p289 = scmp.eq.s32.totalorder %s32, 0
    %p290 = por %p288, %p289
    %s292 = sadd.s32 %s291, 1
    %p295 = scmp.eq.s32.totalorder %s26, 3
    %p296 = scmp.ne.s32.totalorder %s291, %s293
    %p297 = scmp.eq.s32.totalorder %s26, 0
    %p298 = por %p296, %p297
    %p299 = scmp.ne.s32.totalorder %s291, %s293
    %p300 = scmp.eq.s32.totalorder %s31, 3
    %p301 = por %p299, %p300
    %p302 = scmp.ne.s32.totalorder %s293, %s294
    %p303 = scmp.eq.s32.totalorder %s31, 0
    %p304 = por %p302, %p303
    %p305 = scmp.ne.s32.totalorder %s293, %s294
    %p306 = scmp.eq.s32.totalorder %s32, 3
    %p307 = por %p305, %p306
    %p309 = scmp.ne.s32.totalorder %s294, %s308
    %p310 = scmp.eq.s32.totalorder %s32, 0
    %p311 = por %p309, %p310
    %s313 = sadd.s32 %s312, 1
    %p316 = scmp.eq.s32.totalorder %s26, 3
    %p317 = scmp.ne.s32.totalorder %s312, %s314
    %p318 = scmp.eq.s32.totalorder %s26, 0
    %p319 = por %p317, %p318
    %p320 = scmp.ne.s32.totalorder %s312, %s314
    %p321 = scmp.eq.s32.totalorder %s31, 3
    %p322 = por %p320, %p321
    %p323 = scmp.ne.s32.totalorder %s314, %s315
    %p324 = scmp.eq.s32.totalorder %s31, 0
    %p325 = por %p323, %p324
    %p326 = scmp.ne.s32.totalorder %s314, %s315
    %p327 = scmp.eq.s32.totalorder %s32, 3
    %p328 = por %p326, %p327
    %p330 = scmp.ne.s32.totalorder %s315, %s329
    %p331 = scmp.eq.s32.totalorder %s32, 0
    %p332 = por %p330, %p331
    %s334 = sadd.s32 %s333, 1
    %p337 = scmp.eq.s32.totalorder %s26, 3
    %p338 = scmp.ne.s32.totalorder %s333, %s335
    %p339 = scmp.eq.s32.totalorder %s26, 0
    %p340 = por %p338, %p339
    %p341 = scmp.ne.s32.totalorder %s333, %s335
    %p342 = scmp.eq.s32.totalorder %s31, 3
    %p343 = por %p341, %p342
    %p344 = scmp.ne.s32.totalorder %s335, %s336
    %p345 = scmp.eq.s32.totalorder %s31, 0
    %p346 = por %p344, %p345
    %p347 = scmp.ne.s32.totalorder %s335, %s336
    %p348 = scmp.eq.s32.totalorder %s32, 3
    %p349 = por %p347, %p348
    %p351 = scmp.ne.s32.totalorder %s336, %s350
    %p352 = scmp.eq.s32.totalorder %s32, 0
    %p353 = por %p351, %p352
    %s355 = sadd.s32 %s354, 1
    %p358 = scmp.eq.s32.totalorder %s26, 3
    %p359 = scmp.ne.s32.totalorder %s354, %s356
    %p360 = scmp.eq.s32.totalorder %s26, 0
    %p361 = por %p359, %p360
    %p362 = scmp.ne.s32.totalorder %s354, %s356
    %p363 = scmp.eq.s32.totalorder %s31, 3
    %p364 = por %p362, %p363
    %p365 = scmp.ne.s32.totalorder %s356, %s357
    %p366 = scmp.eq.s32.totalorder %s31, 0
    %p367 = por %p365, %p366
    %p368 = scmp.ne.s32.totalorder %s356, %s357
    %p369 = scmp.eq.s32.totalorder %s32, 3
    %p370 = por %p368, %p369
    %p372 = scmp.ne.s32.totalorder %s357, %s371
    %p373 = scmp.eq.s32.totalorder %s32, 0
    %p374 = por %p372, %p373
    %s376 = sadd.s32 %s375, 1
    %p379 = scmp.eq.s32.totalorder %s26, 3
    %p380 = scmp.ne.s32.totalorder %s375, %s377
    %p381 = scmp.eq.s32.totalorder %s26, 0
    %p382 = por %p380, %p381
    %p383 = scmp.ne.s32.totalorder %s375, %s377
    %p384 = scmp.eq.s32.totalorder %s31, 3
    %p385 = por %p383, %p384
    %p386 = scmp.ne.s32.totalorder %s377, %s378
    %p387 = scmp.eq.s32.totalorder %s31, 0
    %p388 = por %p386, %p387
    %p389 = scmp.ne.s32.totalorder %s377, %s378
    %p390 = scmp.eq.s32.totalorder %s32, 3
    %p391 = por %p389, %p390
    %p393 = scmp.ne.s32.totalorder %s378, %s392
    %p394 = scmp.eq.s32.totalorder %s32, 0
    %p395 = por %p393, %p394
    %s397 = sadd.s32 %s396, 1
    %p400 = scmp.eq.s32.totalorder %s26, 3
    %p401 = scmp.ne.s32.totalorder %s396, %s398
    %p402 = scmp.eq.s32.totalorder %s26, 0
    %p403 = por %p401, %p402
    %p404 = scmp.ne.s32.totalorder %s396, %s398
    %p405 = scmp.eq.s32.totalorder %s31, 3
    %p406 = por %p404, %p405
    %p407 = scmp.ne.s32.totalorder %s398, %s399
    %p408 = scmp.eq.s32.totalorder %s31, 0
    %p409 = por %p407, %p408
    %p410 = scmp.ne.s32.totalorder %s398, %s399
    %p411 = scmp.eq.s32.totalorder %s32, 3
    %p412 = por %p410, %p411
    %p414 = scmp.ne.s32.totalorder %s399, %s413
    %p415 = scmp.eq.s32.totalorder %s32, 0
    %p416 = por %p414, %p415
    %s418 = sadd.s32 %s417, 1
    %p421 = scmp.eq.s32.totalorder %s26, 3
    %p422 = scmp.ne.s32.totalorder %s417, %s419
    %p423 = scmp.eq.s32.totalorder %s26, 0
    %p424 = por %p422, %p423
    %p425 = scmp.ne.s32.totalorder %s417, %s419
    %p426 = scmp.eq.s32.totalorder %s31, 3
    %p427 = por %p425, %p426
    %p428 = scmp.ne.s32.totalorder %s419, %s420
    %p429 = scmp.eq.s32.totalorder %s31, 0
    %p430 = por %p428, %p429
    %p431 = scmp.ne.s32.totalorder %s419, %s420
    %p432 = scmp.eq.s32.totalorder %s32, 3
    %p433 = por %p431, %p432
    %p435 = scmp.ne.s32.totalorder %s420, %s434
    %p436 = scmp.eq.s32.totalorder %s32, 0
    %p437 = por %p435, %p436
    %s439 = sadd.s32 %s438, 1
    %p442 = scmp.eq.s32.totalorder %s26, 3
    %p443 = scmp.ne.s32.totalorder %s438, %s440
    %p444 = scmp.eq.s32.totalorder %s26, 0
    %p445 = por %p443, %p444
    %p446 = scmp.ne.s32.totalorder %s438, %s440
    %p447 = scmp.eq.s32.totalorder %s31, 3
    %p448 = por %p446, %p447
    %p449 = scmp.ne.s32.totalorder %s440, %s441
    %p450 = scmp.eq.s32.totalorder %s31, 0
    %p451 = por %p449, %p450
    %p452 = scmp.ne.s32.totalorder %s440, %s441
    %p453 = scmp.eq.s32.totalorder %s32, 3
    %p454 = por %p452, %p453
    %p456 = scmp.ne.s32.totalorder %s441, %s455
    %p457 = scmp.eq.s32.totalorder %s32, 0
    %p458 = por %p456, %p457
    %s459 = ssub.s32 %s26, %s33
    %p460 = scmp.eq.s32.totalorder %s459, 0
    %s462 = sadd.s32 %s461, 1
    %s463 = scalar_select %p460, %s461, %s462
    %p466 = pneg %p460
    %p467 = scmp.eq.s32.totalorder %s26, 3
    %p468 = por %p466, %p467
    %p469 = scmp.ne.s32.totalorder %s461, %s464
    %p470 = scmp.eq.s32.totalorder %s26, 0
    %p471 = por %p469, %p470
    %p472 = scmp.ne.s32.totalorder %s461, %s464
    %p473 = scmp.eq.s32.totalorder %s31, 3
    %p474 = por %p472, %p473
    %p475 = scmp.ne.s32.totalorder %s464, %s465
    %p476 = scmp.eq.s32.totalorder %s31, 0
    %p477 = por %p475, %p476
    %p478 = scmp.ne.s32.totalorder %s464, %s465
    %p479 = scmp.eq.s32.totalorder %s32, 3
    %p480 = por %p478, %p479
    %p482 = scmp.ne.s32.totalorder %s465, %s481
    %p483 = scmp.eq.s32.totalorder %s32, 0
    %p484 = por %p482, %p483
    %p485 = scmp.le.s32.totalorder 1, %s26
    %p486 = scmp.lt.s32.totalorder %s26, 5
    %p487 = pnand %p485, %p486
    %p488 = pneg %p487
    // Predicated region
    $region9: #{mlp_forward.1} parent=5 // pred_check
      _
    $region10: #{mlp_forward.1} parent=5 // pred_check_branch
      %490 = sbr.rel (%p487) target = $region12
    $region11: #{mlp_forward.1} parent=5 // pred_region
      %s491 = ssub.s32 %s26, 1
      // Predicated region
      $region13: #{mlp_forward.1} parent=11 // pred_check
        %p492 = pneg %p73
      $region14: #{mlp_forward.1} parent=11 // pred_check_branch
        %494 = sbr.rel (%p492) target = $region16
      $region15: #{mlp_forward.1} parent=11 // pred_region
        _
      $region16: #{mlp_forward.1} parent=11 // pred_fallthru
        _
      // Predicated region
      $region17: #{mlp_forward.1} parent=11 // pred_check
        %p495 = pneg %p94
      $region18: #{mlp_forward.1} parent=11 // pred_check_branch
        %497 = sbr.rel (%p495) target = $region20
      $region19: #{mlp_forward.1} parent=11 // pred_region
        _
      $region20: #{mlp_forward.1} parent=11 // pred_fallthru
        _
      // Predicated region
      $region21: #{mlp_forward.1} parent=11 // pred_check
        %p498 = pneg %p115
      $region22: #{mlp_forward.1} parent=11 // pred_check_branch
        %500 = sbr.rel (%p498) target = $region24
      $region23: #{mlp_forward.1} parent=11 // pred_region
        _
      $region24: #{mlp_forward.1} parent=11 // pred_fallthru
        _
      // Predicated region
      $region25: #{mlp_forward.1} parent=11 // pred_check
        %p501 = pneg %p136
      $region26: #{mlp_forward.1} parent=11 // pred_check_branch
        %503 = sbr.rel (%p501) target = $region28
      $region27: #{mlp_forward.1} parent=11 // pred_region
        _
      $region28: #{mlp_forward.1} parent=11 // pred_fallthru
        _
      // Predicated region
      $region29: #{mlp_forward.1} parent=11 // pred_check
        %p504 = pneg %p157
      $region30: #{mlp_forward.1} parent=11 // pred_check_branch
        %506 = sbr.rel (%p504) target = $region32
      $region31: #{mlp_forward.1} parent=11 // pred_region
        _
      $region32: #{mlp_forward.1} parent=11 // pred_fallthru
        _
      // Predicated region
      $region33: #{mlp_forward.1} parent=11 // pred_check
        %p507 = pneg %p178
      $region34: #{mlp_forward.1} parent=11 // pred_check_branch
        %509 = sbr.rel (%p507) target = $region36
      $region35: #{mlp_forward.1} parent=11 // pred_region
        _
      $region36: #{mlp_forward.1} parent=11 // pred_fallthru
        _
      // Predicated region
      $region37: #{mlp_forward.1} parent=11 // pred_check
        %p510 = pneg %p199
      $region38: #{mlp_forward.1} parent=11 // pred_check_branch
        %512 = sbr.rel (%p510) target = $region40
      $region39: #{mlp_forward.1} parent=11 // pred_region
        _
      $region40: #{mlp_forward.1} parent=11 // pred_fallthru
        _
      // Predicated region
      $region41: #{mlp_forward.1} parent=11 // pred_check
        %p513 = pneg %p220
      $region42: #{mlp_forward.1} parent=11 // pred_check_branch
        %515 = sbr.rel (%p513) target = $region44
      $region43: #{mlp_forward.1} parent=11 // pred_region
        _
      $region44: #{mlp_forward.1} parent=11 // pred_fallthru
        _
      // Predicated region
      $region45: #{mlp_forward.1} parent=11 // pred_check
        %p516 = pneg %p241
      $region46: #{mlp_forward.1} parent=11 // pred_check_branch
        %518 = sbr.rel (%p516) target = $region48
      $region47: #{mlp_forward.1} parent=11 // pred_region
        _
      $region48: #{mlp_forward.1} parent=11 // pred_fallthru
        _
      // Predicated region
      $region49: #{mlp_forward.1} parent=11 // pred_check
        %p519 = pneg %p262
      $region50: #{mlp_forward.1} parent=11 // pred_check_branch
        %521 = sbr.rel (%p519) target = $region52
      $region51: #{mlp_forward.1} parent=11 // pred_region
        _
      $region52: #{mlp_forward.1} parent=11 // pred_fallthru
        _
      // Predicated region
      $region53: #{mlp_forward.1} parent=11 // pred_check
        %p522 = pneg %p283
      $region54: #{mlp_forward.1} parent=11 // pred_check_branch
        %524 = sbr.rel (%p522) target = $region56
      $region55: #{mlp_forward.1} parent=11 // pred_region
        _
      $region56: #{mlp_forward.1} parent=11 // pred_fallthru
        _
      // Predicated region
      $region57: #{mlp_forward.1} parent=11 // pred_check
        %p525 = pneg %p304
      $region58: #{mlp_forward.1} parent=11 // pred_check_branch
        %527 = sbr.rel (%p525) target = $region60
      $region59: #{mlp_forward.1} parent=11 // pred_region
        _
      $region60: #{mlp_forward.1} parent=11 // pred_fallthru
        _
      // Predicated region
      $region61: #{mlp_forward.1} parent=11 // pred_check
        %p528 = pneg %p325
      $region62: #{mlp_forward.1} parent=11 // pred_check_branch
        %530 = sbr.rel (%p528) target = $region64
      $region63: #{mlp_forward.1} parent=11 // pred_region
        _
      $region64: #{mlp_forward.1} parent=11 // pred_fallthru
        _
      // Predicated region
      $region65: #{mlp_forward.1} parent=11 // pred_check
        %p531 = pneg %p346
      $region66: #{mlp_forward.1} parent=11 // pred_check_branch
        %533 = sbr.rel (%p531) target = $region68
      $region67: #{mlp_forward.1} parent=11 // pred_region
        _
      $region68: #{mlp_forward.1} parent=11 // pred_fallthru
        _
      // Predicated region
      $region69: #{mlp_forward.1} parent=11 // pred_check
        %p534 = pneg %p367
      $region70: #{mlp_forward.1} parent=11 // pred_check_branch
        %536 = sbr.rel (%p534) target = $region72
      $region71: #{mlp_forward.1} parent=11 // pred_region
        _
      $region72: #{mlp_forward.1} parent=11 // pred_fallthru
        _
      // Predicated region
      $region73: #{mlp_forward.1} parent=11 // pred_check
        %p537 = pneg %p388
      $region74: #{mlp_forward.1} parent=11 // pred_check_branch
        %539 = sbr.rel (%p537) target = $region76
      $region75: #{mlp_forward.1} parent=11 // pred_region
        _
      $region76: #{mlp_forward.1} parent=11 // pred_fallthru
        _
      // Predicated region
      $region77: #{mlp_forward.1} parent=11 // pred_check
        %p540 = pneg %p409
      $region78: #{mlp_forward.1} parent=11 // pred_check_branch
        %542 = sbr.rel (%p540) target = $region80
      $region79: #{mlp_forward.1} parent=11 // pred_region
        _
      $region80: #{mlp_forward.1} parent=11 // pred_fallthru
        _
      // Predicated region
      $region81: #{mlp_forward.1} parent=11 // pred_check
        %p543 = pneg %p430
      $region82: #{mlp_forward.1} parent=11 // pred_check_branch
        %545 = sbr.rel (%p543) target = $region84
      $region83: #{mlp_forward.1} parent=11 // pred_region
        _
      $region84: #{mlp_forward.1} parent=11 // pred_fallthru
        _
      // Predicated region
      $region85: #{mlp_forward.1} parent=11 // pred_check
        %p546 = pneg %p451
      $region86: #{mlp_forward.1} parent=11 // pred_check_branch
        %548 = sbr.rel (%p546) target = $region88
      $region87: #{mlp_forward.1} parent=11 // pred_region
        _
      $region88: #{mlp_forward.1} parent=11 // pred_fallthru
        _
    $region12: #{mlp_forward.1} parent=5 // pred_fallthru
      _
    %p549 = scmp.lt.s32.totalorder %s26, 4
    // Predicated region
    $region89: #{mlp_forward.1} parent=5 // pred_check
      %p550 = pneg %p549
    $region90: #{mlp_forward.1} parent=5 // pred_check_branch
      %552 = sbr.rel (%p550) target = $region92
    $region91: #{mlp_forward.1} parent=5 // pred_region
      // Predicated region
      $region93: #{mlp_forward.1} parent=91 // pred_check
        %p553 = pneg %p46
      $region94: #{mlp_forward.1} parent=91 // pred_check_branch
        %555 = sbr.rel (%p553) target = $region96
      $region95: #{mlp_forward.1} parent=91 // pred_region
        %s556 = smul.u32 32, %s26
        %p557 = scmp.lt.s32.totalorder %s556, 127
        %s558 = scalar_select %p557, %s556, 127
        %s559 = smul.addr %s558, 4
        %s560 = scalar_lea.vmem %s0, %s559
        %s561 = smul.u32 32, %s26
      $region96: #{mlp_forward.1} parent=91 // pred_fallthru
        _
    $region92: #{mlp_forward.1} parent=5 // pred_fallthru
      _
    %p562 = scmp.le.s32.totalorder 1, %s26
    %p563 = scmp.lt.s32.totalorder %s26, 5
    %p564 = pnand %p562, %p563
    %p565 = pneg %p564
    // Predicated region
    $region97: #{mlp_forward.1} parent=5 // pred_check
      _
    $region98: #{mlp_forward.1} parent=5 // pred_check_branch
      %567 = sbr.rel (%p564) target = $region100
    $region99: #{mlp_forward.1} parent=5 // pred_region
      %s568 = ssub.s32 %s26, 1
      %s569 = smul.u32 32, %s31
      %p570 = scmp.lt.s32.totalorder %s569, 127
      %s571 = scalar_select %p570, %s569, 127
      %s572 = smul.addr %s571, 4
      %s573 = scalar_lea.vmem %s0, %s572
      %p574 = pneg %p52
      %p575 = pneg %p49
      %p576 = pneg %p73
      %p577 = pneg %p70
      %p578 = pneg %p94
      %p579 = pneg %p91
      %p580 = pneg %p115
      %p581 = pneg %p112
      %p582 = pneg %p136
      %p583 = pneg %p133
      %p584 = pneg %p157
      %p585 = pneg %p154
      %p586 = pneg %p178
      %p587 = pneg %p175
      %p588 = pneg %p199
      %p589 = pneg %p196
      %p590 = pneg %p220
      %p591 = pneg %p217
      %p592 = pneg %p241
      %p593 = pneg %p238
      %p594 = pneg %p262
      %p595 = pneg %p259
      %p596 = pneg %p283
      %p597 = pneg %p280
      %p598 = pneg %p304
      %p599 = pneg %p301
      %p600 = pneg %p325
      %p601 = pneg %p322
      %p602 = pneg %p346
      %p603 = pneg %p343
      %p604 = pneg %p367
      %p605 = pneg %p364
      %p606 = pneg %p388
      %p607 = pneg %p385
      %p608 = pneg %p409
      %p609 = pneg %p406
      %p610 = pneg %p430
      %p611 = pneg %p427
      %p612 = pneg %p451
      %p613 = pneg %p448
      %p614 = pneg %p477
      %p615 = pneg %p474
      %s616 = smul.u32 32, %s31
      %p617 = scmp.lt.s32.totalorder %s616, 127
      %s618 = scalar_select %p617, %s616, 127
      %s619 = smul.addr %s618, 8
      %s620 = scalar_lea.vmem %s20, %s619
      %s621 = smul.u32 32, %s31
      %p622 = scmp.lt.s32.totalorder %s621, 127
      %s623 = scalar_select %p622, %s621, 127
      %s624 = smul.addr %s623, 4
      %s625 = scalar_lea.vmem %s0, %s624
      %s626 = smul.u32 32, %s31
      %s627 = smul.u32 32, %s31
      %p628 = scmp.lt.s32.totalorder %s627, 127
      %s629 = scalar_select %p628, %s627, 127
      %s630 = smul.addr %s629, 8
      %s631 = scalar_lea.vmem %s20, %s630
      %s632 = smul.u32 32, %s31
      %v634 = vld [vmem:[%s625] sm:$0xf]
      %v635 = vld [vmem:[%s625 + $0x4] sm:$0xf]
      %v636 = vld [vmem:[%s625 + $0x8] sm:$0xf]
      %v637 = vld [vmem:[%s625 + $0xc] sm:$0xf]
      %v638 = vld [vmem:[%s625 + $0x10] sm:$0xf]
      %v639 = vld [vmem:[%s625 + $0x14] sm:$0xf]
      %v640 = vld [vmem:[%s625 + $0x18] sm:$0xf]
      %v641 = vld [vmem:[%s625 + $0x1c] sm:$0xf]
      %v642 = vld [vmem:[%s625 + $0x20] sm:$0xf]
      %v643 = vld [vmem:[%s625 + $0x24] sm:$0xf]
      %v644 = vld [vmem:[%s625 + $0x28] sm:$0xf]
      %v645 = vld [vmem:[%s625 + $0x2c] sm:$0xf]
      %v646 = vld [vmem:[%s625 + $0x30] sm:$0xf]
      %v647 = vld [vmem:[%s625 + $0x34] sm:$0xf]
      %v648 = vld [vmem:[%s625 + $0x38] sm:$0xf]
      %v649 = vld [vmem:[%s625 + $0x3c] sm:$0xf]
      %v650 = vld [vmem:[%s625 + $0x40] sm:$0xf]
      %v651 = vld [vmem:[%s625 + $0x44] sm:$0xf]
      %v652 = vld [vmem:[%s625 + $0x48] sm:$0xf]
      %v653 = vld [vmem:[%s625 + $0x4c] sm:$0xf]
      %v654 = vld [vmem:[%s625 + $0x50] sm:$0xf]
      %v655 = vld [vmem:[%s625 + $0x54] sm:$0xf]
      %v656 = vld [vmem:[%s625 + $0x58] sm:$0xf]
      %v657 = vld [vmem:[%s625 + $0x5c] sm:$0xf]
      %v658 = vld [vmem:[%s625 + $0x60] sm:$0xf]
      %v659 = vld [vmem:[%s625 + $0x64] sm:$0xf]
      %v660 = vld [vmem:[%s625 + $0x68] sm:$0xf]
      %v661 = vld [vmem:[%s625 + $0x6c] sm:$0xf]
      %v662 = vld [vmem:[%s625 + $0x70] sm:$0xf]
      %v663 = vld [vmem:[%s625 + $0x74] sm:$0xf]
      %v664 = vld [vmem:[%s625 + $0x78] sm:$0xf]
      %v665 = vld [vmem:[%s625 + $0x7c] sm:$0xf]
      %v666 = vld [vmem:[%s1] sm:$0xf]
      %v667 = vld [vmem:[%s1 + $0x4] sm:$0xf]
      %v668 = vld [vmem:[%s1 + $0x8] sm:$0xf]
      %v669 = vld [vmem:[%s1 + $0xc] sm:$0xf]
      %v670 = vld [vmem:[%s1 + $0x10] sm:$0xf]
      %v671 = vld [vmem:[%s1 + $0x14] sm:$0xf]
      %v672 = vld [vmem:[%s1 + $0x18] sm:$0xf]
      %v673 = vld [vmem:[%s1 + $0x1c] sm:$0xf]
      %v674 = vld [vmem:[%s1 + $0x20] sm:$0xf]
      %v675 = vld [vmem:[%s1 + $0x24] sm:$0xf]
      %v676 = vld [vmem:[%s1 + $0x28] sm:$0xf]
      %v677 = vld [vmem:[%s1 + $0x2c] sm:$0xf]
      %v678 = vld [vmem:[%s1 + $0x30] sm:$0xf]
      %v679 = vld [vmem:[%s1 + $0x34] sm:$0xf]
      %v680 = vld [vmem:[%s1 + $0x38] sm:$0xf]
      %v681 = vld [vmem:[%s1 + $0x3c] sm:$0xf]
      %v682 = vld [vmem:[%s2] sm:$0x1]
      %v684 = vlaneseq
      %v685 = vshrl.u32 %v684, 7
      %v686 = vsub.s32 0, %v685
      %v687 = vrot.slane %v682, %v686
      %v721 = vunpack.c.l.b16 %v634
      %v722 = vunpack.c.l.b16 %v635
      %v723 = vunpack.c.l.b16 %v636
      %v724 = vunpack.c.l.b16 %v637
      %v725 = vunpack.c.l.b16 %v638
      %v726 = vunpack.c.l.b16 %v639
      %v727 = vunpack.c.l.b16 %v640
      %v728 = vunpack.c.l.b16 %v641
      %v729 = vunpack.c.l.b16 %v642
      %v730 = vunpack.c.l.b16 %v643
      %v731 = vunpack.c.l.b16 %v644
      %v732 = vunpack.c.l.b16 %v645
      %v733 = vunpack.c.l.b16 %v646
      %v734 = vunpack.c.l.b16 %v647
      %v735 = vunpack.c.l.b16 %v648
      %v736 = vunpack.c.l.b16 %v649
      %v737 = vunpack.c.l.b16 %v650
      %v738 = vunpack.c.l.b16 %v651
      %v739 = vunpack.c.l.b16 %v652
      %v740 = vunpack.c.l.b16 %v653
      %v741 = vunpack.c.l.b16 %v654
      %v742 = vunpack.c.l.b16 %v655
      %v743 = vunpack.c.l.b16 %v656
      %v744 = vunpack.c.l.b16 %v657
      %v745 = vunpack.c.l.b16 %v658
      %v746 = vunpack.c.l.b16 %v659
      %v747 = vunpack.c.l.b16 %v660
      %v748 = vunpack.c.l.b16 %v661
      %v749 = vunpack.c.l.b16 %v662
      %v750 = vunpack.c.l.b16 %v663
      %v751 = vunpack.c.l.b16 %v664
      %v752 = vunpack.c.l.b16 %v665
      %v753 = vpack.c.b16 %v722, %v721
      %v754 = vpack.c.b16 %v724, %v723
      %v755 = vpack.c.b16 %v726, %v725
      %v756 = vpack.c.b16 %v728, %v727
      %v757 = vpack.c.b16 %v730, %v729
      %v758 = vpack.c.b16 %v732, %v731
      %v759 = vpack.c.b16 %v734, %v733
      %v760 = vpack.c.b16 %v736, %v735
      %v761 = vpack.c.b16 %v738, %v737
      %v762 = vpack.c.b16 %v740, %v739
      %v763 = vpack.c.b16 %v742, %v741
      %v764 = vpack.c.b16 %v744, %v743
      %v765 = vpack.c.b16 %v746, %v745
      %v766 = vpack.c.b16 %v748, %v747
      %v767 = vpack.c.b16 %v750, %v749
      %v768 = vpack.c.b16 %v752, %v751
      %v801 = vunpack.c.l.b16 %v666
      %v802 = vunpack.c.l.b16 %v667
      %v803 = vunpack.c.l.b16 %v668
      %v804 = vunpack.c.l.b16 %v669
      %v805 = vunpack.c.l.b16 %v670
      %v806 = vunpack.c.l.b16 %v671
      %v807 = vunpack.c.l.b16 %v672
      %v808 = vunpack.c.l.b16 %v673
      %v809 = vunpack.c.l.b16 %v674
      %v810 = vunpack.c.l.b16 %v675
      %v811 = vunpack.c.l.b16 %v676
      %v812 = vunpack.c.l.b16 %v677
      %v813 = vunpack.c.l.b16 %v678
      %v814 = vunpack.c.l.b16 %v679
      %v815 = vunpack.c.l.b16 %v680
      %v816 = vunpack.c.l.b16 %v681
      %v817 = vpack.c.b16 %v802, %v801
      %v818 = vpack.c.b16 %v804, %v803
      %v819 = vpack.c.b16 %v806, %v805
      %v820 = vpack.c.b16 %v808, %v807
      %v821 = vpack.c.b16 %v810, %v809
      %v822 = vpack.c.b16 %v812, %v811
      %v823 = vpack.c.b16 %v814, %v813
      %v824 = vpack.c.b16 %v816, %v815
      %833 = vmatprep.subr.bf16.mxu0 0
      %834 = vmatpush1.bf16.msra.mxu0 %v817
      %835 = vmatprep.subr.bf16.mxu0 0
      %836 = vmatpush1.bf16.msra.mxu0 %v818
      %837 = vmatprep.subr.bf16.mxu0 0
      %838 = vmatpush1.bf16.msra.mxu0 %v819
      %839 = vmatprep.subr.bf16.mxu0 0
      %840 = vmatpush1.bf16.msra.mxu0 %v820
      %841 = vmatprep.subr.bf16.mxu0 0
      %842 = vmatpush1.bf16.msra.mxu0 %v821
      %843 = vmatprep.subr.bf16.mxu0 0
      %844 = vmatpush1.bf16.msra.mxu0 %v822
      %845 = vmatprep.subr.bf16.mxu0 0
      %846 = vmatpush1.bf16.msra.mxu0 %v823
      %847 = vmatprep.subr.bf16.mxu0 0
      %848 = vmatpush1.bf16.msra.mxu0 %v824
      %849 = vmatprep.subr.bf16.mxu0 0
      %850 = vmatpush1.bf16.msra.mxu0 0
      %851 = vmatprep.subr.bf16.mxu0 0
      %852 = vmatpush1.bf16.msra.mxu0 0
      %853 = vmatprep.subr.bf16.mxu0 0
      %854 = vmatpush1.bf16.msra.mxu0 0
      %855 = vmatprep.subr.bf16.mxu0 0
      %856 = vmatpush1.bf16.msra.mxu0 0
      %857 = vmatprep.subr.bf16.mxu0 0
      %858 = vmatpush1.bf16.msra.mxu0 0
      %859 = vmatprep.subr.bf16.mxu0 0
      %860 = vmatpush1.bf16.msra.mxu0 0
      %861 = vmatprep.subr.bf16.mxu0 0
      %862 = vmatpush1.bf16.msra.mxu0 0
      %863 = vmatprep.subr.bf16.mxu0 0
      %864 = vmatpush1.bf16.msra.mxu0 0
      %865 = vmatprep.mubr.bf16.mxu0 0
      %866 = vmatmul.mubr.bf16.gmra.mrb[0].mxu0 %v753
      %v867 = vpop.f32.mrb[0].mxu0
      %v868 = vadd.f32 %v687, %v867
      %v869 = vpop.f32.mrb[0].mxu0
      %v870 = vpop.f32.mrb[0].mxu0
      %v871 = vadd.f32 %v687, %v870
      %v872 = vpop.f32.mrb[0].mxu0
      %873 = vmatprep.mubr.bf16.mxu0 0
      %874 = vmatmul.mubr.bf16.gmra.mrb[0].mxu0 %v754
      %v875 = vpop.f32.mrb[0].mxu0
      %v876 = vadd.f32 %v687, %v875
      %v877 = vpop.f32.mrb[0].mxu0
      %v878 = vpop.f32.mrb[0].mxu0
      %v879 = vadd.f32 %v687, %v878
      %v880 = vpop.f32.mrb[0].mxu0
      %881 = vmatprep.mubr.bf16.mxu0 0
      %882 = vmatmul.mubr.bf16.gmra.mrb[0].mxu0 %v755
      %v883 = vpop.f32.mrb[0].mxu0
      %v884 = vadd.f32 %v687, %v883
      %v885 = vpop.f32.mrb[0].mxu0
      %v886 = vpop.f32.mrb[0].mxu0
      %v887 = vadd.f32 %v687, %v886
      %v888 = vpop.f32.mrb[0].mxu0
      %889 = vmatprep.mubr.bf16.mxu0 0
      %890 = vmatmul.mubr.bf16.gmra.mrb[0].mxu0 %v756
      %v891 = vpop.f32.mrb[0].mxu0
      %v892 = vadd.f32 %v687, %v891
      %v893 = vpop.f32.mrb[0].mxu0
      %v894 = vpop.f32.mrb[0].mxu0
      %v895 = vadd.f32 %v687, %v894
      %v896 = vpop.f32.mrb[0].mxu0
      %897 = vmatprep.mubr.bf16.mxu0 0
      %898 = vmatmul.mubr.bf16.gmra.mrb[0].mxu0 %v757
      %v899 = vpop.f32.mrb[0].mxu0
      %v900 = vadd.f32 %v687, %v899
      %v901 = vpop.f32.mrb[0].mxu0
      %v902 = vpop.f32.mrb[0].mxu0
      %v903 = vadd.f32 %v687, %v902
      %v904 = vpop.f32.mrb[0].mxu0
      %905 = vmatprep.mubr.bf16.mxu0 0
      %906 = vmatmul.mubr.bf16.gmra.mrb[0].mxu0 %v758
      %v907 = vpop.f32.mrb[0].mxu0
      %v908 = vadd.f32 %v687, %v907
      %v909 = vpop.f32.mrb[0].mxu0
      %v910 = vpop.f32.mrb[0].mxu0
      %v911 = vadd.f32 %v687, %v910
      %v912 = vpop.f32.mrb[0].mxu0
      %913 = vmatprep.mubr.bf16.mxu0 0
      %914 = vmatmul.mubr.bf16.gmra.mrb[0].mxu0 %v759
      %v915 = vpop.f32.mrb[0].mxu0
      %v916 = vadd.f32 %v687, %v915
      %v917 = vpop.f32.mrb[0].mxu0
      %v918 = vpop.f32.mrb[0].mxu0
      %v919 = vadd.f32 %v687, %v918
      %v920 = vpop.f32.mrb[0].mxu0
      %921 = vmatprep.mubr.bf16.mxu0 0
      %922 = vmatmul.mubr.bf16.gmra.mrb[0].mxu0 %v760
      %v923 = vpop.f32.mrb[0].mxu0
      %v924 = vadd.f32 %v687, %v923
      %v925 = vpop.f32.mrb[0].mxu0
      %v926 = vpop.f32.mrb[0].mxu0
      %v927 = vadd.f32 %v687, %v926
      %v928 = vpop.f32.mrb[0].mxu0
      %929 = vmatprep.mubr.bf16.mxu0 0
      %930 = vmatmul.mubr.bf16.gmra.mrb[0].mxu0 %v761
      %v931 = vpop.f32.mrb[0].mxu0
      %v932 = vadd.f32 %v687, %v931
      %v933 = vpop.f32.mrb[0].mxu0
      %v934 = vpop.f32.mrb[0].mxu0
      %v935 = vadd.f32 %v687, %v934
      %v936 = vpop.f32.mrb[0].mxu0
      %937 = vmatprep.mubr.bf16.mxu0 0
      %938 = vmatmul.mubr.bf16.gmra.mrb[0].mxu0 %v762
      %v939 = vpop.f32.mrb[0].mxu0
      %v940 = vadd.f32 %v687, %v939
      %v941 = vpop.f32.mrb[0].mxu0
      %v942 = vpop.f32.mrb[0].mxu0
      %v943 = vadd.f32 %v687, %v942
      %v944 = vpop.f32.mrb[0].mxu0
      %945 = vmatprep.mubr.bf16.mxu0 0
      %946 = vmatmul.mubr.bf16.gmra.mrb[0].mxu0 %v763
      %v947 = vpop.f32.mrb[0].mxu0
      %v948 = vadd.f32 %v687, %v947
      %v949 = vpop.f32.mrb[0].mxu0
      %v950 = vpop.f32.mrb[0].mxu0
      %v951 = vadd.f32 %v687, %v950
      %v952 = vpop.f32.mrb[0].mxu0
      %953 = vmatprep.mubr.bf16.mxu0 0
      %954 = vmatmul.mubr.bf16.gmra.mrb[0].mxu0 %v764
      %v955 = vpop.f32.mrb[0].mxu0
      %v956 = vadd.f32 %v687, %v955
      %v957 = vpop.f32.mrb[0].mxu0
      %v958 = vpop.f32.mrb[0].mxu0
      %v959 = vadd.f32 %v687, %v958
      %v960 = vpop.f32.mrb[0].mxu0
      %961 = vmatprep.mubr.bf16.mxu0 0
      %962 = vmatmul.mubr.bf16.gmra.mrb[0].mxu0 %v765
      %v963 = vpop.f32.mrb[0].mxu0
      %v964 = vadd.f32 %v687, %v963
      %v965 = vpop.f32.mrb[0].mxu0
      %v966 = vpop.f32.mrb[0].mxu0
      %v967 = vadd.f32 %v687, %v966
      %v968 = vpop.f32.mrb[0].mxu0
      %969 = vmatprep.mubr.bf16.mxu0 0
      %970 = vmatmul.mubr.bf16.gmra.mrb[0].mxu0 %v766
      %v971 = vpop.f32.mrb[0].mxu0
      %v972 = vadd.f32 %v687, %v971
      %v973 = vpop.f32.mrb[0].mxu0
      %v974 = vpop.f32.mrb[0].mxu0
      %v975 = vadd.f32 %v687, %v974
      %v976 = vpop.f32.mrb[0].mxu0
      %977 = vmatprep.mubr.bf16.mxu0 0
      %978 = vmatmul.mubr.bf16.gmra.mrb[0].mxu0 %v767
      %v979 = vpop.f32.mrb[0].mxu0
      %v980 = vadd.f32 %v687, %v979
      %v981 = vpop.f32.mrb[0].mxu0
      %v982 = vpop.f32.mrb[0].mxu0
      %v983 = vadd.f32 %v687, %v982
      %v984 = vpop.f32.mrb[0].mxu0
      %985 = vmatprep.mubr.bf16.mxu0 0
      %986 = vmatmul.mubr.bf16.gmra.mrb[0].mxu0 %v768
      %v987 = vpop.f32.mrb[0].mxu0
      %v988 = vadd.f32 %v687, %v987
      %v989 = vpop.f32.mrb[0].mxu0
      %v990 = vpop.f32.mrb[0].mxu0
      %v991 = vadd.f32 %v687, %v990
      %v992 = vpop.f32.mrb[0].mxu0
      %993 = vdwg.mxu0
      %v994 = vmax.f32 %v868, 0.0
      %v995 = vmax.f32 %v871, 0.0
      %v996 = vmax.f32 %v876, 0.0
      %v997 = vmax.f32 %v879, 0.0
      %v998 = vmax.f32 %v884, 0.0
      %v999 = vmax.f32 %v887, 0.0
      %v1000 = vmax.f32 %v892, 0.0
      %v1001 = vmax.f32 %v895, 0.0
      %v1002 = vmax.f32 %v900, 0.0
      %v1003 = vmax.f32 %v903, 0.0
      %v1004 = vmax.f32 %v908, 0.0
      %v1005 = vmax.f32 %v911, 0.0
      %v1006 = vmax.f32 %v916, 0.0
      %v1007 = vmax.f32 %v919, 0.0
      %v1008 = vmax.f32 %v924, 0.0
      %v1009 = vmax.f32 %v927, 0.0
      %v1010 = vmax.f32 %v932, 0.0
      %v1011 = vmax.f32 %v935, 0.0
      %v1012 = vmax.f32 %v940, 0.0
      %v1013 = vmax.f32 %v943, 0.0
      %v1014 = vmax.f32 %v948, 0.0
      %v1015 = vmax.f32 %v951, 0.0
      %v1016 = vmax.f32 %v956, 0.0
      %v1017 = vmax.f32 %v959, 0.0
      %v1018 = vmax.f32 %v964, 0.0
      %v1019 = vmax.f32 %v967, 0.0
      %v1020 = vmax.f32 %v972, 0.0
      %v1021 = vmax.f32 %v975, 0.0
      %v1022 = vmax.f32 %v980, 0.0
      %v1023 = vmax.f32 %v983, 0.0
      %v1024 = vmax.f32 %v988, 0.0
      %v1025 = vmax.f32 %v991, 0.0
      %v1026 = vpack.c.bf16 %v995, %v994
      %v1027 = vpack.c.bf16 %v997, %v996
      %v1028 = vpack.c.bf16 %v999, %v998
      %v1029 = vpack.c.bf16 %v1001, %v1000
      %v1030 = vpack.c.bf16 %v1003, %v1002
      %v1031 = vpack.c.bf16 %v1005, %v1004
      %v1032 = vpack.c.bf16 %v1007, %v1006
      %v1033 = vpack.c.bf16 %v1009, %v1008
      %v1034 = vpack.c.bf16 %v1011, %v1010
      %v1035 = vpack.c.bf16 %v1013, %v1012
      %v1036 = vpack.c.bf16 %v1015, %v1014
      %v1037 = vpack.c.bf16 %v1017, %v1016
      %v1038 = vpack.c.bf16 %v1019, %v1018
      %v1039 = vpack.c.bf16 %v1021, %v1020
      %v1040 = vpack.c.bf16 %v1023, %v1022
      %v1041 = vpack.c.bf16 %v1025, %v1024
      %v1042 = vld [vmem:[%s3] sm:$0xf]
      %v1043 = vld [vmem:[%s3 + $0x4] sm:$0xf]
      %v1044 = vld [vmem:[%s3 + $0x8] sm:$0xf]
      %v1045 = vld [vmem:[%s3 + $0xc] sm:$0xf]
      %v1046 = vld [vmem:[%s3 + $0x10] sm:$0xf]
      %v1047 = vld [vmem:[%s3 + $0x14] sm:$0xf]
      %v1048 = vld [vmem:[%s3 + $0x18] sm:$0xf]
      %v1049 = vld [vmem:[%s3 + $0x1c] sm:$0xf]
      %v1050 = vld [vmem:[%s3 + $0x20] sm:$0xf]
      %v1051 = vld [vmem:[%s3 + $0x24] sm:$0xf]
      %v1052 = vld [vmem:[%s3 + $0x28] sm:$0xf]
      %v1053 = vld [vmem:[%s3 + $0x2c] sm:$0xf]
      %v1054 = vld [vmem:[%s3 + $0x30] sm:$0xf]
      %v1055 = vld [vmem:[%s3 + $0x34] sm:$0xf]
      %v1056 = vld [vmem:[%s3 + $0x38] sm:$0xf]
      %v1057 = vld [vmem:[%s3 + $0x3c] sm:$0xf]
      %v1058 = vld [vmem:[%s4] sm:$0x1]
      %v1060 = vlaneseq
      %v1061 = vshrl.u32 %v1060, 7
      %v1062 = vsub.s32 0, %v1061
      %v1063 = vrot.slane %v1058, %v1062
      %v1081 = vunpack.c.l.b16 %v1042
      %v1082 = vunpack.c.l.b16 %v1043
      %v1083 = vunpack.c.l.b16 %v1044
      %v1084 = vunpack.c.l.b16 %v1045
      %v1085 = vunpack.c.l.b16 %v1046
      %v1086 = vunpack.c.l.b16 %v1047
      %v1087 = vunpack.c.l.b16 %v1048
      %v1088 = vunpack.c.l.b16 %v1049
      %v1089 = vunpack.c.l.b16 %v1050
      %v1090 = vunpack.c.l.b16 %v1051
      %v1091 = vunpack.c.l.b16 %v1052
      %v1092 = vunpack.c.l.b16 %v1053
      %v1093 = vunpack.c.l.b16 %v1054
      %v1094 = vunpack.c.l.b16 %v1055
      %v1095 = vunpack.c.l.b16 %v1056
      %v1096 = vunpack.c.l.b16 %v1057
      %v1097 = vpack.c.b16 %v1082, %v1081
      %v1098 = vpack.c.b16 %v1084, %v1083
      %v1099 = vpack.c.b16 %v1086, %v1085
      %v1100 = vpack.c.b16 %v1088, %v1087
      %v1101 = vpack.c.b16 %v1090, %v1089
      %v1102 = vpack.c.b16 %v1092, %v1091
      %v1103 = vpack.c.b16 %v1094, %v1093
      %v1104 = vpack.c.b16 %v1096, %v1095
      %1113 = vmatprep.subr.bf16.mxu0 0
      %1114 = vmatpush1.bf16.msra.mxu0 %v1097
      %1115 = vmatprep.subr.bf16.mxu0 0
      %1116 = vmatpush1.bf16.msra.mxu0 %v1098
      %1117 = vmatprep.subr.bf16.mxu0 0
      %1118 = vmatpush1.bf16.msra.mxu0 %v1099
      %1119 = vmatprep.subr.bf16.mxu0 0
      %1120 = vmatpush1.bf16.msra.mxu0 %v1100
      %1121 = vmatprep.subr.bf16.mxu0 0
      %1122 = vmatpush1.bf16.msra.mxu0 %v1101
      %1123 = vmatprep.subr.bf16.mxu0 0
      %1124 = vmatpush1.bf16.msra.mxu0 %v1102
      %1125 = vmatprep.subr.bf16.mxu0 0
      %1126 = vmatpush1.bf16.msra.mxu0 %v1103
      %1127 = vmatprep.subr.bf16.mxu0 0
      %1128 = vmatpush1.bf16.msra.mxu0 %v1104
      %1129 = vmatprep.subr.bf16.mxu0 0
      %1130 = vmatpush1.bf16.msra.mxu0 0
      %1131 = vmatprep.subr.bf16.mxu0 0
      %1132 = vmatpush1.bf16.msra.mxu0 0
      %1133 = vmatprep.subr.bf16.mxu0 0
      %1134 = vmatpush1.bf16.msra.mxu0 0
      %1135 = vmatprep.subr.bf16.mxu0 0
      %1136 = vmatpush1.bf16.msra.mxu0 0
      %1137 = vmatprep.subr.bf16.mxu0 0
      %1138 = vmatpush1.bf16.msra.mxu0 0
      %1139 = vmatprep.subr.bf16.mxu0 0
      %1140 = vmatpush1.bf16.msra.mxu0 0
      %1141 = vmatprep.subr.bf16.mxu0 0
      %1142 = vmatpush1.bf16.msra.mxu0 0
      %1143 = vmatprep.subr.bf16.mxu0 0
      %1144 = vmatpush1.bf16.msra.mxu0 0
      %1145 = vmatprep.mubr.bf16.mxu0 0
      %1146 = vmatmul.mubr.bf16.gmra.mrb[0].mxu0 %v1026
      %v1147 = vpop.f32.mrb[0].mxu0
      %v1148 = vadd.f32 %v1063, %v1147
      %v1149 = vpop.f32.mrb[0].mxu0
      %v1150 = vpop.f32.mrb[0].mxu0
      %v1151 = vadd.f32 %v1063, %v1150
      %v1152 = vpop.f32.mrb[0].mxu0
      %1153 = vmatprep.mubr.bf16.mxu0 0
      %1154 = vmatmul.mubr.bf16.gmra.mrb[0].mxu0 %v1027
      %v1155 = vpop.f32.mrb[0].mxu0
      %v1156 = vadd.f32 %v1063, %v1155
      %v1157 = vpop.f32.mrb[0].mxu0
      %v1158 = vpop.f32.mrb[0].mxu0
      %v1159 = vadd.f32 %v1063, %v1158
      %v1160 = vpop.f32.mrb[0].mxu0
      %1161 = vmatprep.mubr.bf16.mxu0 0
      %1162 = vmatmul.mubr.bf16.gmra.mrb[0].mxu0 %v1028
      %v1163 = vpop.f32.mrb[0].mxu0
      %v1164 = vadd.f32 %v1063, %v1163
      %v1165 = vpop.f32.mrb[0].mxu0
      %v1166 = vpop.f32.mrb[0].mxu0
      %v1167 = vadd.f32 %v1063, %v1166
      %v1168 = vpop.f32.mrb[0].mxu0
      %1169 = vmatprep.mubr.bf16.mxu0 0
      %1170 = vmatmul.mubr.bf16.gmra.mrb[0].mxu0 %v1029
      %v1171 = vpop.f32.mrb[0].mxu0
      %v1172 = vadd.f32 %v1063, %v1171
      %v1173 = vpop.f32.mrb[0].mxu0
      %v1174 = vpop.f32.mrb[0].mxu0
      %v1175 = vadd.f32 %v1063, %v1174
      %v1176 = vpop.f32.mrb[0].mxu0
      %1177 = vmatprep.mubr.bf16.mxu0 0
      %1178 = vmatmul.mubr.bf16.gmra.mrb[0].mxu0 %v1030
      %v1179 = vpop.f32.mrb[0].mxu0
      %v1180 = vadd.f32 %v1063, %v1179
      %v1181 = vpop.f32.mrb[0].mxu0
      %v1182 = vpop.f32.mrb[0].mxu0
      %v1183 = vadd.f32 %v1063, %v1182
      %v1184 = vpop.f32.mrb[0].mxu0
      %1185 = vmatprep.mubr.bf16.mxu0 0
      %1186 = vmatmul.mubr.bf16.gmra.mrb[0].mxu0 %v1031
      %v1187 = vpop.f32.mrb[0].mxu0
      %v1188 = vadd.f32 %v1063, %v1187
      %v1189 = vpop.f32.mrb[0].mxu0
      %v1190 = vpop.f32.mrb[0].mxu0
      %v1191 = vadd.f32 %v1063, %v1190
      %v1192 = vpop.f32.mrb[0].mxu0
      %1193 = vmatprep.mubr.bf16.mxu0 0
      %1194 = vmatmul.mubr.bf16.gmra.mrb[0].mxu0 %v1032
      %v1195 = vpop.f32.mrb[0].mxu0
      %v1196 = vadd.f32 %v1063, %v1195
      %v1197 = vpop.f32.mrb[0].mxu0
      %v1198 = vpop.f32.mrb[0].mxu0
      %v1199 = vadd.f32 %v1063, %v1198
      %v1200 = vpop.f32.mrb[0].mxu0
      %1201 = vmatprep.mubr.bf16.mxu0 0
      %1202 = vmatmul.mubr.bf16.gmra.mrb[0].mxu0 %v1033
      %v1203 = vpop.f32.mrb[0].mxu0
      %v1204 = vadd.f32 %v1063, %v1203
      %v1205 = vpop.f32.mrb[0].mxu0
      %v1206 = vpop.f32.mrb[0].mxu0
      %v1207 = vadd.f32 %v1063, %v1206
      %v1208 = vpop.f32.mrb[0].mxu0
      %1209 = vmatprep.mubr.bf16.mxu0 0
      %1210 = vmatmul.mubr.bf16.gmra.mrb[0].mxu0 %v1034
      %v1211 = vpop.f32.mrb[0].mxu0
      %v1212 = vadd.f32 %v1063, %v1211
      %v1213 = vpop.f32.mrb[0].mxu0
      %v1214 = vpop.f32.mrb[0].mxu0
      %v1215 = vadd.f32 %v1063, %v1214
      %v1216 = vpop.f32.mrb[0].mxu0
      %1217 = vmatprep.mubr.bf16.mxu0 0
      %1218 = vmatmul.mubr.bf16.gmra.mrb[0].mxu0 %v1035
      %v1219 = vpop.f32.mrb[0].mxu0
      %v1220 = vadd.f32 %v1063, %v1219
      %v1221 = vpop.f32.mrb[0].mxu0
      %v1222 = vpop.f32.mrb[0].mxu0
      %v1223 = vadd.f32 %v1063, %v1222
      %v1224 = vpop.f32.mrb[0].mxu0
      %1225 = vmatprep.mubr.bf16.mxu0 0
      %1226 = vmatmul.mubr.bf16.gmra.mrb[0].mxu0 %v1036
      %v1227 = vpop.f32.mrb[0].mxu0
      %v1228 = vadd.f32 %v1063, %v1227
      %v1229 = vpop.f32.mrb[0].mxu0
      %v1230 = vpop.f32.mrb[0].mxu0
      %v1231 = vadd.f32 %v1063, %v1230
      %v1232 = vpop.f32.mrb[0].mxu0
      %1233 = vmatprep.mubr.bf16.mxu0 0
      %1234 = vmatmul.mubr.bf16.gmra.mrb[0].mxu0 %v1037
      %v1235 = vpop.f32.mrb[0].mxu0
      %v1236 = vadd.f32 %v1063, %v1235
      %v1237 = vpop.f32.mrb[0].mxu0
      %v1238 = vpop.f32.mrb[0].mxu0
      %v1239 = vadd.f32 %v1063, %v1238
      %v1240 = vpop.f32.mrb[0].mxu0
      %1241 = vmatprep.mubr.bf16.mxu0 0
      %1242 = vmatmul.mubr.bf16.gmra.mrb[0].mxu0 %v1038
      %v1243 = vpop.f32.mrb[0].mxu0
      %v1244 = vadd.f32 %v1063, %v1243
      %v1245 = vpop.f32.mrb[0].mxu0
      %v1246 = vpop.f32.mrb[0].mxu0
      %v1247 = vadd.f32 %v1063, %v1246
      %v1248 = vpop.f32.mrb[0].mxu0
      %1249 = vmatprep.mubr.bf16.mxu0 0
      %1250 = vmatmul.mubr.bf16.gmra.mrb[0].mxu0 %v1039
      %v1251 = vpop.f32.mrb[0].mxu0
      %v1252 = vadd.f32 %v1063, %v1251
      %v1253 = vpop.f32.mrb[0].mxu0
      %v1254 = vpop.f32.mrb[0].mxu0
      %v1255 = vadd.f32 %v1063, %v1254
      %v1256 = vpop.f32.mrb[0].mxu0
      %1257 = vmatprep.mubr.bf16.mxu0 0
      %1258 = vmatmul.mubr.bf16.gmra.mrb[0].mxu0 %v1040
      %v1259 = vpop.f32.mrb[0].mxu0
      %v1260 = vadd.f32 %v1063, %v1259
      %v1261 = vpop.f32.mrb[0].mxu0
      %v1262 = vpop.f32.mrb[0].mxu0
      %v1263 = vadd.f32 %v1063, %v1262
      %v1264 = vpop.f32.mrb[0].mxu0
      %1265 = vmatprep.mubr.bf16.mxu0 0
      %1266 = vmatmul.mubr.bf16.gmra.mrb[0].mxu0 %v1041
      %v1267 = vpop.f32.mrb[0].mxu0
      %v1268 = vadd.f32 %v1063, %v1267
      %v1269 = vpop.f32.mrb[0].mxu0
      %v1270 = vpop.f32.mrb[0].mxu0
      %v1271 = vadd.f32 %v1063, %v1270
      %v1272 = vpop.f32.mrb[0].mxu0
      %1273 = vdwg.mxu0
      %v1274 = vmax.f32 %v1148, 0.0
      %v1275 = vmax.f32 %v1151, 0.0
      %v1276 = vmax.f32 %v1156, 0.0
      %v1277 = vmax.f32 %v1159, 0.0
      %v1278 = vmax.f32 %v1164, 0.0
      %v1279 = vmax.f32 %v1167, 0.0
      %v1280 = vmax.f32 %v1172, 0.0
      %v1281 = vmax.f32 %v1175, 0.0
      %v1282 = vmax.f32 %v1180, 0.0
      %v1283 = vmax.f32 %v1183, 0.0
      %v1284 = vmax.f32 %v1188, 0.0
      %v1285 = vmax.f32 %v1191, 0.0
      %v1286 = vmax.f32 %v1196, 0.0
      %v1287 = vmax.f32 %v1199, 0.0
      %v1288 = vmax.f32 %v1204, 0.0
      %v1289 = vmax.f32 %v1207, 0.0
      %v1290 = vmax.f32 %v1212, 0.0
      %v1291 = vmax.f32 %v1215, 0.0
      %v1292 = vmax.f32 %v1220, 0.0
      %v1293 = vmax.f32 %v1223, 0.0
      %v1294 = vmax.f32 %v1228, 0.0
      %v1295 = vmax.f32 %v1231, 0.0
      %v1296 = vmax.f32 %v1236, 0.0
      %v1297 = vmax.f32 %v1239, 0.0
      %v1298 = vmax.f32 %v1244, 0.0
      %v1299 = vmax.f32 %v1247, 0.0
      %v1300 = vmax.f32 %v1252, 0.0
      %v1301 = vmax.f32 %v1255, 0.0
      %v1302 = vmax.f32 %v1260, 0.0
      %v1303 = vmax.f32 %v1263, 0.0
      %v1304 = vmax.f32 %v1268, 0.0
      %v1305 = vmax.f32 %v1271, 0.0
      %v1306 = vpack.c.bf16 %v1275, %v1274
      %v1307 = vpack.c.bf16 %v1277, %v1276
      %v1308 = vpack.c.bf16 %v1279, %v1278
      %v1309 = vpack.c.bf16 %v1281, %v1280
      %v1310 = vpack.c.bf16 %v1283, %v1282
      %v1311 = vpack.c.bf16 %v1285, %v1284
      %v1312 = vpack.c.bf16 %v1287, %v1286
      %v1313 = vpack.c.bf16 %v1289, %v1288
      %v1314 = vpack.c.bf16 %v1291, %v1290
      %v1315 = vpack.c.bf16 %v1293, %v1292
      %v1316 = vpack.c.bf16 %v1295, %v1294
      %v1317 = vpack.c.bf16 %v1297, %v1296
      %v1318 = vpack.c.bf16 %v1299, %v1298
      %v1319 = vpack.c.bf16 %v1301, %v1300
      %v1320 = vpack.c.bf16 %v1303, %v1302
      %v1321 = vpack.c.bf16 %v1305, %v1304
      %v1322 = vld [vmem:[%s5] sm:$0xf]
      %v1323 = vld [vmem:[%s5 + $0x4] sm:$0xf]
      %v1324 = vld [vmem:[%s5 + $0x8] sm:$0xf]
      %v1325 = vld [vmem:[%s5 + $0xc] sm:$0xf]
      %v1326 = vld [vmem:[%s5 + $0x10] sm:$0xf]
      %v1327 = vld [vmem:[%s5 + $0x14] sm:$0xf]
      %v1328 = vld [vmem:[%s5 + $0x18] sm:$0xf]
      %v1329 = vld [vmem:[%s5 + $0x1c] sm:$0xf]
      %v1330 = vld [vmem:[%s5 + $0x20] sm:$0xf]
      %v1331 = vld [vmem:[%s5 + $0x24] sm:$0xf]
      %v1332 = vld [vmem:[%s5 + $0x28] sm:$0xf]
      %v1333 = vld [vmem:[%s5 + $0x2c] sm:$0xf]
      %v1334 = vld [vmem:[%s5 + $0x30] sm:$0xf]
      %v1335 = vld [vmem:[%s5 + $0x34] sm:$0xf]
      %v1336 = vld [vmem:[%s5 + $0x38] sm:$0xf]
      %v1337 = vld [vmem:[%s5 + $0x3c] sm:$0xf]
      %v1338 = vld [vmem:[%s6] sm:$0x1]
      %v1340 = vlaneseq
      %v1341 = vshrl.u32 %v1340, 7
      %v1342 = vsub.s32 0, %v1341
      %v1343 = vrot.slane %v1338, %v1342
      %v1361 = vunpack.c.l.b16 %v1322
      %v1362 = vunpack.c.l.b16 %v1323
      %v1363 = vunpack.c.l.b16 %v1324
      %v1364 = vunpack.c.l.b16 %v1325
      %v1365 = vunpack.c.l.b16 %v1326
      %v1366 = vunpack.c.l.b16 %v1327
      %v1367 = vunpack.c.l.b16 %v1328
      %v1368 = vunpack.c.l.b16 %v1329
      %v1369 = vunpack.c.l.b16 %v1330
      %v1370 = vunpack.c.l.b16 %v1331
      %v1371 = vunpack.c.l.b16 %v1332
      %v1372 = vunpack.c.l.b16 %v1333
      %v1373 = vunpack.c.l.b16 %v1334
      %v1374 = vunpack.c.l.b16 %v1335
      %v1375 = vunpack.c.l.b16 %v1336
      %v1376 = vunpack.c.l.b16 %v1337
      %v1377 = vpack.c.b16 %v1362, %v1361
      %v1378 = vpack.c.b16 %v1364, %v1363
      %v1379 = vpack.c.b16 %v1366, %v1365
      %v1380 = vpack.c.b16 %v1368, %v1367
      %v1381 = vpack.c.b16 %v1370, %v1369
      %v1382 = vpack.c.b16 %v1372, %v1371
      %v1383 = vpack.c.b16 %v1374, %v1373
      %v1384 = vpack.c.b16 %v1376, %v1375
      %1393 = vmatprep.subr.bf16.mxu0 0
      %1394 = vmatpush1.bf16.msra.mxu0 %v1377
      %1395 = vmatprep.subr.bf16.mxu0 0
      %1396 = vmatpush1.bf16.msra.mxu0 %v1378
      %1397 = vmatprep.subr.bf16.mxu0 0
      %1398 = vmatpush1.bf16.msra.mxu0 %v1379
      %1399 = vmatprep.subr.bf16.mxu0 0
      %1400 = vmatpush1.bf16.msra.mxu0 %v1380
      %1401 = vmatprep.subr.bf16.mxu0 0
      %1402 = vmatpush1.bf16.msra.mxu0 %v1381
      %1403 = vmatprep.subr.bf16.mxu0 0
      %1404 = vmatpush1.bf16.msra.mxu0 %v1382
      %1405 = vmatprep.subr.bf16.mxu0 0
      %1406 = vmatpush1.bf16.msra.mxu0 %v1383
      %1407 = vmatprep.subr.bf16.mxu0 0
      %1408 = vmatpush1.bf16.msra.mxu0 %v1384
      %1409 = vmatprep.subr.bf16.mxu0 0
      %1410 = vmatpush1.bf16.msra.mxu0 0
      %1411 = vmatprep.subr.bf16.mxu0 0
      %1412 = vmatpush1.bf16.msra.mxu0 0
      %1413 = vmatprep.subr.bf16.mxu0 0
      %1414 = vmatpush1.bf16.msra.mxu0 0
      %1415 = vmatprep.subr.bf16.mxu0 0
      %1416 = vmatpush1.bf16.msra.mxu0 0
      %1417 = vmatprep.subr.bf16.mxu0 0
      %1418 = vmatpush1.bf16.msra.mxu0 0
      %1419 = vmatprep.subr.bf16.mxu0 0
      %1420 = vmatpush1.bf16.msra.mxu0 0
      %1421 = vmatprep.subr.bf16.mxu0 0
      %1422 = vmatpush1.bf16.msra.mxu0 0
      %1423 = vmatprep.subr.bf16.mxu0 0
      %1424 = vmatpush1.bf16.msra.mxu0 0
      %1425 = vmatprep.mubr.bf16.mxu0 0
      %1426 = vmatmul.mubr.bf16.gmra.mrb[0].mxu0 %v1306
      %v1427 = vpop.f32.mrb[0].mxu0
      %v1428 = vadd.f32 %v1343, %v1427
      %v1429 = vpop.f32.mrb[0].mxu0
      %v1430 = vpop.f32.mrb[0].mxu0
      %v1431 = vadd.f32 %v1343, %v1430
      %v1432 = vpop.f32.mrb[0].mxu0
      %1433 = vmatprep.mubr.bf16.mxu0 0
      %1434 = vmatmul.mubr.bf16.gmra.mrb[0].mxu0 %v1307
      %v1435 = vpop.f32.mrb[0].mxu0
      %v1436 = vadd.f32 %v1343, %v1435
      %v1437 = vpop.f32.mrb[0].mxu0
      %v1438 = vpop.f32.mrb[0].mxu0
      %v1439 = vadd.f32 %v1343, %v1438
      %v1440 = vpop.f32.mrb[0].mxu0
      %1441 = vmatprep.mubr.bf16.mxu0 0
      %1442 = vmatmul.mubr.bf16.gmra.mrb[0].mxu0 %v1308
      %v1443 = vpop.f32.mrb[0].mxu0
      %v1444 = vadd.f32 %v1343, %v1443
      %v1445 = vpop.f32.mrb[0].mxu0
      %v1446 = vpop.f32.mrb[0].mxu0
      %v1447 = vadd.f32 %v1343, %v1446
      %v1448 = vpop.f32.mrb[0].mxu0
      %1449 = vmatprep.mubr.bf16.mxu0 0
      %1450 = vmatmul.mubr.bf16.gmra.mrb[0].mxu0 %v1309
      %v1451 = vpop.f32.mrb[0].mxu0
      %v1452 = vadd.f32 %v1343, %v1451
      %v1453 = vpop.f32.mrb[0].mxu0
      %v1454 = vpop.f32.mrb[0].mxu0
      %v1455 = vadd.f32 %v1343, %v1454
      %v1456 = vpop.f32.mrb[0].mxu0
      %1457 = vmatprep.mubr.bf16.mxu0 0
      %1458 = vmatmul.mubr.bf16.gmra.mrb[0].mxu0 %v1310
      %v1459 = vpop.f32.mrb[0].mxu0
      %v1460 = vadd.f32 %v1343, %v1459
      %v1461 = vpop.f32.mrb[0].mxu0
      %v1462 = vpop.f32.mrb[0].mxu0
      %v1463 = vadd.f32 %v1343, %v1462
      %v1464 = vpop.f32.mrb[0].mxu0
      %1465 = vmatprep.mubr.bf16.mxu0 0
      %1466 = vmatmul.mubr.bf16.gmra.mrb[0].mxu0 %v1311
      %v1467 = vpop.f32.mrb[0].mxu0
      %v1468 = vadd.f32 %v1343, %v1467
      %v1469 = vpop.f32.mrb[0].mxu0
      %v1470 = vpop.f32.mrb[0].mxu0
      %v1471 = vadd.f32 %v1343, %v1470
      %v1472 = vpop.f32.mrb[0].mxu0
      %1473 = vmatprep.mubr.bf16.mxu0 0
      %1474 = vmatmul.mubr.bf16.gmra.mrb[0].mxu0 %v1312
      %v1475 = vpop.f32.mrb[0].mxu0
      %v1476 = vadd.f32 %v1343, %v1475
      %v1477 = vpop.f32.mrb[0].mxu0
      %v1478 = vpop.f32.mrb[0].mxu0
      %v1479 = vadd.f32 %v1343, %v1478
      %v1480 = vpop.f32.mrb[0].mxu0
      %1481 = vmatprep.mubr.bf16.mxu0 0
      %1482 = vmatmul.mubr.bf16.gmra.mrb[0].mxu0 %v1313
      %v1483 = vpop.f32.mrb[0].mxu0
      %v1484 = vadd.f32 %v1343, %v1483
      %v1485 = vpop.f32.mrb[0].mxu0
      %v1486 = vpop.f32.mrb[0].mxu0
      %v1487 = vadd.f32 %v1343, %v1486
      %v1488 = vpop.f32.mrb[0].mxu0
      %1489 = vmatprep.mubr.bf16.mxu0 0
      %1490 = vmatmul.mubr.bf16.gmra.mrb[0].mxu0 %v1314
      %v1491 = vpop.f32.mrb[0].mxu0
      %v1492 = vadd.f32 %v1343, %v1491
      %v1493 = vpop.f32.mrb[0].mxu0
      %v1494 = vpop.f32.mrb[0].mxu0
      %v1495 = vadd.f32 %v1343, %v1494
      %v1496 = vpop.f32.mrb[0].mxu0
      %1497 = vmatprep.mubr.bf16.mxu0 0
      %1498 = vmatmul.mubr.bf16.gmra.mrb[0].mxu0 %v1315
      %v1499 = vpop.f32.mrb[0].mxu0
      %v1500 = vadd.f32 %v1343, %v1499
      %v1501 = vpop.f32.mrb[0].mxu0
      %v1502 = vpop.f32.mrb[0].mxu0
      %v1503 = vadd.f32 %v1343, %v1502
      %v1504 = vpop.f32.mrb[0].mxu0
      %1505 = vmatprep.mubr.bf16.mxu0 0
      %1506 = vmatmul.mubr.bf16.gmra.mrb[0].mxu0 %v1316
      %v1507 = vpop.f32.mrb[0].mxu0
      %v1508 = vadd.f32 %v1343, %v1507
      %v1509 = vpop.f32.mrb[0].mxu0
      %v1510 = vpop.f32.mrb[0].mxu0
      %v1511 = vadd.f32 %v1343, %v1510
      %v1512 = vpop.f32.mrb[0].mxu0
      %1513 = vmatprep.mubr.bf16.mxu0 0
      %1514 = vmatmul.mubr.bf16.gmra.mrb[0].mxu0 %v1317
      %v1515 = vpop.f32.mrb[0].mxu0
      %v1516 = vadd.f32 %v1343, %v1515
      %v1517 = vpop.f32.mrb[0].mxu0
      %v1518 = vpop.f32.mrb[0].mxu0
      %v1519 = vadd.f32 %v1343, %v1518
      %v1520 = vpop.f32.mrb[0].mxu0
      %1521 = vmatprep.mubr.bf16.mxu0 0
      %1522 = vmatmul.mubr.bf16.gmra.mrb[0].mxu0 %v1318
      %v1523 = vpop.f32.mrb[0].mxu0
      %v1524 = vadd.f32 %v1343, %v1523
      %v1525 = vpop.f32.mrb[0].mxu0
      %v1526 = vpop.f32.mrb[0].mxu0
      %v1527 = vadd.f32 %v1343, %v1526
      %v1528 = vpop.f32.mrb[0].mxu0
      %1529 = vmatprep.mubr.bf16.mxu0 0
      %1530 = vmatmul.mubr.bf16.gmra.mrb[0].mxu0 %v1319
      %v1531 = vpop.f32.mrb[0].mxu0
      %v1532 = vadd.f32 %v1343, %v1531
      %v1533 = vpop.f32.mrb[0].mxu0
      %v1534 = vpop.f32.mrb[0].mxu0
      %v1535 = vadd.f32 %v1343, %v1534
      %v1536 = vpop.f32.mrb[0].mxu0
      %1537 = vmatprep.mubr.bf16.mxu0 0
      %1538 = vmatmul.mubr.bf16.gmra.mrb[0].mxu0 %v1320
      %v1539 = vpop.f32.mrb[0].mxu0
      %v1540 = vadd.f32 %v1343, %v1539
      %v1541 = vpop.f32.mrb[0].mxu0
      %v1542 = vpop.f32.mrb[0].mxu0
      %v1543 = vadd.f32 %v1343, %v1542
      %v1544 = vpop.f32.mrb[0].mxu0
      %1545 = vmatprep.mubr.bf16.mxu0 0
      %1546 = vmatmul.mubr.bf16.gmra.mrb[0].mxu0 %v1321
      %v1547 = vpop.f32.mrb[0].mxu0
      %v1548 = vadd.f32 %v1343, %v1547
      %v1549 = vpop.f32.mrb[0].mxu0
      %v1550 = vpop.f32.mrb[0].mxu0
      %v1551 = vadd.f32 %v1343, %v1550
      %v1552 = vpop.f32.mrb[0].mxu0
      %1553 = vdwg.mxu0
      %v1554 = vmax.f32 %v1428, 0.0
      %v1555 = vmax.f32 %v1431, 0.0
      %v1556 = vmax.f32 %v1436, 0.0
      %v1557 = vmax.f32 %v1439, 0.0
      %v1558 = vmax.f32 %v1444, 0.0
      %v1559 = vmax.f32 %v1447, 0.0
      %v1560 = vmax.f32 %v1452, 0.0
      %v1561 = vmax.f32 %v1455, 0.0
      %v1562 = vmax.f32 %v1460, 0.0
      %v1563 = vmax.f32 %v1463, 0.0
      %v1564 = vmax.f32 %v1468, 0.0
      %v1565 = vmax.f32 %v1471, 0.0
      %v1566 = vmax.f32 %v1476, 0.0
      %v1567 = vmax.f32 %v1479, 0.0
      %v1568 = vmax.f32 %v1484, 0.0
      %v1569 = vmax.f32 %v1487, 0.0
      %v1570 = vmax.f32 %v1492, 0.0
      %v1571 = vmax.f32 %v1495, 0.0
      %v1572 = vmax.f32 %v1500, 0.0
      %v1573 = vmax.f32 %v1503, 0.0
      %v1574 = vmax.f32 %v1508, 0.0
      %v1575 = vmax.f32 %v1511, 0.0
      %v1576 = vmax.f32 %v1516, 0.0
      %v1577 = vmax.f32 %v1519, 0.0
      %v1578 = vmax.f32 %v1524, 0.0
      %v1579 = vmax.f32 %v1527, 0.0
      %v1580 = vmax.f32 %v1532, 0.0
      %v1581 = vmax.f32 %v1535, 0.0
      %v1582 = vmax.f32 %v1540, 0.0
      %v1583 = vmax.f32 %v1543, 0.0
      %v1584 = vmax.f32 %v1548, 0.0
      %v1585 = vmax.f32 %v1551, 0.0
      %v1586 = vpack.c.bf16 %v1555, %v1554
      %v1587 = vpack.c.bf16 %v1557, %v1556
      %v1588 = vpack.c.bf16 %v1559, %v1558
      %v1589 = vpack.c.bf16 %v1561, %v1560
      %v1590 = vpack.c.bf16 %v1563, %v1562
      %v1591 = vpack.c.bf16 %v1565, %v1564
      %v1592 = vpack.c.bf16 %v1567, %v1566
      %v1593 = vpack.c.bf16 %v1569, %v1568
      %v1594 = vpack.c.bf16 %v1571, %v1570
      %v1595 = vpack.c.bf16 %v1573, %v1572
      %v1596 = vpack.c.bf16 %v1575, %v1574
      %v1597 = vpack.c.bf16 %v1577, %v1576
      %v1598 = vpack.c.bf16 %v1579, %v1578
      %v1599 = vpack.c.bf16 %v1581, %v1580
      %v1600 = vpack.c.bf16 %v1583, %v1582
      %v1601 = vpack.c.bf16 %v1585, %v1584
      %v1602 = vld [vmem:[%s7] sm:$0xf]
      %v1603 = vld [vmem:[%s7 + $0x4] sm:$0xf]
      %v1604 = vld [vmem:[%s7 + $0x8] sm:$0xf]
      %v1605 = vld [vmem:[%s7 + $0xc] sm:$0xf]
      %v1606 = vld [vmem:[%s7 + $0x10] sm:$0xf]
      %v1607 = vld [vmem:[%s7 + $0x14] sm:$0xf]
      %v1608 = vld [vmem:[%s7 + $0x18] sm:$0xf]
      %v1609 = vld [vmem:[%s7 + $0x1c] sm:$0xf]
      %v1610 = vld [vmem:[%s7 + $0x20] sm:$0xf]
      %v1611 = vld [vmem:[%s7 + $0x24] sm:$0xf]
      %v1612 = vld [vmem:[%s7 + $0x28] sm:$0xf]
      %v1613 = vld [vmem:[%s7 + $0x2c] sm:$0xf]
      %v1614 = vld [vmem:[%s7 + $0x30] sm:$0xf]
      %v1615 = vld [vmem:[%s7 + $0x34] sm:$0xf]
      %v1616 = vld [vmem:[%s7 + $0x38] sm:$0xf]
      %v1617 = vld [vmem:[%s7 + $0x3c] sm:$0xf]
      %v1618 = vld [vmem:[%s8] sm:$0x1]
      %v1620 = vlaneseq
      %v1621 = vshrl.u32 %v1620, 7
      %v1622 = vsub.s32 0, %v1621
      %v1623 = vrot.slane %v1618, %v1622
      %v1641 = vunpack.c.l.b16 %v1602
      %v1642 = vunpack.c.l.b16 %v1603
      %v1643 = vunpack.c.l.b16 %v1604
      %v1644 = vunpack.c.l.b16 %v1605
      %v1645 = vunpack.c.l.b16 %v1606
      %v1646 = vunpack.c.l.b16 %v1607
      %v1647 = vunpack.c.l.b16 %v1608
      %v1648 = vunpack.c.l.b16 %v1609
      %v1649 = vunpack.c.l.b16 %v1610
      %v1650 = vunpack.c.l.b16 %v1611
      %v1651 = vunpack.c.l.b16 %v1612
      %v1652 = vunpack.c.l.b16 %v1613
      %v1653 = vunpack.c.l.b16 %v1614
      %v1654 = vunpack.c.l.b16 %v1615
      %v1655 = vunpack.c.l.b16 %v1616
      %v1656 = vunpack.c.l.b16 %v1617
      %v1657 = vpack.c.b16 %v1642, %v1641
      %v1658 = vpack.c.b16 %v1644, %v1643
      %v1659 = vpack.c.b16 %v1646, %v1645
      %v1660 = vpack.c.b16 %v1648, %v1647
      %v1661 = vpack.c.b16 %v1650, %v1649
      %v1662 = vpack.c.b16 %v1652, %v1651
      %v1663 = vpack.c.b16 %v1654, %v1653
      %v1664 = vpack.c.b16 %v1656, %v1655
      %1673 = vmatprep.subr.bf16.mxu0 0
      %1674 = vmatpush1.bf16.msra.mxu0 %v1657
      %1675 = vmatprep.subr.bf16.mxu0 0
      %1676 = vmatpush1.bf16.msra.mxu0 %v1658
      %1677 = vmatprep.subr.bf16.mxu0 0
      %1678 = vmatpush1.bf16.msra.mxu0 %v1659
      %1679 = vmatprep.subr.bf16.mxu0 0
      %1680 = vmatpush1.bf16.msra.mxu0 %v1660
      %1681 = vmatprep.subr.bf16.mxu0 0
      %1682 = vmatpush1.bf16.msra.mxu0 %v1661
      %1683 = vmatprep.subr.bf16.mxu0 0
      %1684 = vmatpush1.bf16.msra.mxu0 %v1662
      %1685 = vmatprep.subr.bf16.mxu0 0
      %1686 = vmatpush1.bf16.msra.mxu0 %v1663
      %1687 = vmatprep.subr.bf16.mxu0 0
      %1688 = vmatpush1.bf16.msra.mxu0 %v1664
      %1689 = vmatprep.subr.bf16.mxu0 0
      %1690 = vmatpush1.bf16.msra.mxu0 0
      %1691 = vmatprep.subr.bf16.mxu0 0
      %1692 = vmatpush1.bf16.msra.mxu0 0
      %1693 = vmatprep.subr.bf16.mxu0 0
      %1694 = vmatpush1.bf16.msra.mxu0 0
      %1695 = vmatprep.subr.bf16.mxu0 0
      %1696 = vmatpush1.bf16.msra.mxu0 0
      %1697 = vmatprep.subr.bf16.mxu0 0
      %1698 = vmatpush1.bf16.msra.mxu0 0
      %1699 = vmatprep.subr.bf16.mxu0 0
      %1700 = vmatpush1.bf16.msra.mxu0 0
      %1701 = vmatprep.subr.bf16.mxu0 0
      %1702 = vmatpush1.bf16.msra.mxu0 0
      %1703 = vmatprep.subr.bf16.mxu0 0
      %1704 = vmatpush1.bf16.msra.mxu0 0
      %1705 = vmatprep.mubr.bf16.mxu0 0
      %1706 = vmatmul.mubr.bf16.gmra.mrb[0].mxu0 %v1586
      %v1707 = vpop.f32.mrb[0].mxu0
      %v1708 = vadd.f32 %v1623, %v1707
      %v1709 = vpop.f32.mrb[0].mxu0
      %v1710 = vpop.f32.mrb[0].mxu0
      %v1711 = vadd.f32 %v1623, %v1710
      %v1712 = vpop.f32.mrb[0].mxu0
      %1713 = vmatprep.mubr.bf16.mxu0 0
      %1714 = vmatmul.mubr.bf16.gmra.mrb[0].mxu0 %v1587
      %v1715 = vpop.f32.mrb[0].mxu0
      %v1716 = vadd.f32 %v1623, %v1715
      %v1717 = vpop.f32.mrb[0].mxu0
      %v1718 = vpop.f32.mrb[0].mxu0
      %v1719 = vadd.f32 %v1623, %v1718
      %v1720 = vpop.f32.mrb[0].mxu0
      %1721 = vmatprep.mubr.bf16.mxu0 0
      %1722 = vmatmul.mubr.bf16.gmra.mrb[0].mxu0 %v1588
      %v1723 = vpop.f32.mrb[0].mxu0
      %v1724 = vadd.f32 %v1623, %v1723
      %v1725 = vpop.f32.mrb[0].mxu0
      %v1726 = vpop.f32.mrb[0].mxu0
      %v1727 = vadd.f32 %v1623, %v1726
      %v1728 = vpop.f32.mrb[0].mxu0
      %1729 = vmatprep.mubr.bf16.mxu0 0
      %1730 = vmatmul.mubr.bf16.gmra.mrb[0].mxu0 %v1589
      %v1731 = vpop.f32.mrb[0].mxu0
      %v1732 = vadd.f32 %v1623, %v1731
      %v1733 = vpop.f32.mrb[0].mxu0
      %v1734 = vpop.f32.mrb[0].mxu0
      %v1735 = vadd.f32 %v1623, %v1734
      %v1736 = vpop.f32.mrb[0].mxu0
      %1737 = vmatprep.mubr.bf16.mxu0 0
      %1738 = vmatmul.mubr.bf16.gmra.mrb[0].mxu0 %v1590
      %v1739 = vpop.f32.mrb[0].mxu0
      %v1740 = vadd.f32 %v1623, %v1739
      %v1741 = vpop.f32.mrb[0].mxu0
      %v1742 = vpop.f32.mrb[0].mxu0
      %v1743 = vadd.f32 %v1623, %v1742
      %v1744 = vpop.f32.mrb[0].mxu0
      %1745 = vmatprep.mubr.bf16.mxu0 0
      %1746 = vmatmul.mubr.bf16.gmra.mrb[0].mxu0 %v1591
      %v1747 = vpop.f32.mrb[0].mxu0
      %v1748 = vadd.f32 %v1623, %v1747
      %v1749 = vpop.f32.mrb[0].mxu0
      %v1750 = vpop.f32.mrb[0].mxu0
      %v1751 = vadd.f32 %v1623, %v1750
      %v1752 = vpop.f32.mrb[0].mxu0
      %1753 = vmatprep.mubr.bf16.mxu0 0
      %1754 = vmatmul.mubr.bf16.gmra.mrb[0].mxu0 %v1592
      %v1755 = vpop.f32.mrb[0].mxu0
      %v1756 = vadd.f32 %v1623, %v1755
      %v1757 = vpop.f32.mrb[0].mxu0
      %v1758 = vpop.f32.mrb[0].mxu0
      %v1759 = vadd.f32 %v1623, %v1758
      %v1760 = vpop.f32.mrb[0].mxu0
      %1761 = vmatprep.mubr.bf16.mxu0 0
      %1762 = vmatmul.mubr.bf16.gmra.mrb[0].mxu0 %v1593
      %v1763 = vpop.f32.mrb[0].mxu0
      %v1764 = vadd.f32 %v1623, %v1763
      %v1765 = vpop.f32.mrb[0].mxu0
      %v1766 = vpop.f32.mrb[0].mxu0
      %v1767 = vadd.f32 %v1623, %v1766
      %v1768 = vpop.f32.mrb[0].mxu0
      %1769 = vmatprep.mubr.bf16.mxu0 0
      %1770 = vmatmul.mubr.bf16.gmra.mrb[0].mxu0 %v1594
      %v1771 = vpop.f32.mrb[0].mxu0
      %v1772 = vadd.f32 %v1623, %v1771
      %v1773 = vpop.f32.mrb[0].mxu0
      %v1774 = vpop.f32.mrb[0].mxu0
      %v1775 = vadd.f32 %v1623, %v1774
      %v1776 = vpop.f32.mrb[0].mxu0
      %1777 = vmatprep.mubr.bf16.mxu0 0
      %1778 = vmatmul.mubr.bf16.gmra.mrb[0].mxu0 %v1595
      %v1779 = vpop.f32.mrb[0].mxu0
      %v1780 = vadd.f32 %v1623, %v1779
      %v1781 = vpop.f32.mrb[0].mxu0
      %v1782 = vpop.f32.mrb[0].mxu0
      %v1783 = vadd.f32 %v1623, %v1782
      %v1784 = vpop.f32.mrb[0].mxu0
      %1785 = vmatprep.mubr.bf16.mxu0 0
      %1786 = vmatmul.mubr.bf16.gmra.mrb[0].mxu0 %v1596
      %v1787 = vpop.f32.mrb[0].mxu0
      %v1788 = vadd.f32 %v1623, %v1787
      %v1789 = vpop.f32.mrb[0].mxu0
      %v1790 = vpop.f32.mrb[0].mxu0
      %v1791 = vadd.f32 %v1623, %v1790
      %v1792 = vpop.f32.mrb[0].mxu0
      %1793 = vmatprep.mubr.bf16.mxu0 0
      %1794 = vmatmul.mubr.bf16.gmra.mrb[0].mxu0 %v1597
      %v1795 = vpop.f32.mrb[0].mxu0
      %v1796 = vadd.f32 %v1623, %v1795
      %v1797 = vpop.f32.mrb[0].mxu0
      %v1798 = vpop.f32.mrb[0].mxu0
      %v1799 = vadd.f32 %v1623, %v1798
      %v1800 = vpop.f32.mrb[0].mxu0
      %1801 = vmatprep.mubr.bf16.mxu0 0
      %1802 = vmatmul.mubr.bf16.gmra.mrb[0].mxu0 %v1598
      %v1803 = vpop.f32.mrb[0].mxu0
      %v1804 = vadd.f32 %v1623, %v1803
      %v1805 = vpop.f32.mrb[0].mxu0
      %v1806 = vpop.f32.mrb[0].mxu0
      %v1807 = vadd.f32 %v1623, %v1806
      %v1808 = vpop.f32.mrb[0].mxu0
      %1809 = vmatprep.mubr.bf16.mxu0 0
      %1810 = vmatmul.mubr.bf16.gmra.mrb[0].mxu0 %v1599
      %v1811 = vpop.f32.mrb[0].mxu0
      %v1812 = vadd.f32 %v1623, %v1811
      %v1813 = vpop.f32.mrb[0].mxu0
      %v1814 = vpop.f32.mrb[0].mxu0
      %v1815 = vadd.f32 %v1623, %v1814
      %v1816 = vpop.f32.mrb[0].mxu0
      %1817 = vmatprep.mubr.bf16.mxu0 0
      %1818 = vmatmul.mubr.bf16.gmra.mrb[0].mxu0 %v1600
      %v1819 = vpop.f32.mrb[0].mxu0
      %v1820 = vadd.f32 %v1623, %v1819
      %v1821 = vpop.f32.mrb[0].mxu0
      %v1822 = vpop.f32.mrb[0].mxu0
      %v1823 = vadd.f32 %v1623, %v1822
      %v1824 = vpop.f32.mrb[0].mxu0
      %1825 = vmatprep.mubr.bf16.mxu0 0
      %1826 = vmatmul.mubr.bf16.gmra.mrb[0].mxu0 %v1601
      %v1827 = vpop.f32.mrb[0].mxu0
      %v1828 = vadd.f32 %v1623, %v1827
      %v1829 = vpop.f32.mrb[0].mxu0
      %v1830 = vpop.f32.mrb[0].mxu0
      %v1831 = vadd.f32 %v1623, %v1830
      %v1832 = vpop.f32.mrb[0].mxu0
      %1833 = vdwg.mxu0
      %v1834 = vmax.f32 %v1708, 0.0
      %v1835 = vmax.f32 %v1711, 0.0
      %v1836 = vmax.f32 %v1716, 0.0
      %v1837 = vmax.f32 %v1719, 0.0
      %v1838 = vmax.f32 %v1724, 0.0
      %v1839 = vmax.f32 %v1727, 0.0
      %v1840 = vmax.f32 %v1732, 0.0
      %v1841 = vmax.f32 %v1735, 0.0
      %v1842 = vmax.f32 %v1740, 0.0
      %v1843 = vmax.f32 %v1743, 0.0
      %v1844 = vmax.f32 %v1748, 0.0
      %v1845 = vmax.f32 %v1751, 0.0
      %v1846 = vmax.f32 %v1756, 0.0
      %v1847 = vmax.f32 %v1759, 0.0
      %v1848 = vmax.f32 %v1764, 0.0
      %v1849 = vmax.f32 %v1767, 0.0
      %v1850 = vmax.f32 %v1772, 0.0
      %v1851 = vmax.f32 %v1775, 0.0
      %v1852 = vmax.f32 %v1780, 0.0
      %v1853 = vmax.f32 %v1783, 0.0
      %v1854 = vmax.f32 %v1788, 0.0
      %v1855 = vmax.f32 %v1791, 0.0
      %v1856 = vmax.f32 %v1796, 0.0
      %v1857 = vmax.f32 %v1799, 0.0
      %v1858 = vmax.f32 %v1804, 0.0
      %v1859 = vmax.f32 %v1807, 0.0
      %v1860 = vmax.f32 %v1812, 0.0
      %v1861 = vmax.f32 %v1815, 0.0
      %v1862 = vmax.f32 %v1820, 0.0
      %v1863 = vmax.f32 %v1823, 0.0
      %v1864 = vmax.f32 %v1828, 0.0
      %v1865 = vmax.f32 %v1831, 0.0
      %v1866 = vpack.c.bf16 %v1835, %v1834
      %v1867 = vpack.c.bf16 %v1837, %v1836
      %v1868 = vpack.c.bf16 %v1839, %v1838
      %v1869 = vpack.c.bf16 %v1841, %v1840
      %v1870 = vpack.c.bf16 %v1843, %v1842
      %v1871 = vpack.c.bf16 %v1845, %v1844
      %v1872 = vpack.c.bf16 %v1847, %v1846
      %v1873 = vpack.c.bf16 %v1849, %v1848
      %v1874 = vpack.c.bf16 %v1851, %v1850
      %v1875 = vpack.c.bf16 %v1853, %v1852
      %v1876 = vpack.c.bf16 %v1855, %v1854
      %v1877 = vpack.c.bf16 %v1857, %v1856
      %v1878 = vpack.c.bf16 %v1859, %v1858
      %v1879 = vpack.c.bf16 %v1861, %v1860
      %v1880 = vpack.c.bf16 %v1863, %v1862
      %v1881 = vpack.c.bf16 %v1865, %v1864
      %v1882 = vld [vmem:[%s9] sm:$0xf]
      %v1883 = vld [vmem:[%s9 + $0x4] sm:$0xf]
      %v1884 = vld [vmem:[%s9 + $0x8] sm:$0xf]
      %v1885 = vld [vmem:[%s9 + $0xc] sm:$0xf]
      %v1886 = vld [vmem:[%s9 + $0x10] sm:$0xf]
      %v1887 = vld [vmem:[%s9 + $0x14] sm:$0xf]
      %v1888 = vld [vmem:[%s9 + $0x18] sm:$0xf]
      %v1889 = vld [vmem:[%s9 + $0x1c] sm:$0xf]
      %v1890 = vld [vmem:[%s9 + $0x20] sm:$0xf]
      %v1891 = vld [vmem:[%s9 + $0x24] sm:$0xf]
      %v1892 = vld [vmem:[%s9 + $0x28] sm:$0xf]
      %v1893 = vld [vmem:[%s9 + $0x2c] sm:$0xf]
      %v1894 = vld [vmem:[%s9 + $0x30] sm:$0xf]
      %v1895 = vld [vmem:[%s9 + $0x34] sm:$0xf]
      %v1896 = vld [vmem:[%s9 + $0x38] sm:$0xf]
      %v1897 = vld [vmem:[%s9 + $0x3c] sm:$0xf]
      %v1898 = vld [vmem:[%s10] sm:$0xf]
      %v1899 = vld [vmem:[%s10 + $0x4] sm:$0xf]
      %v1900 = vld [vmem:[%s10 + $0x8] sm:$0xf]
      %v1901 = vld [vmem:[%s10 + $0xc] sm:$0xf]
      %v1902 = vld [vmem:[%s10 + $0x10] sm:$0xf]
      %v1903 = vld [vmem:[%s10 + $0x14] sm:$0xf]
      %v1904 = vld [vmem:[%s10 + $0x18] sm:$0xf]
      %v1905 = vld [vmem:[%s10 + $0x1c] sm:$0xf]
      %v1906 = vld [vmem:[%s10 + $0x20] sm:$0xf]
      %v1907 = vld [vmem:[%s10 + $0x24] sm:$0xf]
      %v1908 = vld [vmem:[%s10 + $0x28] sm:$0xf]
      %v1909 = vld [vmem:[%s10 + $0x2c] sm:$0xf]
      %v1910 = vld [vmem:[%s10 + $0x30] sm:$0xf]
      %v1911 = vld [vmem:[%s10 + $0x34] sm:$0xf]
      %v1912 = vld [vmem:[%s10 + $0x38] sm:$0xf]
      %v1913 = vld [vmem:[%s10 + $0x3c] sm:$0xf]
      %v1914 = vld [vmem:[%s11] sm:$0x1]
      %v1931 = vunpack.c.l.b16 %v1898
      %v1932 = vunpack.c.l.b16 %v1899
      %v1933 = vunpack.c.l.b16 %v1900
      %v1934 = vunpack.c.l.b16 %v1901
      %v1935 = vunpack.c.l.b16 %v1902
      %v1936 = vunpack.c.l.b16 %v1903
      %v1937 = vunpack.c.l.b16 %v1904
      %v1938 = vunpack.c.l.b16 %v1905
      %v1939 = vunpack.c.l.b16 %v1906
      %v1940 = vunpack.c.l.b16 %v1907
      %v1941 = vunpack.c.l.b16 %v1908
      %v1942 = vunpack.c.l.b16 %v1909
      %v1943 = vunpack.c.l.b16 %v1910
      %v1944 = vunpack.c.l.b16 %v1911
      %v1945 = vunpack.c.l.b16 %v1912
      %v1946 = vunpack.c.l.b16 %v1913
      %v1947 = vpack.c.b16 %v1932, %v1931
      %v1948 = vpack.c.b16 %v1934, %v1933
      %v1949 = vpack.c.b16 %v1936, %v1935
      %v1950 = vpack.c.b16 %v1938, %v1937
      %v1951 = vpack.c.b16 %v1940, %v1939
      %v1952 = vpack.c.b16 %v1942, %v1941
      %v1953 = vpack.c.b16 %v1944, %v1943
      %v1954 = vpack.c.b16 %v1946, %v1945
      %1963 = vmatprep.subr.bf16.mxu0 0
      %1964 = vmatpush1.bf16.msra.mxu0 %v1947
      %1965 = vmatprep.subr.bf16.mxu0 0
      %1966 = vmatpush1.bf16.msra.mxu0 %v1948
      %1967 = vmatprep.subr.bf16.mxu0 0
      %1968 = vmatpush1.bf16.msra.mxu0 %v1949
      %1969 = vmatprep.subr.bf16.mxu0 0
      %1970 = vmatpush1.bf16.msra.mxu0 %v1950
      %1971 = vmatprep.subr.bf16.mxu0 0
      %1972 = vmatpush1.bf16.msra.mxu0 %v1951
      %1973 = vmatprep.subr.bf16.mxu0 0
      %1974 = vmatpush1.bf16.msra.mxu0 %v1952
      %1975 = vmatprep.subr.bf16.mxu0 0
      %1976 = vmatpush1.bf16.msra.mxu0 %v1953
      %1977 = vmatprep.subr.bf16.mxu0 0
      %1978 = vmatpush1.bf16.msra.mxu0 %v1954
      %1979 = vmatprep.subr.bf16.mxu0 0
      %1980 = vmatpush1.bf16.msra.mxu0 0
      %1981 = vmatprep.subr.bf16.mxu0 0
      %1982 = vmatpush1.bf16.msra.mxu0 0
      %1983 = vmatprep.subr.bf16.mxu0 0
      %1984 = vmatpush1.bf16.msra.mxu0 0
      %1985 = vmatprep.subr.bf16.mxu0 0
      %1986 = vmatpush1.bf16.msra.mxu0 0
      %1987 = vmatprep.subr.bf16.mxu0 0
      %1988 = vmatpush1.bf16.msra.mxu0 0
      %1989 = vmatprep.subr.bf16.mxu0 0
      %1990 = vmatpush1.bf16.msra.mxu0 0
      %1991 = vmatprep.subr.bf16.mxu0 0
      %1992 = vmatpush1.bf16.msra.mxu0 0
      %1993 = vmatprep.subr.bf16.mxu0 0
      %1994 = vmatpush1.bf16.msra.mxu0 0
      %1995 = vmatprep.mubr.bf16.mxu0 0
      %1996 = vmatmul.mubr.bf16.gmra.mrb[0].mxu0 %v753
      %v1997 = vpop.f32.mrb[0].mxu0
      %v1998 = vadd.f32 0.0, %v1997
      %v1999 = vpop.f32.mrb[0].mxu0
      %v2000 = vpop.f32.mrb[0].mxu0
      %v2001 = vadd.f32 0.0, %v2000
      %v2002 = vpop.f32.mrb[0].mxu0
      %2003 = vmatprep.mubr.bf16.mxu0 0
      %2004 = vmatmul.mubr.bf16.gmra.mrb[0].mxu0 %v754
      %v2005 = vpop.f32.mrb[0].mxu0
      %v2006 = vadd.f32 0.0, %v2005
      %v2007 = vpop.f32.mrb[0].mxu0
      %v2008 = vpop.f32.mrb[0].mxu0
      %v2009 = vadd.f32 0.0, %v2008
      %v2010 = vpop.f32.mrb[0].mxu0
      %2011 = vmatprep.mubr.bf16.mxu0 0
      %2012 = vmatmul.mubr.bf16.gmra.mrb[0].mxu0 %v755
      %v2013 = vpop.f32.mrb[0].mxu0
      %v2014 = vadd.f32 0.0, %v2013
      %v2015 = vpop.f32.mrb[0].mxu0
      %v2016 = vpop.f32.mrb[0].mxu0
      %v2017 = vadd.f32 0.0, %v2016
      %v2018 = vpop.f32.mrb[0].mxu0
      %2019 = vmatprep.mubr.bf16.mxu0 0
      %2020 = vmatmul.mubr.bf16.gmra.mrb[0].mxu0 %v756
      %v2021 = vpop.f32.mrb[0].mxu0
      %v2022 = vadd.f32 0.0, %v2021
      %v2023 = vpop.f32.mrb[0].mxu0
      %v2024 = vpop.f32.mrb[0].mxu0
      %v2025 = vadd.f32 0.0, %v2024
      %v2026 = vpop.f32.mrb[0].mxu0
      %2027 = vmatprep.mubr.bf16.mxu0 0
      %2028 = vmatmul.mubr.bf16.gmra.mrb[0].mxu0 %v757
      %v2029 = vpop.f32.mrb[0].mxu0
      %v2030 = vadd.f32 0.0, %v2029
      %v2031 = vpop.f32.mrb[0].mxu0
      %v2032 = vpop.f32.mrb[0].mxu0
      %v2033 = vadd.f32 0.0, %v2032
      %v2034 = vpop.f32.mrb[0].mxu0
      %2035 = vmatprep.mubr.bf16.mxu0 0
      %2036 = vmatmul.mubr.bf16.gmra.mrb[0].mxu0 %v758
      %v2037 = vpop.f32.mrb[0].mxu0
      %v2038 = vadd.f32 0.0, %v2037
      %v2039 = vpop.f32.mrb[0].mxu0
      %v2040 = vpop.f32.mrb[0].mxu0
      %v2041 = vadd.f32 0.0, %v2040
      %v2042 = vpop.f32.mrb[0].mxu0
      %2043 = vmatprep.mubr.bf16.mxu0 0
      %2044 = vmatmul.mubr.bf16.gmra.mrb[0].mxu0 %v759
      %v2045 = vpop.f32.mrb[0].mxu0
      %v2046 = vadd.f32 0.0, %v2045
      %v2047 = vpop.f32.mrb[0].mxu0
      %v2048 = vpop.f32.mrb[0].mxu0
      %v2049 = vadd.f32 0.0, %v2048
      %v2050 = vpop.f32.mrb[0].mxu0
      %2051 = vmatprep.mubr.bf16.mxu0 0
      %2052 = vmatmul.mubr.bf16.gmra.mrb[0].mxu0 %v760
      %v2053 = vpop.f32.mrb[0].mxu0
      %v2054 = vadd.f32 0.0, %v2053
      %v2055 = vpop.f32.mrb[0].mxu0
      %v2056 = vpop.f32.mrb[0].mxu0
      %v2057 = vadd.f32 0.0, %v2056
      %v2058 = vpop.f32.mrb[0].mxu0
      %2059 = vmatprep.mubr.bf16.mxu0 0
      %2060 = vmatmul.mubr.bf16.gmra.mrb[0].mxu0 %v761
      %v2061 = vpop.f32.mrb[0].mxu0
      %v2062 = vadd.f32 0.0, %v2061
      %v2063 = vpop.f32.mrb[0].mxu0
      %v2064 = vpop.f32.mrb[0].mxu0
      %v2065 = vadd.f32 0.0, %v2064
      %v2066 = vpop.f32.mrb[0].mxu0
      %2067 = vmatprep.mubr.bf16.mxu0 0
      %2068 = vmatmul.mubr.bf16.gmra.mrb[0].mxu0 %v762
      %v2069 = vpop.f32.mrb[0].mxu0
      %v2070 = vadd.f32 0.0, %v2069
      %v2071 = vpop.f32.mrb[0].mxu0
      %v2072 = vpop.f32.mrb[0].mxu0
      %v2073 = vadd.f32 0.0, %v2072
      %v2074 = vpop.f32.mrb[0].mxu0
      %2075 = vmatprep.mubr.bf16.mxu0 0
      %2076 = vmatmul.mubr.bf16.gmra.mrb[0].mxu0 %v763
      %v2077 = vpop.f32.mrb[0].mxu0
      %v2078 = vadd.f32 0.0, %v2077
      %v2079 = vpop.f32.mrb[0].mxu0
      %v2080 = vpop.f32.mrb[0].mxu0
      %v2081 = vadd.f32 0.0, %v2080
      %v2082 = vpop.f32.mrb[0].mxu0
      %2083 = vmatprep.mubr.bf16.mxu0 0
      %2084 = vmatmul.mubr.bf16.gmra.mrb[0].mxu0 %v764
      %v2085 = vpop.f32.mrb[0].mxu0
      %v2086 = vadd.f32 0.0, %v2085
      %v2087 = vpop.f32.mrb[0].mxu0
      %v2088 = vpop.f32.mrb[0].mxu0
      %v2089 = vadd.f32 0.0, %v2088
      %v2090 = vpop.f32.mrb[0].mxu0
      %2091 = vmatprep.mubr.bf16.mxu0 0
      %2092 = vmatmul.mubr.bf16.gmra.mrb[0].mxu0 %v765
      %v2093 = vpop.f32.mrb[0].mxu0
      %v2094 = vadd.f32 0.0, %v2093
      %v2095 = vpop.f32.mrb[0].mxu0
      %v2096 = vpop.f32.mrb[0].mxu0
      %v2097 = vadd.f32 0.0, %v2096
      %v2098 = vpop.f32.mrb[0].mxu0
      %2099 = vmatprep.mubr.bf16.mxu0 0
      %2100 = vmatmul.mubr.bf16.gmra.mrb[0].mxu0 %v766
      %v2101 = vpop.f32.mrb[0].mxu0
      %v2102 = vadd.f32 0.0, %v2101
      %v2103 = vpop.f32.mrb[0].mxu0
      %v2104 = vpop.f32.mrb[0].mxu0
      %v2105 = vadd.f32 0.0, %v2104
      %v2106 = vpop.f32.mrb[0].mxu0
      %2107 = vmatprep.mubr.bf16.mxu0 0
      %2108 = vmatmul.mubr.bf16.gmra.mrb[0].mxu0 %v767
      %v2109 = vpop.f32.mrb[0].mxu0
      %v2110 = vadd.f32 0.0, %v2109
      %v2111 = vpop.f32.mrb[0].mxu0
      %v2112 = vpop.f32.mrb[0].mxu0
      %v2113 = vadd.f32 0.0, %v2112
      %v2114 = vpop.f32.mrb[0].mxu0
      %2115 = vmatprep.mubr.bf16.mxu0 0
      %2116 = vmatmul.mubr.bf16.gmra.mrb[0].mxu0 %v768
      %v2117 = vpop.f32.mrb[0].mxu0
      %v2118 = vadd.f32 0.0, %v2117
      %v2119 = vpop.f32.mrb[0].mxu0
      %v2120 = vpop.f32.mrb[0].mxu0
      %v2121 = vadd.f32 0.0, %v2120
      %v2122 = vpop.f32.mrb[0].mxu0
      %2123 = vdwg.mxu0
      %v2140 = vunpack.c.l.b16 %v1882
      %v2141 = vunpack.c.l.b16 %v1883
      %v2142 = vunpack.c.l.b16 %v1884
      %v2143 = vunpack.c.l.b16 %v1885
      %v2144 = vunpack.c.l.b16 %v1886
      %v2145 = vunpack.c.l.b16 %v1887
      %v2146 = vunpack.c.l.b16 %v1888
      %v2147 = vunpack.c.l.b16 %v1889
      %v2148 = vunpack.c.l.b16 %v1890
      %v2149 = vunpack.c.l.b16 %v1891
      %v2150 = vunpack.c.l.b16 %v1892
      %v2151 = vunpack.c.l.b16 %v1893
      %v2152 = vunpack.c.l.b16 %v1894
      %v2153 = vunpack.c.l.b16 %v1895
      %v2154 = vunpack.c.l.b16 %v1896
      %v2155 = vunpack.c.l.b16 %v1897
      %v2156 = vpack.c.b16 %v2141, %v2140
      %v2157 = vpack.c.b16 %v2143, %v2142
      %v2158 = vpack.c.b16 %v2145, %v2144
      %v2159 = vpack.c.b16 %v2147, %v2146
      %v2160 = vpack.c.b16 %v2149, %v2148
      %v2161 = vpack.c.b16 %v2151, %v2150
      %v2162 = vpack.c.b16 %v2153, %v2152
      %v2163 = vpack.c.b16 %v2155, %v2154
      %2172 = vmatprep.subr.bf16.mxu0 0
      %2173 = vmatpush1.bf16.msra.mxu0 %v2156
      %2174 = vmatprep.subr.bf16.mxu0 0
      %2175 = vmatpush1.bf16.msra.mxu0 %v2157
      %2176 = vmatprep.subr.bf16.mxu0 0
      %2177 = vmatpush1.bf16.msra.mxu0 %v2158
      %2178 = vmatprep.subr.bf16.mxu0 0
      %2179 = vmatpush1.bf16.msra.mxu0 %v2159
      %2180 = vmatprep.subr.bf16.mxu0 0
      %2181 = vmatpush1.bf16.msra.mxu0 %v2160
      %2182 = vmatprep.subr.bf16.mxu0 0
      %2183 = vmatpush1.bf16.msra.mxu0 %v2161
      %2184 = vmatprep.subr.bf16.mxu0 0
      %2185 = vmatpush1.bf16.msra.mxu0 %v2162
      %2186 = vmatprep.subr.bf16.mxu0 0
      %2187 = vmatpush1.bf16.msra.mxu0 %v2163
      %2188 = vmatprep.subr.bf16.mxu0 0
      %2189 = vmatpush1.bf16.msra.mxu0 0
      %2190 = vmatprep.subr.bf16.mxu0 0
      %2191 = vmatpush1.bf16.msra.mxu0 0
      %2192 = vmatprep.subr.bf16.mxu0 0
      %2193 = vmatpush1.bf16.msra.mxu0 0
      %2194 = vmatprep.subr.bf16.mxu0 0
      %2195 = vmatpush1.bf16.msra.mxu0 0
      %2196 = vmatprep.subr.bf16.mxu0 0
      %2197 = vmatpush1.bf16.msra.mxu0 0
      %2198 = vmatprep.subr.bf16.mxu0 0
      %2199 = vmatpush1.bf16.msra.mxu0 0
      %2200 = vmatprep.subr.bf16.mxu0 0
      %2201 = vmatpush1.bf16.msra.mxu0 0
      %2202 = vmatprep.subr.bf16.mxu0 0
      %2203 = vmatpush1.bf16.msra.mxu0 0
      %2204 = vmatprep.mubr.bf16.mxu0 0
      %2205 = vmatmul.mubr.bf16.gmra.mrb[0].mxu0 %v1866
      %v2206 = vpop.f32.mrb[0].mxu0
      %v2207 = vadd.f32 %v1998, %v2206
      %v2208 = vpop.f32.mrb[0].mxu0
      %v2209 = vpop.f32.mrb[0].mxu0
      %v2210 = vadd.f32 %v2001, %v2209
      %v2211 = vpop.f32.mrb[0].mxu0
      %2212 = vmatprep.mubr.bf16.mxu0 0
      %2213 = vmatmul.mubr.bf16.gmra.mrb[0].mxu0 %v1867
      %v2214 = vpop.f32.mrb[0].mxu0
      %v2215 = vadd.f32 %v2006, %v2214
      %v2216 = vpop.f32.mrb[0].mxu0
      %v2217 = vpop.f32.mrb[0].mxu0
      %v2218 = vadd.f32 %v2009, %v2217
      %v2219 = vpop.f32.mrb[0].mxu0
      %2220 = vmatprep.mubr.bf16.mxu0 0
      %2221 = vmatmul.mubr.bf16.gmra.mrb[0].mxu0 %v1868
      %v2222 = vpop.f32.mrb[0].mxu0
      %v2223 = vadd.f32 %v2014, %v2222
      %v2224 = vpop.f32.mrb[0].mxu0
      %v2225 = vpop.f32.mrb[0].mxu0
      %v2226 = vadd.f32 %v2017, %v2225
      %v2227 = vpop.f32.mrb[0].mxu0
      %2228 = vmatprep.mubr.bf16.mxu0 0
      %2229 = vmatmul.mubr.bf16.gmra.mrb[0].mxu0 %v1869
      %v2230 = vpop.f32.mrb[0].mxu0
      %v2231 = vadd.f32 %v2022, %v2230
      %v2232 = vpop.f32.mrb[0].mxu0
      %v2233 = vpop.f32.mrb[0].mxu0
      %v2234 = vadd.f32 %v2025, %v2233
      %v2235 = vpop.f32.mrb[0].mxu0
      %2236 = vmatprep.mubr.bf16.mxu0 0
      %2237 = vmatmul.mubr.bf16.gmra.mrb[0].mxu0 %v1870
      %v2238 = vpop.f32.mrb[0].mxu0
      %v2239 = vadd.f32 %v2030, %v2238
      %v2240 = vpop.f32.mrb[0].mxu0
      %v2241 = vpop.f32.mrb[0].mxu0
      %v2242 = vadd.f32 %v2033, %v2241
      %v2243 = vpop.f32.mrb[0].mxu0
      %2244 = vmatprep.mubr.bf16.mxu0 0
      %2245 = vmatmul.mubr.bf16.gmra.mrb[0].mxu0 %v1871
      %v2246 = vpop.f32.mrb[0].mxu0
      %v2247 = vadd.f32 %v2038, %v2246
      %v2248 = vpop.f32.mrb[0].mxu0
      %v2249 = vpop.f32.mrb[0].mxu0
      %v2250 = vadd.f32 %v2041, %v2249
      %v2251 = vpop.f32.mrb[0].mxu0
      %2252 = vmatprep.mubr.bf16.mxu0 0
      %2253 = vmatmul.mubr.bf16.gmra.mrb[0].mxu0 %v1872
      %v2254 = vpop.f32.mrb[0].mxu0
      %v2255 = vadd.f32 %v2046, %v2254
      %v2256 = vpop.f32.mrb[0].mxu0
      %v2257 = vpop.f32.mrb[0].mxu0
      %v2258 = vadd.f32 %v2049, %v2257
      %v2259 = vpop.f32.mrb[0].mxu0
      %2260 = vmatprep.mubr.bf16.mxu0 0
      %2261 = vmatmul.mubr.bf16.gmra.mrb[0].mxu0 %v1873
      %v2262 = vpop.f32.mrb[0].mxu0
      %v2263 = vadd.f32 %v2054, %v2262
      %v2264 = vpop.f32.mrb[0].mxu0
      %v2265 = vpop.f32.mrb[0].mxu0
      %v2266 = vadd.f32 %v2057, %v2265
      %v2267 = vpop.f32.mrb[0].mxu0
      %2268 = vmatprep.mubr.bf16.mxu0 0
      %2269 = vmatmul.mubr.bf16.gmra.mrb[0].mxu0 %v1874
      %v2270 = vpop.f32.mrb[0].mxu0
      %v2271 = vadd.f32 %v2062, %v2270
      %v2272 = vpop.f32.mrb[0].mxu0
      %v2273 = vpop.f32.mrb[0].mxu0
      %v2274 = vadd.f32 %v2065, %v2273
      %v2275 = vpop.f32.mrb[0].mxu0
      %2276 = vmatprep.mubr.bf16.mxu0 0
      %2277 = vmatmul.mubr.bf16.gmra.mrb[0].mxu0 %v1875
      %v2278 = vpop.f32.mrb[0].mxu0
      %v2279 = vadd.f32 %v2070, %v2278
      %v2280 = vpop.f32.mrb[0].mxu0
      %v2281 = vpop.f32.mrb[0].mxu0
      %v2282 = vadd.f32 %v2073, %v2281
      %v2283 = vpop.f32.mrb[0].mxu0
      %2284 = vmatprep.mubr.bf16.mxu0 0
      %2285 = vmatmul.mubr.bf16.gmra.mrb[0].mxu0 %v1876
      %v2286 = vpop.f32.mrb[0].mxu0
      %v2287 = vadd.f32 %v2078, %v2286
      %v2288 = vpop.f32.mrb[0].mxu0
      %v2289 = vpop.f32.mrb[0].mxu0
      %v2290 = vadd.f32 %v2081, %v2289
      %v2291 = vpop.f32.mrb[0].mxu0
      %2292 = vmatprep.mubr.bf16.mxu0 0
      %2293 = vmatmul.mubr.bf16.gmra.mrb[0].mxu0 %v1877
      %v2294 = vpop.f32.mrb[0].mxu0
      %v2295 = vadd.f32 %v2086, %v2294
      %v2296 = vpop.f32.mrb[0].mxu0
      %v2297 = vpop.f32.mrb[0].mxu0
      %v2298 = vadd.f32 %v2089, %v2297
      %v2299 = vpop.f32.mrb[0].mxu0
      %2300 = vmatprep.mubr.bf16.mxu0 0
      %2301 = vmatmul.mubr.bf16.gmra.mrb[0].mxu0 %v1878
      %v2302 = vpop.f32.mrb[0].mxu0
      %v2303 = vadd.f32 %v2094, %v2302
      %v2304 = vpop.f32.mrb[0].mxu0
      %v2305 = vpop.f32.mrb[0].mxu0
      %v2306 = vadd.f32 %v2097, %v2305
      %v2307 = vpop.f32.mrb[0].mxu0
      %2308 = vmatprep.mubr.bf16.mxu0 0
      %2309 = vmatmul.mubr.bf16.gmra.mrb[0].mxu0 %v1879
      %v2310 = vpop.f32.mrb[0].mxu0
      %v2311 = vadd.f32 %v2102, %v2310
      %v2312 = vpop.f32.mrb[0].mxu0
      %v2313 = vpop.f32.mrb[0].mxu0
      %v2314 = vadd.f32 %v2105, %v2313
      %v2315 = vpop.f32.mrb[0].mxu0
      %2316 = vmatprep.mubr.bf16.mxu0 0
      %2317 = vmatmul.mubr.bf16.gmra.mrb[0].mxu0 %v1880
      %v2318 = vpop.f32.mrb[0].mxu0
      %v2319 = vadd.f32 %v2110, %v2318
      %v2320 = vpop.f32.mrb[0].mxu0
      %v2321 = vpop.f32.mrb[0].mxu0
      %v2322 = vadd.f32 %v2113, %v2321
      %v2323 = vpop.f32.mrb[0].mxu0
      %2324 = vmatprep.mubr.bf16.mxu0 0
      %2325 = vmatmul.mubr.bf16.gmra.mrb[0].mxu0 %v1881
      %v2326 = vpop.f32.mrb[0].mxu0
      %v2327 = vadd.f32 %v2118, %v2326
      %v2328 = vpop.f32.mrb[0].mxu0
      %v2329 = vpop.f32.mrb[0].mxu0
      %v2330 = vadd.f32 %v2121, %v2329
      %v2331 = vpop.f32.mrb[0].mxu0
      %2332 = vdwg.mxu0
      %v2334 = vlaneseq
      %v2335 = vshrl.u32 %v2334, 7
      %v2336 = vsub.s32 0, %v2335
      %v2337 = vrot.slane %v1914, %v2336
      %v2339 = vadd.f32 %v2207, %v2337
      %v2340 = vadd.f32 %v2210, %v2337
      %v2341 = vadd.f32 %v2215, %v2337
      %v2342 = vadd.f32 %v2218, %v2337
      %v2343 = vadd.f32 %v2223, %v2337
      %v2344 = vadd.f32 %v2226, %v2337
      %v2345 = vadd.f32 %v2231, %v2337
      %v2346 = vadd.f32 %v2234, %v2337
      %v2347 = vadd.f32 %v2239, %v2337
      %v2348 = vadd.f32 %v2242, %v2337
      %v2349 = vadd.f32 %v2247, %v2337
      %v2350 = vadd.f32 %v2250, %v2337
      %v2351 = vadd.f32 %v2255, %v2337
      %v2352 = vadd.f32 %v2258, %v2337
      %v2353 = vadd.f32 %v2263, %v2337
      %v2354 = vadd.f32 %v2266, %v2337
      %v2355 = vadd.f32 %v2271, %v2337
      %v2356 = vadd.f32 %v2274, %v2337
      %v2357 = vadd.f32 %v2279, %v2337
      %v2358 = vadd.f32 %v2282, %v2337
      %v2359 = vadd.f32 %v2287, %v2337
      %v2360 = vadd.f32 %v2290, %v2337
      %v2361 = vadd.f32 %v2295, %v2337
      %v2362 = vadd.f32 %v2298, %v2337
      %v2363 = vadd.f32 %v2303, %v2337
      %v2364 = vadd.f32 %v2306, %v2337
      %v2365 = vadd.f32 %v2311, %v2337
      %v2366 = vadd.f32 %v2314, %v2337
      %v2367 = vadd.f32 %v2319, %v2337
      %v2368 = vadd.f32 %v2322, %v2337
      %v2369 = vadd.f32 %v2327, %v2337
      %v2370 = vadd.f32 %v2330, %v2337
      %v2371 = vmax.f32 %v2339, 0.0
      %v2372 = vmax.f32 %v2340, 0.0
      %v2373 = vmax.f32 %v2341, 0.0
      %v2374 = vmax.f32 %v2342, 0.0
      %v2375 = vmax.f32 %v2343, 0.0
      %v2376 = vmax.f32 %v2344, 0.0
      %v2377 = vmax.f32 %v2345, 0.0
      %v2378 = vmax.f32 %v2346, 0.0
      %v2379 = vmax.f32 %v2347, 0.0
      %v2380 = vmax.f32 %v2348, 0.0
      %v2381 = vmax.f32 %v2349, 0.0
      %v2382 = vmax.f32 %v2350, 0.0
      %v2383 = vmax.f32 %v2351, 0.0
      %v2384 = vmax.f32 %v2352, 0.0
      %v2385 = vmax.f32 %v2353, 0.0
      %v2386 = vmax.f32 %v2354, 0.0
      %v2387 = vmax.f32 %v2355, 0.0
      %v2388 = vmax.f32 %v2356, 0.0
      %v2389 = vmax.f32 %v2357, 0.0
      %v2390 = vmax.f32 %v2358, 0.0
      %v2391 = vmax.f32 %v2359, 0.0
      %v2392 = vmax.f32 %v2360, 0.0
      %v2393 = vmax.f32 %v2361, 0.0
      %v2394 = vmax.f32 %v2362, 0.0
      %v2395 = vmax.f32 %v2363, 0.0
      %v2396 = vmax.f32 %v2364, 0.0
      %v2397 = vmax.f32 %v2365, 0.0
      %v2398 = vmax.f32 %v2366, 0.0
      %v2399 = vmax.f32 %v2367, 0.0
      %v2400 = vmax.f32 %v2368, 0.0
      %v2401 = vmax.f32 %v2369, 0.0
      %v2402 = vmax.f32 %v2370, 0.0
      %v2403 = vpack.c.bf16 %v2372, %v2371
      %v2404 = vpack.c.bf16 %v2374, %v2373
      %v2405 = vpack.c.bf16 %v2376, %v2375
      %v2406 = vpack.c.bf16 %v2378, %v2377
      %v2407 = vpack.c.bf16 %v2380, %v2379
      %v2408 = vpack.c.bf16 %v2382, %v2381
      %v2409 = vpack.c.bf16 %v2384, %v2383
      %v2410 = vpack.c.bf16 %v2386, %v2385
      %v2411 = vpack.c.bf16 %v2388, %v2387
      %v2412 = vpack.c.bf16 %v2390, %v2389
      %v2413 = vpack.c.bf16 %v2392, %v2391
      %v2414 = vpack.c.bf16 %v2394, %v2393
      %v2415 = vpack.c.bf16 %v2396, %v2395
      %v2416 = vpack.c.bf16 %v2398, %v2397
      %v2417 = vpack.c.bf16 %v2400, %v2399
      %v2418 = vpack.c.bf16 %v2402, %v2401
      %v2419 = vld [vmem:[%s12] sm:$0xf]
      %v2420 = vld [vmem:[%s12 + $0x4] sm:$0xf]
      %v2421 = vld [vmem:[%s12 + $0x8] sm:$0xf]
      %v2422 = vld [vmem:[%s12 + $0xc] sm:$0xf]
      %v2423 = vld [vmem:[%s12 + $0x10] sm:$0xf]
      %v2424 = vld [vmem:[%s12 + $0x14] sm:$0xf]
      %v2425 = vld [vmem:[%s12 + $0x18] sm:$0xf]
      %v2426 = vld [vmem:[%s12 + $0x1c] sm:$0xf]
      %v2427 = vld [vmem:[%s12 + $0x20] sm:$0xf]
      %v2428 = vld [vmem:[%s12 + $0x24] sm:$0xf]
      %v2429 = vld [vmem:[%s12 + $0x28] sm:$0xf]
      %v2430 = vld [vmem:[%s12 + $0x2c] sm:$0xf]
      %v2431 = vld [vmem:[%s12 + $0x30] sm:$0xf]
      %v2432 = vld [vmem:[%s12 + $0x34] sm:$0xf]
      %v2433 = vld [vmem:[%s12 + $0x38] sm:$0xf]
      %v2434 = vld [vmem:[%s12 + $0x3c] sm:$0xf]
      %v2435 = vld [vmem:[%s13] sm:$0x1]
      %v2437 = vlaneseq
      %v2438 = vshrl.u32 %v2437, 7
      %v2439 = vsub.s32 0, %v2438
      %v2440 = vrot.slane %v2435, %v2439
      %v2458 = vunpack.c.l.b16 %v2419
      %v2459 = vunpack.c.l.b16 %v2420
      %v2460 = vunpack.c.l.b16 %v2421
      %v2461 = vunpack.c.l.b16 %v2422
      %v2462 = vunpack.c.l.b16 %v2423
      %v2463 = vunpack.c.l.b16 %v2424
      %v2464 = vunpack.c.l.b16 %v2425
      %v2465 = vunpack.c.l.b16 %v2426
      %v2466 = vunpack.c.l.b16 %v2427
      %v2467 = vunpack.c.l.b16 %v2428
      %v2468 = vunpack.c.l.b16 %v2429
      %v2469 = vunpack.c.l.b16 %v2430
      %v2470 = vunpack.c.l.b16 %v2431
      %v2471 = vunpack.c.l.b16 %v2432
      %v2472 = vunpack.c.l.b16 %v2433
      %v2473 = vunpack.c.l.b16 %v2434
      %v2474 = vpack.c.b16 %v2459, %v2458
      %v2475 = vpack.c.b16 %v2461, %v2460
      %v2476 = vpack.c.b16 %v2463, %v2462
      %v2477 = vpack.c.b16 %v2465, %v2464
      %v2478 = vpack.c.b16 %v2467, %v2466
      %v2479 = vpack.c.b16 %v2469, %v2468
      %v2480 = vpack.c.b16 %v2471, %v2470
      %v2481 = vpack.c.b16 %v2473, %v2472
      %2490 = vmatprep.subr.bf16.mxu0 0
      %2491 = vmatpush1.bf16.msra.mxu0 %v2474
      %2492 = vmatprep.subr.bf16.mxu0 0
      %2493 = vmatpush1.bf16.msra.mxu0 %v2475
      %2494 = vmatprep.subr.bf16.mxu0 0
      %2495 = vmatpush1.bf16.msra.mxu0 %v2476
      %2496 = vmatprep.subr.bf16.mxu0 0
      %2497 = vmatpush1.bf16.msra.mxu0 %v2477
      %2498 = vmatprep.subr.bf16.mxu0 0
      %2499 = vmatpush1.bf16.msra.mxu0 %v2478
      %2500 = vmatprep.subr.bf16.mxu0 0
      %2501 = vmatpush1.bf16.msra.mxu0 %v2479
      %2502 = vmatprep.subr.bf16.mxu0 0
      %2503 = vmatpush1.bf16.msra.mxu0 %v2480
      %2504 = vmatprep.subr.bf16.mxu0 0
      %2505 = vmatpush1.bf16.msra.mxu0 %v2481
      %2506 = vmatprep.subr.bf16.mxu0 0
      %2507 = vmatpush1.bf16.msra.mxu0 0
      %2508 = vmatprep.subr.bf16.mxu0 0
      %2509 = vmatpush1.bf16.msra.mxu0 0
      %2510 = vmatprep.subr.bf16.mxu0 0
      %2511 = vmatpush1.bf16.msra.mxu0 0
      %2512 = vmatprep.subr.bf16.mxu0 0
      %2513 = vmatpush1.bf16.msra.mxu0 0
      %2514 = vmatprep.subr.bf16.mxu0 0
      %2515 = vmatpush1.bf16.msra.mxu0 0
      %2516 = vmatprep.subr.bf16.mxu0 0
      %2517 = vmatpush1.bf16.msra.mxu0 0
      %2518 = vmatprep.subr.bf16.mxu0 0
      %2519 = vmatpush1.bf16.msra.mxu0 0
      %2520 = vmatprep.subr.bf16.mxu0 0
      %2521 = vmatpush1.bf16.msra.mxu0 0
      %2522 = vmatprep.mubr.bf16.mxu0 0
      %2523 = vmatmul.mubr.bf16.gmra.mrb[0].mxu0 %v2403
      %v2524 = vpop.f32.mrb[0].mxu0
      %v2525 = vadd.f32 %v2440, %v2524
      %v2526 = vpop.f32.mrb[0].mxu0
      %v2527 = vpop.f32.mrb[0].mxu0
      %v2528 = vadd.f32 %v2440, %v2527
      %v2529 = vpop.f32.mrb[0].mxu0
      %2530 = vmatprep.mubr.bf16.mxu0 0
      %2531 = vmatmul.mubr.bf16.gmra.mrb[0].mxu0 %v2404
      %v2532 = vpop.f32.mrb[0].mxu0
      %v2533 = vadd.f32 %v2440, %v2532
      %v2534 = vpop.f32.mrb[0].mxu0
      %v2535 = vpop.f32.mrb[0].mxu0
      %v2536 = vadd.f32 %v2440, %v2535
      %v2537 = vpop.f32.mrb[0].mxu0
      %2538 = vmatprep.mubr.bf16.mxu0 0
      %2539 = vmatmul.mubr.bf16.gmra.mrb[0].mxu0 %v2405
      %v2540 = vpop.f32.mrb[0].mxu0
      %v2541 = vadd.f32 %v2440, %v2540
      %v2542 = vpop.f32.mrb[0].mxu0
      %v2543 = vpop.f32.mrb[0].mxu0
      %v2544 = vadd.f32 %v2440, %v2543
      %v2545 = vpop.f32.mrb[0].mxu0
      %2546 = vmatprep.mubr.bf16.mxu0 0
      %2547 = vmatmul.mubr.bf16.gmra.mrb[0].mxu0 %v2406
      %v2548 = vpop.f32.mrb[0].mxu0
      %v2549 = vadd.f32 %v2440, %v2548
      %v2550 = vpop.f32.mrb[0].mxu0
      %v2551 = vpop.f32.mrb[0].mxu0
      %v2552 = vadd.f32 %v2440, %v2551
      %v2553 = vpop.f32.mrb[0].mxu0
      %2554 = vmatprep.mubr.bf16.mxu0 0
      %2555 = vmatmul.mubr.bf16.gmra.mrb[0].mxu0 %v2407
      %v2556 = vpop.f32.mrb[0].mxu0
      %v2557 = vadd.f32 %v2440, %v2556
      %v2558 = vpop.f32.mrb[0].mxu0
      %v2559 = vpop.f32.mrb[0].mxu0
      %v2560 = vadd.f32 %v2440, %v2559
      %v2561 = vpop.f32.mrb[0].mxu0
      %2562 = vmatprep.mubr.bf16.mxu0 0
      %2563 = vmatmul.mubr.bf16.gmra.mrb[0].mxu0 %v2408
      %v2564 = vpop.f32.mrb[0].mxu0
      %v2565 = vadd.f32 %v2440, %v2564
      %v2566 = vpop.f32.mrb[0].mxu0
      %v2567 = vpop.f32.mrb[0].mxu0
      %v2568 = vadd.f32 %v2440, %v2567
      %v2569 = vpop.f32.mrb[0].mxu0
      %2570 = vmatprep.mubr.bf16.mxu0 0
      %2571 = vmatmul.mubr.bf16.gmra.mrb[0].mxu0 %v2409
      %v2572 = vpop.f32.mrb[0].mxu0
      %v2573 = vadd.f32 %v2440, %v2572
      %v2574 = vpop.f32.mrb[0].mxu0
      %v2575 = vpop.f32.mrb[0].mxu0
      %v2576 = vadd.f32 %v2440, %v2575
      %v2577 = vpop.f32.mrb[0].mxu0
      %2578 = vmatprep.mubr.bf16.mxu0 0
      %2579 = vmatmul.mubr.bf16.gmra.mrb[0].mxu0 %v2410
      %v2580 = vpop.f32.mrb[0].mxu0
      %v2581 = vadd.f32 %v2440, %v2580
      %v2582 = vpop.f32.mrb[0].mxu0
      %v2583 = vpop.f32.mrb[0].mxu0
      %v2584 = vadd.f32 %v2440, %v2583
      %v2585 = vpop.f32.mrb[0].mxu0
      %2586 = vmatprep.mubr.bf16.mxu0 0
      %2587 = vmatmul.mubr.bf16.gmra.mrb[0].mxu0 %v2411
      %v2588 = vpop.f32.mrb[0].mxu0
      %v2589 = vadd.f32 %v2440, %v2588
      %v2590 = vpop.f32.mrb[0].mxu0
      %v2591 = vpop.f32.mrb[0].mxu0
      %v2592 = vadd.f32 %v2440, %v2591
      %v2593 = vpop.f32.mrb[0].mxu0
      %2594 = vmatprep.mubr.bf16.mxu0 0
      %2595 = vmatmul.mubr.bf16.gmra.mrb[0].mxu0 %v2412
      %v2596 = vpop.f32.mrb[0].mxu0
      %v2597 = vadd.f32 %v2440, %v2596
      %v2598 = vpop.f32.mrb[0].mxu0
      %v2599 = vpop.f32.mrb[0].mxu0
      %v2600 = vadd.f32 %v2440, %v2599
      %v2601 = vpop.f32.mrb[0].mxu0
      %2602 = vmatprep.mubr.bf16.mxu0 0
      %2603 = vmatmul.mubr.bf16.gmra.mrb[0].mxu0 %v2413
      %v2604 = vpop.f32.mrb[0].mxu0
      %v2605 = vadd.f32 %v2440, %v2604
      %v2606 = vpop.f32.mrb[0].mxu0
      %v2607 = vpop.f32.mrb[0].mxu0
      %v2608 = vadd.f32 %v2440, %v2607
      %v2609 = vpop.f32.mrb[0].mxu0
      %2610 = vmatprep.mubr.bf16.mxu0 0
      %2611 = vmatmul.mubr.bf16.gmra.mrb[0].mxu0 %v2414
      %v2612 = vpop.f32.mrb[0].mxu0
      %v2613 = vadd.f32 %v2440, %v2612
      %v2614 = vpop.f32.mrb[0].mxu0
      %v2615 = vpop.f32.mrb[0].mxu0
      %v2616 = vadd.f32 %v2440, %v2615
      %v2617 = vpop.f32.mrb[0].mxu0
      %2618 = vmatprep.mubr.bf16.mxu0 0
      %2619 = vmatmul.mubr.bf16.gmra.mrb[0].mxu0 %v2415
      %v2620 = vpop.f32.mrb[0].mxu0
      %v2621 = vadd.f32 %v2440, %v2620
      %v2622 = vpop.f32.mrb[0].mxu0
      %v2623 = vpop.f32.mrb[0].mxu0
      %v2624 = vadd.f32 %v2440, %v2623
      %v2625 = vpop.f32.mrb[0].mxu0
      %2626 = vmatprep.mubr.bf16.mxu0 0
      %2627 = vmatmul.mubr.bf16.gmra.mrb[0].mxu0 %v2416
      %v2628 = vpop.f32.mrb[0].mxu0
      %v2629 = vadd.f32 %v2440, %v2628
      %v2630 = vpop.f32.mrb[0].mxu0
      %v2631 = vpop.f32.mrb[0].mxu0
      %v2632 = vadd.f32 %v2440, %v2631
      %v2633 = vpop.f32.mrb[0].mxu0
      %2634 = vmatprep.mubr.bf16.mxu0 0
      %2635 = vmatmul.mubr.bf16.gmra.mrb[0].mxu0 %v2417
      %v2636 = vpop.f32.mrb[0].mxu0
      %v2637 = vadd.f32 %v2440, %v2636
      %v2638 = vpop.f32.mrb[0].mxu0
      %v2639 = vpop.f32.mrb[0].mxu0
      %v2640 = vadd.f32 %v2440, %v2639
      %v2641 = vpop.f32.mrb[0].mxu0
      %2642 = vmatprep.mubr.bf16.mxu0 0
      %2643 = vmatmul.mubr.bf16.gmra.mrb[0].mxu0 %v2418
      %v2644 = vpop.f32.mrb[0].mxu0
      %v2645 = vadd.f32 %v2440, %v2644
      %v2646 = vpop.f32.mrb[0].mxu0
      %v2647 = vpop.f32.mrb[0].mxu0
      %v2648 = vadd.f32 %v2440, %v2647
      %v2649 = vpop.f32.mrb[0].mxu0
      %2650 = vdwg.mxu0
      %v2651 = vmax.f32 %v2525, 0.0
      %v2652 = vmax.f32 %v2528, 0.0
      %v2653 = vmax.f32 %v2533, 0.0
      %v2654 = vmax.f32 %v2536, 0.0
      %v2655 = vmax.f32 %v2541, 0.0
      %v2656 = vmax.f32 %v2544, 0.0
      %v2657 = vmax.f32 %v2549, 0.0
      %v2658 = vmax.f32 %v2552, 0.0
      %v2659 = vmax.f32 %v2557, 0.0
      %v2660 = vmax.f32 %v2560, 0.0
      %v2661 = vmax.f32 %v2565, 0.0
      %v2662 = vmax.f32 %v2568, 0.0
      %v2663 = vmax.f32 %v2573, 0.0
      %v2664 = vmax.f32 %v2576, 0.0
      %v2665 = vmax.f32 %v2581, 0.0
      %v2666 = vmax.f32 %v2584, 0.0
      %v2667 = vmax.f32 %v2589, 0.0
      %v2668 = vmax.f32 %v2592, 0.0
      %v2669 = vmax.f32 %v2597, 0.0
      %v2670 = vmax.f32 %v2600, 0.0
      %v2671 = vmax.f32 %v2605, 0.0
      %v2672 = vmax.f32 %v2608, 0.0
      %v2673 = vmax.f32 %v2613, 0.0
      %v2674 = vmax.f32 %v2616, 0.0
      %v2675 = vmax.f32 %v2621, 0.0
      %v2676 = vmax.f32 %v2624, 0.0
      %v2677 = vmax.f32 %v2629, 0.0
      %v2678 = vmax.f32 %v2632, 0.0
      %v2679 = vmax.f32 %v2637, 0.0
      %v2680 = vmax.f32 %v2640, 0.0
      %v2681 = vmax.f32 %v2645, 0.0
      %v2682 = vmax.f32 %v2648, 0.0
      %v2683 = vpack.c.bf16 %v2652, %v2651
      %v2684 = vpack.c.bf16 %v2654, %v2653
      %v2685 = vpack.c.bf16 %v2656, %v2655
      %v2686 = vpack.c.bf16 %v2658, %v2657
      %v2687 = vpack.c.bf16 %v2660, %v2659
      %v2688 = vpack.c.bf16 %v2662, %v2661
      %v2689 = vpack.c.bf16 %v2664, %v2663
      %v2690 = vpack.c.bf16 %v2666, %v2665
      %v2691 = vpack.c.bf16 %v2668, %v2667
      %v2692 = vpack.c.bf16 %v2670, %v2669
      %v2693 = vpack.c.bf16 %v2672, %v2671
      %v2694 = vpack.c.bf16 %v2674, %v2673
      %v2695 = vpack.c.bf16 %v2676, %v2675
      %v2696 = vpack.c.bf16 %v2678, %v2677
      %v2697 = vpack.c.bf16 %v2680, %v2679
      %v2698 = vpack.c.bf16 %v2682, %v2681
      %v2699 = vld [vmem:[%s14] sm:$0xf]
      %v2700 = vld [vmem:[%s14 + $0x4] sm:$0xf]
      %v2701 = vld [vmem:[%s14 + $0x8] sm:$0xf]
      %v2702 = vld [vmem:[%s14 + $0xc] sm:$0xf]
      %v2703 = vld [vmem:[%s14 + $0x10] sm:$0xf]
      %v2704 = vld [vmem:[%s14 + $0x14] sm:$0xf]
      %v2705 = vld [vmem:[%s14 + $0x18] sm:$0xf]
      %v2706 = vld [vmem:[%s14 + $0x1c] sm:$0xf]
      %v2707 = vld [vmem:[%s14 + $0x20] sm:$0xf]
      %v2708 = vld [vmem:[%s14 + $0x24] sm:$0xf]
      %v2709 = vld [vmem:[%s14 + $0x28] sm:$0xf]
      %v2710 = vld [vmem:[%s14 + $0x2c] sm:$0xf]
      %v2711 = vld [vmem:[%s14 + $0x30] sm:$0xf]
      %v2712 = vld [vmem:[%s14 + $0x34] sm:$0xf]
      %v2713 = vld [vmem:[%s14 + $0x38] sm:$0xf]
      %v2714 = vld [vmem:[%s14 + $0x3c] sm:$0xf]
      %v2715 = vld [vmem:[%s15] sm:$0x1]
      %v2717 = vlaneseq
      %v2718 = vshrl.u32 %v2717, 7
      %v2719 = vsub.s32 0, %v2718
      %v2720 = vrot.slane %v2715, %v2719
      %v2738 = vunpack.c.l.b16 %v2699
      %v2739 = vunpack.c.l.b16 %v2700
      %v2740 = vunpack.c.l.b16 %v2701
      %v2741 = vunpack.c.l.b16 %v2702
      %v2742 = vunpack.c.l.b16 %v2703
      %v2743 = vunpack.c.l.b16 %v2704
      %v2744 = vunpack.c.l.b16 %v2705
      %v2745 = vunpack.c.l.b16 %v2706
      %v2746 = vunpack.c.l.b16 %v2707
      %v2747 = vunpack.c.l.b16 %v2708
      %v2748 = vunpack.c.l.b16 %v2709
      %v2749 = vunpack.c.l.b16 %v2710
      %v2750 = vunpack.c.l.b16 %v2711
      %v2751 = vunpack.c.l.b16 %v2712
      %v2752 = vunpack.c.l.b16 %v2713
      %v2753 = vunpack.c.l.b16 %v2714
      %v2754 = vpack.c.b16 %v2739, %v2738
      %v2755 = vpack.c.b16 %v2741, %v2740
      %v2756 = vpack.c.b16 %v2743, %v2742
      %v2757 = vpack.c.b16 %v2745, %v2744
      %v2758 = vpack.c.b16 %v2747, %v2746
      %v2759 = vpack.c.b16 %v2749, %v2748
      %v2760 = vpack.c.b16 %v2751, %v2750
      %v2761 = vpack.c.b16 %v2753, %v2752
      %2770 = vmatprep.subr.bf16.mxu0 0
      %2771 = vmatpush1.bf16.msra.mxu0 %v2754
      %2772 = vmatprep.subr.bf16.mxu0 0
      %2773 = vmatpush1.bf16.msra.mxu0 %v2755
      %2774 = vmatprep.subr.bf16.mxu0 0
      %2775 = vmatpush1.bf16.msra.mxu0 %v2756
      %2776 = vmatprep.subr.bf16.mxu0 0
      %2777 = vmatpush1.bf16.msra.mxu0 %v2757
      %2778 = vmatprep.subr.bf16.mxu0 0
      %2779 = vmatpush1.bf16.msra.mxu0 %v2758
      %2780 = vmatprep.subr.bf16.mxu0 0
      %2781 = vmatpush1.bf16.msra.mxu0 %v2759
      %2782 = vmatprep.subr.bf16.mxu0 0
      %2783 = vmatpush1.bf16.msra.mxu0 %v2760
      %2784 = vmatprep.subr.bf16.mxu0 0
      %2785 = vmatpush1.bf16.msra.mxu0 %v2761
      %2786 = vmatprep.subr.bf16.mxu0 0
      %2787 = vmatpush1.bf16.msra.mxu0 0
      %2788 = vmatprep.subr.bf16.mxu0 0
      %2789 = vmatpush1.bf16.msra.mxu0 0
      %2790 = vmatprep.subr.bf16.mxu0 0
      %2791 = vmatpush1.bf16.msra.mxu0 0
      %2792 = vmatprep.subr.bf16.mxu0 0
      %2793 = vmatpush1.bf16.msra.mxu0 0
      %2794 = vmatprep.subr.bf16.mxu0 0
      %2795 = vmatpush1.bf16.msra.mxu0 0
      %2796 = vmatprep.subr.bf16.mxu0 0
      %2797 = vmatpush1.bf16.msra.mxu0 0
      %2798 = vmatprep.subr.bf16.mxu0 0
      %2799 = vmatpush1.bf16.msra.mxu0 0
      %2800 = vmatprep.subr.bf16.mxu0 0
      %2801 = vmatpush1.bf16.msra.mxu0 0
      %2802 = vmatprep.mubr.bf16.mxu0 0
      %2803 = vmatmul.mubr.bf16.gmra.mrb[0].mxu0 %v2683
      %v2804 = vpop.f32.mrb[0].mxu0
      %v2805 = vadd.f32 %v2720, %v2804
      %v2806 = vpop.f32.mrb[0].mxu0
      %v2807 = vpop.f32.mrb[0].mxu0
      %v2808 = vadd.f32 %v2720, %v2807
      %v2809 = vpop.f32.mrb[0].mxu0
      %2810 = vmatprep.mubr.bf16.mxu0 0
      %2811 = vmatmul.mubr.bf16.gmra.mrb[0].mxu0 %v2684
      %v2812 = vpop.f32.mrb[0].mxu0
      %v2813 = vadd.f32 %v2720, %v2812
      %v2814 = vpop.f32.mrb[0].mxu0
      %v2815 = vpop.f32.mrb[0].mxu0
      %v2816 = vadd.f32 %v2720, %v2815
      %v2817 = vpop.f32.mrb[0].mxu0
      %2818 = vmatprep.mubr.bf16.mxu0 0
      %2819 = vmatmul.mubr.bf16.gmra.mrb[0].mxu0 %v2685
      %v2820 = vpop.f32.mrb[0].mxu0
      %v2821 = vadd.f32 %v2720, %v2820
      %v2822 = vpop.f32.mrb[0].mxu0
      %v2823 = vpop.f32.mrb[0].mxu0
      %v2824 = vadd.f32 %v2720, %v2823
      %v2825 = vpop.f32.mrb[0].mxu0
      %2826 = vmatprep.mubr.bf16.mxu0 0
      %2827 = vmatmul.mubr.bf16.gmra.mrb[0].mxu0 %v2686
      %v2828 = vpop.f32.mrb[0].mxu0
      %v2829 = vadd.f32 %v2720, %v2828
      %v2830 = vpop.f32.mrb[0].mxu0
      %v2831 = vpop.f32.mrb[0].mxu0
      %v2832 = vadd.f32 %v2720, %v2831
      %v2833 = vpop.f32.mrb[0].mxu0
      %2834 = vmatprep.mubr.bf16.mxu0 0
      %2835 = vmatmul.mubr.bf16.gmra.mrb[0].mxu0 %v2687
      %v2836 = vpop.f32.mrb[0].mxu0
      %v2837 = vadd.f32 %v2720, %v2836
      %v2838 = vpop.f32.mrb[0].mxu0
      %v2839 = vpop.f32.mrb[0].mxu0
      %v2840 = vadd.f32 %v2720, %v2839
      %v2841 = vpop.f32.mrb[0].mxu0
      %2842 = vmatprep.mubr.bf16.mxu0 0
      %2843 = vmatmul.mubr.bf16.gmra.mrb[0].mxu0 %v2688
      %v2844 = vpop.f32.mrb[0].mxu0
      %v2845 = vadd.f32 %v2720, %v2844
      %v2846 = vpop.f32.mrb[0].mxu0
      %v2847 = vpop.f32.mrb[0].mxu0
      %v2848 = vadd.f32 %v2720, %v2847
      %v2849 = vpop.f32.mrb[0].mxu0
      %2850 = vmatprep.mubr.bf16.mxu0 0
      %2851 = vmatmul.mubr.bf16.gmra.mrb[0].mxu0 %v2689
      %v2852 = vpop.f32.mrb[0].mxu0
      %v2853 = vadd.f32 %v2720, %v2852
      %v2854 = vpop.f32.mrb[0].mxu0
      %v2855 = vpop.f32.mrb[0].mxu0
      %v2856 = vadd.f32 %v2720, %v2855
      %v2857 = vpop.f32.mrb[0].mxu0
      %2858 = vmatprep.mubr.bf16.mxu0 0
      %2859 = vmatmul.mubr.bf16.gmra.mrb[0].mxu0 %v2690
      %v2860 = vpop.f32.mrb[0].mxu0
      %v2861 = vadd.f32 %v2720, %v2860
      %v2862 = vpop.f32.mrb[0].mxu0
      %v2863 = vpop.f32.mrb[0].mxu0
      %v2864 = vadd.f32 %v2720, %v2863
      %v2865 = vpop.f32.mrb[0].mxu0
      %2866 = vmatprep.mubr.bf16.mxu0 0
      %2867 = vmatmul.mubr.bf16.gmra.mrb[0].mxu0 %v2691
      %v2868 = vpop.f32.mrb[0].mxu0
      %v2869 = vadd.f32 %v2720, %v2868
      %v2870 = vpop.f32.mrb[0].mxu0
      %v2871 = vpop.f32.mrb[0].mxu0
      %v2872 = vadd.f32 %v2720, %v2871
      %v2873 = vpop.f32.mrb[0].mxu0
      %2874 = vmatprep.mubr.bf16.mxu0 0
      %2875 = vmatmul.mubr.bf16.gmra.mrb[0].mxu0 %v2692
      %v2876 = vpop.f32.mrb[0].mxu0
      %v2877 = vadd.f32 %v2720, %v2876
      %v2878 = vpop.f32.mrb[0].mxu0
      %v2879 = vpop.f32.mrb[0].mxu0
      %v2880 = vadd.f32 %v2720, %v2879
      %v2881 = vpop.f32.mrb[0].mxu0
      %2882 = vmatprep.mubr.bf16.mxu0 0
      %2883 = vmatmul.mubr.bf16.gmra.mrb[0].mxu0 %v2693
      %v2884 = vpop.f32.mrb[0].mxu0
      %v2885 = vadd.f32 %v2720, %v2884
      %v2886 = vpop.f32.mrb[0].mxu0
      %v2887 = vpop.f32.mrb[0].mxu0
      %v2888 = vadd.f32 %v2720, %v2887
      %v2889 = vpop.f32.mrb[0].mxu0
      %2890 = vmatprep.mubr.bf16.mxu0 0
      %2891 = vmatmul.mubr.bf16.gmra.mrb[0].mxu0 %v2694
      %v2892 = vpop.f32.mrb[0].mxu0
      %v2893 = vadd.f32 %v2720, %v2892
      %v2894 = vpop.f32.mrb[0].mxu0
      %v2895 = vpop.f32.mrb[0].mxu0
      %v2896 = vadd.f32 %v2720, %v2895
      %v2897 = vpop.f32.mrb[0].mxu0
      %2898 = vmatprep.mubr.bf16.mxu0 0
      %2899 = vmatmul.mubr.bf16.gmra.mrb[0].mxu0 %v2695
      %v2900 = vpop.f32.mrb[0].mxu0
      %v2901 = vadd.f32 %v2720, %v2900
      %v2902 = vpop.f32.mrb[0].mxu0
      %v2903 = vpop.f32.mrb[0].mxu0
      %v2904 = vadd.f32 %v2720, %v2903
      %v2905 = vpop.f32.mrb[0].mxu0
      %2906 = vmatprep.mubr.bf16.mxu0 0
      %2907 = vmatmul.mubr.bf16.gmra.mrb[0].mxu0 %v2696
      %v2908 = vpop.f32.mrb[0].mxu0
      %v2909 = vadd.f32 %v2720, %v2908
      %v2910 = vpop.f32.mrb[0].mxu0
      %v2911 = vpop.f32.mrb[0].mxu0
      %v2912 = vadd.f32 %v2720, %v2911
      %v2913 = vpop.f32.mrb[0].mxu0
      %2914 = vmatprep.mubr.bf16.mxu0 0
      %2915 = vmatmul.mubr.bf16.gmra.mrb[0].mxu0 %v2697
      %v2916 = vpop.f32.mrb[0].mxu0
      %v2917 = vadd.f32 %v2720, %v2916
      %v2918 = vpop.f32.mrb[0].mxu0
      %v2919 = vpop.f32.mrb[0].mxu0
      %v2920 = vadd.f32 %v2720, %v2919
      %v2921 = vpop.f32.mrb[0].mxu0
      %2922 = vmatprep.mubr.bf16.mxu0 0
      %2923 = vmatmul.mubr.bf16.gmra.mrb[0].mxu0 %v2698
      %v2924 = vpop.f32.mrb[0].mxu0
      %v2925 = vadd.f32 %v2720, %v2924
      %v2926 = vpop.f32.mrb[0].mxu0
      %v2927 = vpop.f32.mrb[0].mxu0
      %v2928 = vadd.f32 %v2720, %v2927
      %v2929 = vpop.f32.mrb[0].mxu0
      %2930 = vdwg.mxu0
      %v2931 = vmax.f32 %v2805, 0.0
      %v2932 = vmax.f32 %v2808, 0.0
      %v2933 = vmax.f32 %v2813, 0.0
      %v2934 = vmax.f32 %v2816, 0.0
      %v2935 = vmax.f32 %v2821, 0.0
      %v2936 = vmax.f32 %v2824, 0.0
      %v2937 = vmax.f32 %v2829, 0.0
      %v2938 = vmax.f32 %v2832, 0.0
      %v2939 = vmax.f32 %v2837, 0.0
      %v2940 = vmax.f32 %v2840, 0.0
      %v2941 = vmax.f32 %v2845, 0.0
      %v2942 = vmax.f32 %v2848, 0.0
      %v2943 = vmax.f32 %v2853, 0.0
      %v2944 = vmax.f32 %v2856, 0.0
      %v2945 = vmax.f32 %v2861, 0.0
      %v2946 = vmax.f32 %v2864, 0.0
      %v2947 = vmax.f32 %v2869, 0.0
      %v2948 = vmax.f32 %v2872, 0.0
      %v2949 = vmax.f32 %v2877, 0.0
      %v2950 = vmax.f32 %v2880, 0.0
      %v2951 = vmax.f32 %v2885, 0.0
      %v2952 = vmax.f32 %v2888, 0.0
      %v2953 = vmax.f32 %v2893, 0.0
      %v2954 = vmax.f32 %v2896, 0.0
      %v2955 = vmax.f32 %v2901, 0.0
      %v2956 = vmax.f32 %v2904, 0.0
      %v2957 = vmax.f32 %v2909, 0.0
      %v2958 = vmax.f32 %v2912, 0.0
      %v2959 = vmax.f32 %v2917, 0.0
      %v2960 = vmax.f32 %v2920, 0.0
      %v2961 = vmax.f32 %v2925, 0.0
      %v2962 = vmax.f32 %v2928, 0.0
      %v2963 = vpack.c.bf16 %v2932, %v2931
      %v2964 = vpack.c.bf16 %v2934, %v2933
      %v2965 = vpack.c.bf16 %v2936, %v2935
      %v2966 = vpack.c.bf16 %v2938, %v2937
      %v2967 = vpack.c.bf16 %v2940, %v2939
      %v2968 = vpack.c.bf16 %v2942, %v2941
      %v2969 = vpack.c.bf16 %v2944, %v2943
      %v2970 = vpack.c.bf16 %v2946, %v2945
      %v2971 = vpack.c.bf16 %v2948, %v2947
      %v2972 = vpack.c.bf16 %v2950, %v2949
      %v2973 = vpack.c.bf16 %v2952, %v2951
      %v2974 = vpack.c.bf16 %v2954, %v2953
      %v2975 = vpack.c.bf16 %v2956, %v2955
      %v2976 = vpack.c.bf16 %v2958, %v2957
      %v2977 = vpack.c.bf16 %v2960, %v2959
      %v2978 = vpack.c.bf16 %v2962, %v2961
      %v2979 = vld [vmem:[%s16] sm:$0xf]
      %v2980 = vld [vmem:[%s16 + $0x4] sm:$0xf]
      %v2981 = vld [vmem:[%s16 + $0x8] sm:$0xf]
      %v2982 = vld [vmem:[%s16 + $0xc] sm:$0xf]
      %v2983 = vld [vmem:[%s16 + $0x10] sm:$0xf]
      %v2984 = vld [vmem:[%s16 + $0x14] sm:$0xf]
      %v2985 = vld [vmem:[%s16 + $0x18] sm:$0xf]
      %v2986 = vld [vmem:[%s16 + $0x1c] sm:$0xf]
      %v2987 = vld [vmem:[%s16 + $0x20] sm:$0xf]
      %v2988 = vld [vmem:[%s16 + $0x24] sm:$0xf]
      %v2989 = vld [vmem:[%s16 + $0x28] sm:$0xf]
      %v2990 = vld [vmem:[%s16 + $0x2c] sm:$0xf]
      %v2991 = vld [vmem:[%s16 + $0x30] sm:$0xf]
      %v2992 = vld [vmem:[%s16 + $0x34] sm:$0xf]
      %v2993 = vld [vmem:[%s16 + $0x38] sm:$0xf]
      %v2994 = vld [vmem:[%s16 + $0x3c] sm:$0xf]
      %v2995 = vld [vmem:[%s17] sm:$0x1]
      %v2997 = vlaneseq
      %v2998 = vshrl.u32 %v2997, 7
      %v2999 = vsub.s32 0, %v2998
      %v3000 = vrot.slane %v2995, %v2999
      %v3018 = vunpack.c.l.b16 %v2979
      %v3019 = vunpack.c.l.b16 %v2980
      %v3020 = vunpack.c.l.b16 %v2981
      %v3021 = vunpack.c.l.b16 %v2982
      %v3022 = vunpack.c.l.b16 %v2983
      %v3023 = vunpack.c.l.b16 %v2984
      %v3024 = vunpack.c.l.b16 %v2985
      %v3025 = vunpack.c.l.b16 %v2986
      %v3026 = vunpack.c.l.b16 %v2987
      %v3027 = vunpack.c.l.b16 %v2988
      %v3028 = vunpack.c.l.b16 %v2989
      %v3029 = vunpack.c.l.b16 %v2990
      %v3030 = vunpack.c.l.b16 %v2991
      %v3031 = vunpack.c.l.b16 %v2992
      %v3032 = vunpack.c.l.b16 %v2993
      %v3033 = vunpack.c.l.b16 %v2994
      %v3034 = vpack.c.b16 %v3019, %v3018
      %v3035 = vpack.c.b16 %v3021, %v3020
      %v3036 = vpack.c.b16 %v3023, %v3022
      %v3037 = vpack.c.b16 %v3025, %v3024
      %v3038 = vpack.c.b16 %v3027, %v3026
      %v3039 = vpack.c.b16 %v3029, %v3028
      %v3040 = vpack.c.b16 %v3031, %v3030
      %v3041 = vpack.c.b16 %v3033, %v3032
      %3050 = vmatprep.subr.bf16.mxu0 0
      %3051 = vmatpush1.bf16.msra.mxu0 %v3034
      %3052 = vmatprep.subr.bf16.mxu0 0
      %3053 = vmatpush1.bf16.msra.mxu0 %v3035
      %3054 = vmatprep.subr.bf16.mxu0 0
      %3055 = vmatpush1.bf16.msra.mxu0 %v3036
      %3056 = vmatprep.subr.bf16.mxu0 0
      %3057 = vmatpush1.bf16.msra.mxu0 %v3037
      %3058 = vmatprep.subr.bf16.mxu0 0
      %3059 = vmatpush1.bf16.msra.mxu0 %v3038
      %3060 = vmatprep.subr.bf16.mxu0 0
      %3061 = vmatpush1.bf16.msra.mxu0 %v3039
      %3062 = vmatprep.subr.bf16.mxu0 0
      %3063 = vmatpush1.bf16.msra.mxu0 %v3040
      %3064 = vmatprep.subr.bf16.mxu0 0
      %3065 = vmatpush1.bf16.msra.mxu0 %v3041
      %3066 = vmatprep.subr.bf16.mxu0 0
      %3067 = vmatpush1.bf16.msra.mxu0 0
      %3068 = vmatprep.subr.bf16.mxu0 0
      %3069 = vmatpush1.bf16.msra.mxu0 0
      %3070 = vmatprep.subr.bf16.mxu0 0
      %3071 = vmatpush1.bf16.msra.mxu0 0
      %3072 = vmatprep.subr.bf16.mxu0 0
      %3073 = vmatpush1.bf16.msra.mxu0 0
      %3074 = vmatprep.subr.bf16.mxu0 0
      %3075 = vmatpush1.bf16.msra.mxu0 0
      %3076 = vmatprep.subr.bf16.mxu0 0
      %3077 = vmatpush1.bf16.msra.mxu0 0
      %3078 = vmatprep.subr.bf16.mxu0 0
      %3079 = vmatpush1.bf16.msra.mxu0 0
      %3080 = vmatprep.subr.bf16.mxu0 0
      %3081 = vmatpush1.bf16.msra.mxu0 0
      %3082 = vmatprep.mubr.bf16.mxu0 0
      %3083 = vmatmul.mubr.bf16.gmra.mrb[0].mxu0 %v2963
      %v3084 = vpop.f32.mrb[0].mxu0
      %v3085 = vadd.f32 %v3000, %v3084
      %v3086 = vpop.f32.mrb[0].mxu0
      %v3087 = vpop.f32.mrb[0].mxu0
      %v3088 = vadd.f32 %v3000, %v3087
      %v3089 = vpop.f32.mrb[0].mxu0
      %3090 = vmatprep.mubr.bf16.mxu0 0
      %3091 = vmatmul.mubr.bf16.gmra.mrb[0].mxu0 %v2964
      %v3092 = vpop.f32.mrb[0].mxu0
      %v3093 = vadd.f32 %v3000, %v3092
      %v3094 = vpop.f32.mrb[0].mxu0
      %v3095 = vpop.f32.mrb[0].mxu0
      %v3096 = vadd.f32 %v3000, %v3095
      %v3097 = vpop.f32.mrb[0].mxu0
      %3098 = vmatprep.mubr.bf16.mxu0 0
      %3099 = vmatmul.mubr.bf16.gmra.mrb[0].mxu0 %v2965
      %v3100 = vpop.f32.mrb[0].mxu0
      %v3101 = vadd.f32 %v3000, %v3100
      %v3102 = vpop.f32.mrb[0].mxu0
      %v3103 = vpop.f32.mrb[0].mxu0
      %v3104 = vadd.f32 %v3000, %v3103
      %v3105 = vpop.f32.mrb[0].mxu0
      %3106 = vmatprep.mubr.bf16.mxu0 0
      %3107 = vmatmul.mubr.bf16.gmra.mrb[0].mxu0 %v2966
      %v3108 = vpop.f32.mrb[0].mxu0
      %v3109 = vadd.f32 %v3000, %v3108
      %v3110 = vpop.f32.mrb[0].mxu0
      %v3111 = vpop.f32.mrb[0].mxu0
      %v3112 = vadd.f32 %v3000, %v3111
      %v3113 = vpop.f32.mrb[0].mxu0
      %3114 = vmatprep.mubr.bf16.mxu0 0
      %3115 = vmatmul.mubr.bf16.gmra.mrb[0].mxu0 %v2967
      %v3116 = vpop.f32.mrb[0].mxu0
      %v3117 = vadd.f32 %v3000, %v3116
      %v3118 = vpop.f32.mrb[0].mxu0
      %v3119 = vpop.f32.mrb[0].mxu0
      %v3120 = vadd.f32 %v3000, %v3119
      %v3121 = vpop.f32.mrb[0].mxu0
      %3122 = vmatprep.mubr.bf16.mxu0 0
      %3123 = vmatmul.mubr.bf16.gmra.mrb[0].mxu0 %v2968
      %v3124 = vpop.f32.mrb[0].mxu0
      %v3125 = vadd.f32 %v3000, %v3124
      %v3126 = vpop.f32.mrb[0].mxu0
      %v3127 = vpop.f32.mrb[0].mxu0
      %v3128 = vadd.f32 %v3000, %v3127
      %v3129 = vpop.f32.mrb[0].mxu0
      %3130 = vmatprep.mubr.bf16.mxu0 0
      %3131 = vmatmul.mubr.bf16.gmra.mrb[0].mxu0 %v2969
      %v3132 = vpop.f32.mrb[0].mxu0
      %v3133 = vadd.f32 %v3000, %v3132
      %v3134 = vpop.f32.mrb[0].mxu0
      %v3135 = vpop.f32.mrb[0].mxu0
      %v3136 = vadd.f32 %v3000, %v3135
      %v3137 = vpop.f32.mrb[0].mxu0
      %3138 = vmatprep.mubr.bf16.mxu0 0
      %3139 = vmatmul.mubr.bf16.gmra.mrb[0].mxu0 %v2970
      %v3140 = vpop.f32.mrb[0].mxu0
      %v3141 = vadd.f32 %v3000, %v3140
      %v3142 = vpop.f32.mrb[0].mxu0
      %v3143 = vpop.f32.mrb[0].mxu0
      %v3144 = vadd.f32 %v3000, %v3143
      %v3145 = vpop.f32.mrb[0].mxu0
      %3146 = vmatprep.mubr.bf16.mxu0 0
      %3147 = vmatmul.mubr.bf16.gmra.mrb[0].mxu0 %v2971
      %v3148 = vpop.f32.mrb[0].mxu0
      %v3149 = vadd.f32 %v3000, %v3148
      %v3150 = vpop.f32.mrb[0].mxu0
      %v3151 = vpop.f32.mrb[0].mxu0
      %v3152 = vadd.f32 %v3000, %v3151
      %v3153 = vpop.f32.mrb[0].mxu0
      %3154 = vmatprep.mubr.bf16.mxu0 0
      %3155 = vmatmul.mubr.bf16.gmra.mrb[0].mxu0 %v2972
      %v3156 = vpop.f32.mrb[0].mxu0
      %v3157 = vadd.f32 %v3000, %v3156
      %v3158 = vpop.f32.mrb[0].mxu0
      %v3159 = vpop.f32.mrb[0].mxu0
      %v3160 = vadd.f32 %v3000, %v3159
      %v3161 = vpop.f32.mrb[0].mxu0
      %3162 = vmatprep.mubr.bf16.mxu0 0
      %3163 = vmatmul.mubr.bf16.gmra.mrb[0].mxu0 %v2973
      %v3164 = vpop.f32.mrb[0].mxu0
      %v3165 = vadd.f32 %v3000, %v3164
      %v3166 = vpop.f32.mrb[0].mxu0
      %v3167 = vpop.f32.mrb[0].mxu0
      %v3168 = vadd.f32 %v3000, %v3167
      %v3169 = vpop.f32.mrb[0].mxu0
      %3170 = vmatprep.mubr.bf16.mxu0 0
      %3171 = vmatmul.mubr.bf16.gmra.mrb[0].mxu0 %v2974
      %v3172 = vpop.f32.mrb[0].mxu0
      %v3173 = vadd.f32 %v3000, %v3172
      %v3174 = vpop.f32.mrb[0].mxu0
      %v3175 = vpop.f32.mrb[0].mxu0
      %v3176 = vadd.f32 %v3000, %v3175
      %v3177 = vpop.f32.mrb[0].mxu0
      %3178 = vmatprep.mubr.bf16.mxu0 0
      %3179 = vmatmul.mubr.bf16.gmra.mrb[0].mxu0 %v2975
      %v3180 = vpop.f32.mrb[0].mxu0
      %v3181 = vadd.f32 %v3000, %v3180
      %v3182 = vpop.f32.mrb[0].mxu0
      %v3183 = vpop.f32.mrb[0].mxu0
      %v3184 = vadd.f32 %v3000, %v3183
      %v3185 = vpop.f32.mrb[0].mxu0
      %3186 = vmatprep.mubr.bf16.mxu0 0
      %3187 = vmatmul.mubr.bf16.gmra.mrb[0].mxu0 %v2976
      %v3188 = vpop.f32.mrb[0].mxu0
      %v3189 = vadd.f32 %v3000, %v3188
      %v3190 = vpop.f32.mrb[0].mxu0
      %v3191 = vpop.f32.mrb[0].mxu0
      %v3192 = vadd.f32 %v3000, %v3191
      %v3193 = vpop.f32.mrb[0].mxu0
      %3194 = vmatprep.mubr.bf16.mxu0 0
      %3195 = vmatmul.mubr.bf16.gmra.mrb[0].mxu0 %v2977
      %v3196 = vpop.f32.mrb[0].mxu0
      %v3197 = vadd.f32 %v3000, %v3196
      %v3198 = vpop.f32.mrb[0].mxu0
      %v3199 = vpop.f32.mrb[0].mxu0
      %v3200 = vadd.f32 %v3000, %v3199
      %v3201 = vpop.f32.mrb[0].mxu0
      %3202 = vmatprep.mubr.bf16.mxu0 0
      %3203 = vmatmul.mubr.bf16.gmra.mrb[0].mxu0 %v2978
      %v3204 = vpop.f32.mrb[0].mxu0
      %v3205 = vadd.f32 %v3000, %v3204
      %v3206 = vpop.f32.mrb[0].mxu0
      %v3207 = vpop.f32.mrb[0].mxu0
      %v3208 = vadd.f32 %v3000, %v3207
      %v3209 = vpop.f32.mrb[0].mxu0
      %3210 = vdwg.mxu0
      %v3211 = vmax.f32 %v3085, 0.0
      %v3212 = vmax.f32 %v3088, 0.0
      %v3213 = vmax.f32 %v3093, 0.0
      %v3214 = vmax.f32 %v3096, 0.0
      %v3215 = vmax.f32 %v3101, 0.0
      %v3216 = vmax.f32 %v3104, 0.0
      %v3217 = vmax.f32 %v3109, 0.0
      %v3218 = vmax.f32 %v3112, 0.0
      %v3219 = vmax.f32 %v3117, 0.0
      %v3220 = vmax.f32 %v3120, 0.0
      %v3221 = vmax.f32 %v3125, 0.0
      %v3222 = vmax.f32 %v3128, 0.0
      %v3223 = vmax.f32 %v3133, 0.0
      %v3224 = vmax.f32 %v3136, 0.0
      %v3225 = vmax.f32 %v3141, 0.0
      %v3226 = vmax.f32 %v3144, 0.0
      %v3227 = vmax.f32 %v3149, 0.0
      %v3228 = vmax.f32 %v3152, 0.0
      %v3229 = vmax.f32 %v3157, 0.0
      %v3230 = vmax.f32 %v3160, 0.0
      %v3231 = vmax.f32 %v3165, 0.0
      %v3232 = vmax.f32 %v3168, 0.0
      %v3233 = vmax.f32 %v3173, 0.0
      %v3234 = vmax.f32 %v3176, 0.0
      %v3235 = vmax.f32 %v3181, 0.0
      %v3236 = vmax.f32 %v3184, 0.0
      %v3237 = vmax.f32 %v3189, 0.0
      %v3238 = vmax.f32 %v3192, 0.0
      %v3239 = vmax.f32 %v3197, 0.0
      %v3240 = vmax.f32 %v3200, 0.0
      %v3241 = vmax.f32 %v3205, 0.0
      %v3242 = vmax.f32 %v3208, 0.0
      %v3243 = vpack.c.bf16 %v3212, %v3211
      %v3244 = vpack.c.bf16 %v3214, %v3213
      %v3245 = vpack.c.bf16 %v3216, %v3215
      %v3246 = vpack.c.bf16 %v3218, %v3217
      %v3247 = vpack.c.bf16 %v3220, %v3219
      %v3248 = vpack.c.bf16 %v3222, %v3221
      %v3249 = vpack.c.bf16 %v3224, %v3223
      %v3250 = vpack.c.bf16 %v3226, %v3225
      %v3251 = vpack.c.bf16 %v3228, %v3227
      %v3252 = vpack.c.bf16 %v3230, %v3229
      %v3253 = vpack.c.bf16 %v3232, %v3231
      %v3254 = vpack.c.bf16 %v3234, %v3233
      %v3255 = vpack.c.bf16 %v3236, %v3235
      %v3256 = vpack.c.bf16 %v3238, %v3237
      %v3257 = vpack.c.bf16 %v3240, %v3239
      %v3258 = vpack.c.bf16 %v3242, %v3241
      %v3259 = vld [vmem:[%s18] sm:$0xf]
      %v3260 = vld [vmem:[%s18 + $0x4] sm:$0xf]
      %v3261 = vld [vmem:[%s18 + $0x8] sm:$0xf]
      %v3262 = vld [vmem:[%s18 + $0xc] sm:$0xf]
      %v3263 = vld [vmem:[%s18 + $0x10] sm:$0xf]
      %v3264 = vld [vmem:[%s18 + $0x14] sm:$0xf]
      %v3265 = vld [vmem:[%s18 + $0x18] sm:$0xf]
      %v3266 = vld [vmem:[%s18 + $0x1c] sm:$0xf]
      %v3267 = vld [vmem:[%s18 + $0x20] sm:$0xf]
      %v3268 = vld [vmem:[%s18 + $0x24] sm:$0xf]
      %v3269 = vld [vmem:[%s18 + $0x28] sm:$0xf]
      %v3270 = vld [vmem:[%s18 + $0x2c] sm:$0xf]
      %v3271 = vld [vmem:[%s18 + $0x30] sm:$0xf]
      %v3272 = vld [vmem:[%s18 + $0x34] sm:$0xf]
      %v3273 = vld [vmem:[%s18 + $0x38] sm:$0xf]
      %v3274 = vld [vmem:[%s18 + $0x3c] sm:$0xf]
      %v3275 = vld [vmem:[%s19] sm:$0x1]
      %v3277 = vlaneseq
      %v3278 = vshrl.u32 %v3277, 7
      %v3279 = vsub.s32 0, %v3278
      %v3280 = vrot.slane %v3275, %v3279
      %v3298 = vunpack.c.l.b16 %v3259
      %v3299 = vunpack.c.l.b16 %v3260
      %v3300 = vunpack.c.l.b16 %v3261
      %v3301 = vunpack.c.l.b16 %v3262
      %v3302 = vunpack.c.l.b16 %v3263
      %v3303 = vunpack.c.l.b16 %v3264
      %v3304 = vunpack.c.l.b16 %v3265
      %v3305 = vunpack.c.l.b16 %v3266
      %v3306 = vunpack.c.l.b16 %v3267
      %v3307 = vunpack.c.l.b16 %v3268
      %v3308 = vunpack.c.l.b16 %v3269
      %v3309 = vunpack.c.l.b16 %v3270
      %v3310 = vunpack.c.l.b16 %v3271
      %v3311 = vunpack.c.l.b16 %v3272
      %v3312 = vunpack.c.l.b16 %v3273
      %v3313 = vunpack.c.l.b16 %v3274
      %v3314 = vpack.c.b16 %v3299, %v3298
      %v3315 = vpack.c.b16 %v3301, %v3300
      %v3316 = vpack.c.b16 %v3303, %v3302
      %v3317 = vpack.c.b16 %v3305, %v3304
      %v3318 = vpack.c.b16 %v3307, %v3306
      %v3319 = vpack.c.b16 %v3309, %v3308
      %v3320 = vpack.c.b16 %v3311, %v3310
      %v3321 = vpack.c.b16 %v3313, %v3312
      %3330 = vmatprep.subr.bf16.mxu0 0
      %3331 = vmatpush1.bf16.msra.mxu0 %v3314
      %3332 = vmatprep.subr.bf16.mxu0 0
      %3333 = vmatpush1.bf16.msra.mxu0 %v3315
      %3334 = vmatprep.subr.bf16.mxu0 0
      %3335 = vmatpush1.bf16.msra.mxu0 %v3316
      %3336 = vmatprep.subr.bf16.mxu0 0
      %3337 = vmatpush1.bf16.msra.mxu0 %v3317
      %3338 = vmatprep.subr.bf16.mxu0 0
      %3339 = vmatpush1.bf16.msra.mxu0 %v3318
      %3340 = vmatprep.subr.bf16.mxu0 0
      %3341 = vmatpush1.bf16.msra.mxu0 %v3319
      %3342 = vmatprep.subr.bf16.mxu0 0
      %3343 = vmatpush1.bf16.msra.mxu0 %v3320
      %3344 = vmatprep.subr.bf16.mxu0 0
      %3345 = vmatpush1.bf16.msra.mxu0 %v3321
      %3346 = vmatprep.subr.bf16.mxu0 0
      %3347 = vmatpush1.bf16.msra.mxu0 0
      %3348 = vmatprep.subr.bf16.mxu0 0
      %3349 = vmatpush1.bf16.msra.mxu0 0
      %3350 = vmatprep.subr.bf16.mxu0 0
      %3351 = vmatpush1.bf16.msra.mxu0 0
      %3352 = vmatprep.subr.bf16.mxu0 0
      %3353 = vmatpush1.bf16.msra.mxu0 0
      %3354 = vmatprep.subr.bf16.mxu0 0
      %3355 = vmatpush1.bf16.msra.mxu0 0
      %3356 = vmatprep.subr.bf16.mxu0 0
      %3357 = vmatpush1.bf16.msra.mxu0 0
      %3358 = vmatprep.subr.bf16.mxu0 0
      %3359 = vmatpush1.bf16.msra.mxu0 0
      %3360 = vmatprep.subr.bf16.mxu0 0
      %3361 = vmatpush1.bf16.msra.mxu0 0
      %3362 = vmatprep.mubr.bf16.mxu0 0
      %3363 = vmatmul.mubr.bf16.gmra.mrb[0].mxu0 %v3243
      %v3364 = vpop.f32.mrb[0].mxu0
      %v3365 = vadd.f32 %v3280, %v3364
      %v3366 = vpop.f32.mrb[0].mxu0
      %v3367 = vpop.f32.mrb[0].mxu0
      %v3368 = vadd.f32 %v3280, %v3367
      %v3369 = vpop.f32.mrb[0].mxu0
      %3370 = vmatprep.mubr.bf16.mxu0 0
      %3371 = vmatmul.mubr.bf16.gmra.mrb[0].mxu0 %v3244
      %v3372 = vpop.f32.mrb[0].mxu0
      %v3373 = vadd.f32 %v3280, %v3372
      %v3374 = vpop.f32.mrb[0].mxu0
      %v3375 = vpop.f32.mrb[0].mxu0
      %v3376 = vadd.f32 %v3280, %v3375
      %v3377 = vpop.f32.mrb[0].mxu0
      %3378 = vmatprep.mubr.bf16.mxu0 0
      %3379 = vmatmul.mubr.bf16.gmra.mrb[0].mxu0 %v3245
      %v3380 = vpop.f32.mrb[0].mxu0
      %v3381 = vadd.f32 %v3280, %v3380
      %v3382 = vpop.f32.mrb[0].mxu0
      %v3383 = vpop.f32.mrb[0].mxu0
      %v3384 = vadd.f32 %v3280, %v3383
      %v3385 = vpop.f32.mrb[0].mxu0
      %3386 = vmatprep.mubr.bf16.mxu0 0
      %3387 = vmatmul.mubr.bf16.gmra.mrb[0].mxu0 %v3246
      %v3388 = vpop.f32.mrb[0].mxu0
      %v3389 = vadd.f32 %v3280, %v3388
      %v3390 = vpop.f32.mrb[0].mxu0
      %v3391 = vpop.f32.mrb[0].mxu0
      %v3392 = vadd.f32 %v3280, %v3391
      %v3393 = vpop.f32.mrb[0].mxu0
      %3394 = vmatprep.mubr.bf16.mxu0 0
      %3395 = vmatmul.mubr.bf16.gmra.mrb[0].mxu0 %v3247
      %v3396 = vpop.f32.mrb[0].mxu0
      %v3397 = vadd.f32 %v3280, %v3396
      %v3398 = vpop.f32.mrb[0].mxu0
      %v3399 = vpop.f32.mrb[0].mxu0
      %v3400 = vadd.f32 %v3280, %v3399
      %v3401 = vpop.f32.mrb[0].mxu0
      %3402 = vmatprep.mubr.bf16.mxu0 0
      %3403 = vmatmul.mubr.bf16.gmra.mrb[0].mxu0 %v3248
      %v3404 = vpop.f32.mrb[0].mxu0
      %v3405 = vadd.f32 %v3280, %v3404
      %v3406 = vpop.f32.mrb[0].mxu0
      %v3407 = vpop.f32.mrb[0].mxu0
      %v3408 = vadd.f32 %v3280, %v3407
      %v3409 = vpop.f32.mrb[0].mxu0
      %3410 = vmatprep.mubr.bf16.mxu0 0
      %3411 = vmatmul.mubr.bf16.gmra.mrb[0].mxu0 %v3249
      %v3412 = vpop.f32.mrb[0].mxu0
      %v3413 = vadd.f32 %v3280, %v3412
      %v3414 = vpop.f32.mrb[0].mxu0
      %v3415 = vpop.f32.mrb[0].mxu0
      %v3416 = vadd.f32 %v3280, %v3415
      %v3417 = vpop.f32.mrb[0].mxu0
      %3418 = vmatprep.mubr.bf16.mxu0 0
      %3419 = vmatmul.mubr.bf16.gmra.mrb[0].mxu0 %v3250
      %v3420 = vpop.f32.mrb[0].mxu0
      %v3421 = vadd.f32 %v3280, %v3420
      %v3422 = vpop.f32.mrb[0].mxu0
      %v3423 = vpop.f32.mrb[0].mxu0
      %v3424 = vadd.f32 %v3280, %v3423
      %v3425 = vpop.f32.mrb[0].mxu0
      %3426 = vmatprep.mubr.bf16.mxu0 0
      %3427 = vmatmul.mubr.bf16.gmra.mrb[0].mxu0 %v3251
      %v3428 = vpop.f32.mrb[0].mxu0
      %v3429 = vadd.f32 %v3280, %v3428
      %v3430 = vpop.f32.mrb[0].mxu0
      %v3431 = vpop.f32.mrb[0].mxu0
      %v3432 = vadd.f32 %v3280, %v3431
      %v3433 = vpop.f32.mrb[0].mxu0
      %3434 = vmatprep.mubr.bf16.mxu0 0
      %3435 = vmatmul.mubr.bf16.gmra.mrb[0].mxu0 %v3252
      %v3436 = vpop.f32.mrb[0].mxu0
      %v3437 = vadd.f32 %v3280, %v3436
      %v3438 = vpop.f32.mrb[0].mxu0
      %v3439 = vpop.f32.mrb[0].mxu0
      %v3440 = vadd.f32 %v3280, %v3439
      %v3441 = vpop.f32.mrb[0].mxu0
      %3442 = vmatprep.mubr.bf16.mxu0 0
      %3443 = vmatmul.mubr.bf16.gmra.mrb[0].mxu0 %v3253
      %v3444 = vpop.f32.mrb[0].mxu0
      %v3445 = vadd.f32 %v3280, %v3444
      %v3446 = vpop.f32.mrb[0].mxu0
      %v3447 = vpop.f32.mrb[0].mxu0
      %v3448 = vadd.f32 %v3280, %v3447
      %v3449 = vpop.f32.mrb[0].mxu0
      %3450 = vmatprep.mubr.bf16.mxu0 0
      %3451 = vmatmul.mubr.bf16.gmra.mrb[0].mxu0 %v3254
      %v3452 = vpop.f32.mrb[0].mxu0
      %v3453 = vadd.f32 %v3280, %v3452
      %v3454 = vpop.f32.mrb[0].mxu0
      %v3455 = vpop.f32.mrb[0].mxu0
      %v3456 = vadd.f32 %v3280, %v3455
      %v3457 = vpop.f32.mrb[0].mxu0
      %3458 = vmatprep.mubr.bf16.mxu0 0
      %3459 = vmatmul.mubr.bf16.gmra.mrb[0].mxu0 %v3255
      %v3460 = vpop.f32.mrb[0].mxu0
      %v3461 = vadd.f32 %v3280, %v3460
      %v3462 = vpop.f32.mrb[0].mxu0
      %v3463 = vpop.f32.mrb[0].mxu0
      %v3464 = vadd.f32 %v3280, %v3463
      %v3465 = vpop.f32.mrb[0].mxu0
      %3466 = vmatprep.mubr.bf16.mxu0 0
      %3467 = vmatmul.mubr.bf16.gmra.mrb[0].mxu0 %v3256
      %v3468 = vpop.f32.mrb[0].mxu0
      %v3469 = vadd.f32 %v3280, %v3468
      %v3470 = vpop.f32.mrb[0].mxu0
      %v3471 = vpop.f32.mrb[0].mxu0
      %v3472 = vadd.f32 %v3280, %v3471
      %v3473 = vpop.f32.mrb[0].mxu0
      %3474 = vmatprep.mubr.bf16.mxu0 0
      %3475 = vmatmul.mubr.bf16.gmra.mrb[0].mxu0 %v3257
      %v3476 = vpop.f32.mrb[0].mxu0
      %v3477 = vadd.f32 %v3280, %v3476
      %v3478 = vpop.f32.mrb[0].mxu0
      %v3479 = vpop.f32.mrb[0].mxu0
      %v3480 = vadd.f32 %v3280, %v3479
      %v3481 = vpop.f32.mrb[0].mxu0
      %3482 = vmatprep.mubr.bf16.mxu0 0
      %3483 = vmatmul.mubr.bf16.gmra.mrb[0].mxu0 %v3258
      %v3484 = vpop.f32.mrb[0].mxu0
      %v3485 = vadd.f32 %v3280, %v3484
      %v3486 = vpop.f32.mrb[0].mxu0
      %v3487 = vpop.f32.mrb[0].mxu0
      %v3488 = vadd.f32 %v3280, %v3487
      %v3489 = vpop.f32.mrb[0].mxu0
      %3490 = vdwg.mxu0
      %3491 = vst [vmem:[%s631] sm:$0xff] %v3365
      %3492 = vst [vmem:[%s631 + $0x8] sm:$0xff] %v3368
      %3493 = vst [vmem:[%s631 + $0x10] sm:$0xff] %v3373
      %3494 = vst [vmem:[%s631 + $0x18] sm:$0xff] %v3376
      %3495 = vst [vmem:[%s631 + $0x20] sm:$0xff] %v3381
      %3496 = vst [vmem:[%s631 + $0x28] sm:$0xff] %v3384
      %3497 = vst [vmem:[%s631 + $0x30] sm:$0xff] %v3389
      %3498 = vst [vmem:[%s631 + $0x38] sm:$0xff] %v3392
      %3499 = vst [vmem:[%s631 + $0x40] sm:$0xff] %v3397
      %3500 = vst [vmem:[%s631 + $0x48] sm:$0xff] %v3400
      %3501 = vst [vmem:[%s631 + $0x50] sm:$0xff] %v3405
      %3502 = vst [vmem:[%s631 + $0x58] sm:$0xff] %v3408
      %3503 = vst [vmem:[%s631 + $0x60] sm:$0xff] %v3413
      %3504 = vst [vmem:[%s631 + $0x68] sm:$0xff] %v3416
      %3505 = vst [vmem:[%s631 + $0x70] sm:$0xff] %v3421
      %3506 = vst [vmem:[%s631 + $0x78] sm:$0xff] %v3424
      %3507 = vst [vmem:[%s631 + $0x80] sm:$0xff] %v3429
      %3508 = vst [vmem:[%s631 + $0x88] sm:$0xff] %v3432
      %3509 = vst [vmem:[%s631 + $0x90] sm:$0xff] %v3437
      %3510 = vst [vmem:[%s631 + $0x98] sm:$0xff] %v3440
      %3511 = vst [vmem:[%s631 + $0xa0] sm:$0xff] %v3445
      %3512 = vst [vmem:[%s631 + $0xa8] sm:$0xff] %v3448
      %3513 = vst [vmem:[%s631 + $0xb0] sm:$0xff] %v3453
      %3514 = vst [vmem:[%s631 + $0xb8] sm:$0xff] %v3456
      %3515 = vst [vmem:[%s631 + $0xc0] sm:$0xff] %v3461
      %3516 = vst [vmem:[%s631 + $0xc8] sm:$0xff] %v3464
      %3517 = vst [vmem:[%s631 + $0xd0] sm:$0xff] %v3469
      %3518 = vst [vmem:[%s631 + $0xd8] sm:$0xff] %v3472
      %3519 = vst [vmem:[%s631 + $0xe0] sm:$0xff] %v3477
      %3520 = vst [vmem:[%s631 + $0xe8] sm:$0xff] %v3480
      %3521 = vst [vmem:[%s631 + $0xf0] sm:$0xff] %v3485
      %3522 = vst [vmem:[%s631 + $0xf8] sm:$0xff] %v3488
      %s3523 = smul.u32 32, %s31
      %p3524 = scmp.lt.s32.totalorder %s3523, 127
      %s3525 = scalar_select %p3524, %s3523, 127
      %s3526 = smul.addr %s3525, 8
      %s3527 = scalar_lea.vmem %s20, %s3526
      // Predicated region
      $region101: #{mlp_forward.1} parent=99 // pred_check
        %p3528 = pneg %p474
      $region102: #{mlp_forward.1} parent=99 // pred_check_branch
        %3530 = sbr.rel (%p3528) target = $region104
      $region103: #{mlp_forward.1} parent=99 // pred_region
        %s3531 = smul.u32 32, %s31
      $region104: #{mlp_forward.1} parent=99 // pred_fallthru
        _
    $region100: #{mlp_forward.1} parent=5 // pred_fallthru
      _
    %p3532 = scmp.le.s32.totalorder 2, %s26
    // Predicated region
    $region105: #{mlp_forward.1} parent=5 // pred_check
      %p3533 = pneg %p3532
    $region106: #{mlp_forward.1} parent=5 // pred_check_branch
      %3535 = sbr.rel (%p3533) target = $region108
    $region107: #{mlp_forward.1} parent=5 // pred_region
      %s3536 = ssub.s32 %s26, 2
      // Predicated region
      $region109: #{mlp_forward.1} parent=107 // pred_check
        %p3537 = pneg %p480
      $region110: #{mlp_forward.1} parent=107 // pred_check_branch
        %3539 = sbr.rel (%p3537) target = $region112
      $region111: #{mlp_forward.1} parent=107 // pred_region
        %s3540 = smul.u32 32, %s32
        %p3541 = scmp.lt.s32.totalorder %s3540, 127
        %s3542 = scalar_select %p3541, %s3540, 127
        %s3543 = smul.addr %s3542, 8
        %s3544 = scalar_lea.vmem %s20, %s3543
      $region112: #{mlp_forward.1} parent=107 // pred_fallthru
        _
    $region108: #{mlp_forward.1} parent=5 // pred_fallthru
      _
  $region6: #{mlp_forward.1} parent=0 // loop_footer
    %s30 = sadd.s32 1, %s26
  $region7: #{mlp_forward.1} parent=0 // loop_footer_branch
    %25 = sbr.rel target = $region3
  $region8: #{mlp_forward.1} parent=0 // loop_exit
    _

</llo_original>
